<compile_context>
chip_gen: v6e
topology: v6e:2x2x1
jax: 0.10.0
libtpu: 0.0.40
codegen_flags: <defaults>
</compile_context>

<pallas_src>
import functools

import jax
import jax.numpy as jnp
from jax.experimental import pallas as pl
from jax.experimental.pallas import tpu as pltpu


# ---------------------------------------------------------------------------
# Fused Pallas kernel: whole APPNP_Model forward pass (transposed layout)
# ---------------------------------------------------------------------------
def appnp_model_kernel(*refs, K, alpha, out_dim, num_mlp):
    """refs = (a_scaled, x_T, (wT_i, b_i) * num_mlp, wcT, bc, out).

    Layouts (all lane dims are multiples of 128):
      a_scaled : (Np, Np)      bf16   == (1 - alpha) * A_hat  (symmetric)
      x_T      : (Fi_pad, Np)  bf16   node features, transposed
      wT_i     : (Fo_pad, Fi_pad) bf16  Linear weight, already transposed
      b_i      : (Fo_pad, 1)   f32
      wcT      : (C_pad, Fh_pad) bf16  1x1-Conv weight, transposed
      bc       : (C_pad, 1)    f32
      out      : (C_pad, Np)   f32    log_softmax logits, transposed
    """
    a_ref, x_ref = refs[0], refs[1]
    lin_refs = refs[2:2 + 2 * num_mlp]
    wc_ref = refs[2 + 2 * num_mlp]
    bc_ref = refs[3 + 2 * num_mlp]
    o_ref = refs[4 + 2 * num_mlp]

    def linear_T(h_bf, w_ref, b_ref):
        # y^T = W^T @ h^T + b   (f32 accumulation, f32 bias)
        return jnp.dot(w_ref[...], h_bf,
                       preferred_element_type=jnp.float32) + b_ref[...]

    def propagate_T(h0):
        # h_{k+1}^T = h_k^T @ [(1-alpha) A_hat] + alpha * h0^T   (A_hat symmetric)
        ah0 = alpha * h0                                  # hoisted out of the loop

        def body(_, h):
            return jnp.dot(h.astype(jnp.bfloat16), a_ref[...],
                           preferred_element_type=jnp.float32) + ah0

        return jax.lax.fori_loop(0, K, body, h0, unroll=True)

    h_bf = x_ref[...]                                     # (Fi_pad, Np) bf16
    for i in range(num_mlp):
        w_ref, b_ref = lin_refs[2 * i], lin_refs[2 * i + 1]
        h = linear_T(h_bf, w_ref, b_ref)                  # Linear_i   (f32)
        h = propagate_T(h)                                # APPNP_i    (f32)
        h = jnp.maximum(h, 0.0)                           # ReLU
        h_bf = h.astype(jnp.bfloat16)

    # 1x1 Conv1d head (per-node linear) + log_softmax over real classes.
    logits = jnp.dot(wc_ref[...], h_bf,
                     preferred_element_type=jnp.float32) + bc_ref[...]  # (Cp, Np)
    cls = jax.lax.broadcasted_iota(jnp.int32, logits.shape, 0)
    logits = jnp.where(cls < out_dim, logits, jnp.float32(-1e30))       # mask pad classes
    m = jnp.max(logits, axis=0, keepdims=True)
    s = logits - m
    lse = jnp.log(jnp.sum(jnp.exp(s), axis=0, keepdims=True))
    o_ref[...] = s - lse


# ---------------------------------------------------------------------------
# Glue: graph normalization, padding, parameter init, forward wrapper
# ---------------------------------------------------------------------------
def _round_up(v, m):
    return ((v + m - 1) // m) * m


def _pad2(a, rows, cols):
    return jnp.pad(a, ((0, rows - a.shape[0]), (0, cols - a.shape[1])))


def build_a_hat(edge_index, num_nodes):
    """Dense A_hat = D^{-1/2} (A + I) D^{-1/2} (PyG gcn_norm, add_self_loops=True)."""
    src, dst = edge_index[0], edge_index[1]
    A = jnp.zeros((num_nodes, num_nodes), jnp.float32).at[dst, src].add(1.0)
    diag = jnp.diag(A)
    A = A + jnp.diag(jnp.where(diag > 0, 0.0, 1.0))       # add_remaining_self_loops
    deg = A.sum(axis=1)
    dinv = jnp.where(deg > 0, jax.lax.rsqrt(deg), 0.0)
    return dinv[:, None] * A * dinv[None, :]


def prepare_graph(edge_index, num_nodes, *, alpha=0.1):
    """Build (1 - alpha) * A_hat ONCE per graph: padded, lane-dense, bf16.

    This is the only O(N^2) preprocessing; it must not be redone per forward.
    """
    n_pad = _round_up(num_nodes, 128)
    a_hat = build_a_hat(edge_index, num_nodes)
    return _pad2((1.0 - alpha) * a_hat, n_pad, n_pad).astype(jnp.bfloat16)


def init_params(key, input_dim, out_dim, filter_num, layer=3):
    ks = jax.random.split(key, 8)

    def glorot(k, shape):
        fan_in, fan_out = shape
        lim = jnp.sqrt(6.0 / (fan_in + fan_out))
        return jax.random.uniform(k, shape, jnp.float32, -lim, lim)

    params = {
        "w1": glorot(ks[0], (input_dim, filter_num)),      # nn.Linear weight^T
        "b1": jnp.zeros((filter_num,), jnp.float32),
        "w2": glorot(ks[1], (filter_num, filter_num)),
        "b2": jnp.zeros((filter_num,), jnp.float32),
        # nn.Conv1d(filter_num, out_dim, 1): weight (out_dim, filter_num, 1),
        # stored here already transposed/squeezed to (filter_num, out_dim).
        "wc": glorot(ks[2], (filter_num, out_dim)),
        "bc": jax.random.uniform(ks[3], (out_dim,), jnp.float32, -0.1, 0.1),
    }
    if layer == 3:
        params["w3"] = glorot(ks[4], (filter_num, filter_num))
        params["b3"] = jnp.zeros((filter_num,), jnp.float32)
    return params


def appnp_model_forward(params, x, a_scaled_pad, *, K=10, alpha=0.1, layer=3):
    """x: (N, input_dim) f32; a_scaled_pad: output of prepare_graph (Np, Np) bf16."""
    N, f_in = x.shape
    filter_num = params["w1"].shape[1]
    out_dim = params["wc"].shape[1]

    n_pad = a_scaled_pad.shape[0]
    assert n_pad >= N and n_pad % 128 == 0
    fi_pad = _round_up(f_in, 128)
    fh_pad = _round_up(filter_num, 128)
    c_pad = _round_up(out_dim, 128)
    num_mlp = 3 if layer == 3 else 2
    K = int(K)

    # --- pack operands: transposed, padded, matmul operands pre-cast to bf16 ---
    x_t = _pad2(x.T, fi_pad, n_pad).astype(jnp.bfloat16)          # (Fi_pad, Np)

    def pwT(w, r, c):                                              # weight^T, bf16
        return _pad2(w.T, r, c).astype(jnp.bfloat16)

    def pb(b, r):                                                  # bias column, f32
        return _pad2(b.reshape(-1, 1), r, 1)

    mlp = [(pwT(params["w1"], fh_pad, fi_pad), pb(params["b1"], fh_pad)),
           (pwT(params["w2"], fh_pad, fh_pad), pb(params["b2"], fh_pad))]
    if layer == 3:
        mlp.append((pwT(params["w3"], fh_pad, fh_pad), pb(params["b3"], fh_pad)))
    wc_t = pwT(params["wc"], c_pad, fh_pad)
    bc = pb(params["bc"], c_pad)

    flat_inputs = [a_scaled_pad, x_t]
    for w, b in mlp:
        flat_inputs += [w, b]
    flat_inputs += [wc_t, bc]

    # --- VMEM budget: A_hat + weights + activations (+30% headroom) ---
    a_bytes = n_pad * n_pad * 2
    w_bytes = (fh_pad * fi_pad + (num_mlp - 1) * fh_pad * fh_pad
               + c_pad * fh_pad) * 2 + (num_mlp * fh_pad + c_pad) * 128 * 4
    act_bytes = (fi_pad * n_pad * 2                      # x_T bf16
                 + 4 * fh_pad * n_pad * 4                # h, h0, ah0, temp (f32)
                 + 2 * c_pad * n_pad * 4)                # logits + output
    vmem_need = int((a_bytes + w_bytes + act_bytes) * 1.3) + (1 << 20)
    vmem_limit = min(max(vmem_need, 32 << 20), 128 << 20)

    # --- advisory cost estimate for XLA's scheduler ---
    flops = 2 * n_pad * (fi_pad * fh_pad + (num_mlp - 1) * fh_pad * fh_pad
                         + fh_pad * c_pad)
    flops += num_mlp * K * 2 * n_pad * n_pad * fh_pad
    bytes_accessed = a_bytes + w_bytes + fi_pad * n_pad * 2 + c_pad * n_pad * 4
    cost = pl.CostEstimate(flops=int(flops),
                           transcendentals=int(n_pad * c_pad),
                           bytes_accessed=int(bytes_accessed))

    kern = functools.partial(appnp_model_kernel, K=K, alpha=float(alpha),
                             out_dim=int(out_dim), num_mlp=num_mlp)

    # Gridless whole-block call: A_hat is DMA'd into VMEM once and reused by
    # every propagation; intermediates never round-trip HBM.
    out_pad = pl.pallas_call(
        kern,
        out_shape=jax.ShapeDtypeStruct((c_pad, n_pad), jnp.float32),
        compiler_params=pltpu.CompilerParams(vmem_limit_bytes=int(vmem_limit)),
        cost_estimate=cost,
    )(*flat_inputs)

    # Output is (C_pad, Np): slice the real classes/nodes, transpose to (N, C).
    return out_pad[:out_dim, :N].T


# ---------------------------------------------------------------------------
if __name__ == "__main__":
    key = jax.random.PRNGKey(0)
    k_x, k_p = jax.random.split(key, 2)

    # Small problem consistent with the module.
    N = 16
    input_dim = 8
    filter_num = 32
    out_dim = 4
    layer = 3           # module default (line3/conv3 included)
    K = 10
    alpha = 0.1

    x = jax.random.normal(k_x, (N, input_dim), jnp.float32)

    # Deterministic symmetric graph: a ring plus a few chords.
    ring_src = jnp.arange(N, dtype=jnp.int32)
    ring_dst = (ring_src + 1) % N
    chord_src = jnp.array([0, 3, 5, 7], jnp.int32)
    chord_dst = jnp.array([8, 11, 13, 2], jnp.int32)
    src = jnp.concatenate([ring_src, ring_dst, chord_src, chord_dst])
    dst = jnp.concatenate([ring_dst, ring_src, chord_dst, chord_src])
    edge_index = jnp.stack([src, dst]).astype(jnp.int32)

    params = init_params(k_p, input_dim, out_dim, filter_num, layer=layer)

    # Graph preprocessing done ONCE (not per forward).
    a_scaled_pad = prepare_graph(edge_index, N, alpha=alpha)

    out = appnp_model_forward(params, x, a_scaled_pad, K=K, alpha=alpha, layer=layer)
    out = jax.block_until_ready(out)

    assert out.shape == (N, out_dim)
    assert bool(jnp.all(jnp.isfinite(out)))
    # log_softmax rows must exponentiate-sum to ~1.
    assert bool(jnp.allclose(jnp.exp(out).sum(axis=1), 1.0, atol=1e-3))
    print("KERNEL_OK")
</pallas_src>

<mosaic_0001>
module attributes {stable_mosaic.version = 11 : i64} {
  func.func @appnp_model_kernel(%arg0: memref<128x128xbf16, #tpu.memory_space<vmem>>, %arg1: memref<128x128xbf16, #tpu.memory_space<vmem>>, %arg2: memref<128x128xbf16, #tpu.memory_space<vmem>>, %arg3: memref<128x1xf32, #tpu.memory_space<vmem>>, %arg4: memref<128x128xbf16, #tpu.memory_space<vmem>>, %arg5: memref<128x1xf32, #tpu.memory_space<vmem>>, %arg6: memref<128x128xbf16, #tpu.memory_space<vmem>>, %arg7: memref<128x1xf32, #tpu.memory_space<vmem>>, %arg8: memref<128x128xbf16, #tpu.memory_space<vmem>>, %arg9: memref<128x1xf32, #tpu.memory_space<vmem>>, %arg10: memref<128x128xf32, #tpu.memory_space<vmem>>) attributes {dimension_semantics = [], scalar_prefetch = 0 : i64, scratch_operands = 0 : i64, tpu.core_type = #tpu.core_type<tc>} {
    %c0 = arith.constant 0 : index
    %c0_0 = arith.constant 0 : index
    %0 = vector.load %arg1[%c0, %c0_0] : memref<128x128xbf16, #tpu.memory_space<vmem>>, vector<128x128xbf16>
    %c0_1 = arith.constant 0 : index
    %c0_2 = arith.constant 0 : index
    %1 = vector.load %arg2[%c0_1, %c0_2] : memref<128x128xbf16, #tpu.memory_space<vmem>>, vector<128x128xbf16>
    %cst = arith.constant dense<0.000000e+00> : vector<128x128xf32>
    %2 = tpu.matmul %1, %0, %cst {dimension_numbers = #tpu.dot_dimension_numbers<[1], [0], [0], [1], [0, 0, 1, 1], [], []>} : vector<128x128xbf16>, vector<128x128xbf16>, vector<128x128xf32> -> vector<128x128xf32>
    %c0_3 = arith.constant 0 : index
    %c0_4 = arith.constant 0 : index
    %3 = vector.load %arg3[%c0_3, %c0_4] : memref<128x1xf32, #tpu.memory_space<vmem>>, vector<128x1xf32>
    %4 = vector.broadcast %3 : vector<128x1xf32> to vector<128x128xf32>
    %5 = arith.addf %2, %4 : vector<128x128xf32>
    %cst_5 = arith.constant 1.000000e-01 : f32
    %6 = vector.broadcast %cst_5 : f32 to vector<128x128xf32>
    %7 = arith.mulf %6, %5 : vector<128x128xf32>
    %c0_i32 = arith.constant 0 : i32
    %8 = arith.truncf %5 : vector<128x128xf32> to vector<128x128xbf16>
    %c0_6 = arith.constant 0 : index
    %c0_7 = arith.constant 0 : index
    %9 = vector.load %arg0[%c0_6, %c0_7] : memref<128x128xbf16, #tpu.memory_space<vmem>>, vector<128x128xbf16>
    %cst_8 = arith.constant dense<0.000000e+00> : vector<128x128xf32>
    %10 = tpu.matmul %8, %9, %cst_8 {dimension_numbers = #tpu.dot_dimension_numbers<[1], [0], [0], [1], [0, 0, 1, 1], [], []>} : vector<128x128xbf16>, vector<128x128xbf16>, vector<128x128xf32> -> vector<128x128xf32>
    %11 = arith.addf %10, %7 : vector<128x128xf32>
    %c1_i32 = arith.constant 1 : i32
    %12 = arith.truncf %11 : vector<128x128xf32> to vector<128x128xbf16>
    %c0_9 = arith.constant 0 : index
    %c0_10 = arith.constant 0 : index
    %13 = vector.load %arg0[%c0_9, %c0_10] : memref<128x128xbf16, #tpu.memory_space<vmem>>, vector<128x128xbf16>
    %cst_11 = arith.constant dense<0.000000e+00> : vector<128x128xf32>
    %14 = tpu.matmul %12, %13, %cst_11 {dimension_numbers = #tpu.dot_dimension_numbers<[1], [0], [0], [1], [0, 0, 1, 1], [], []>} : vector<128x128xbf16>, vector<128x128xbf16>, vector<128x128xf32> -> vector<128x128xf32>
    %15 = arith.addf %14, %7 : vector<128x128xf32>
    %c2_i32 = arith.constant 2 : i32
    %16 = arith.truncf %15 : vector<128x128xf32> to vector<128x128xbf16>
    %c0_12 = arith.constant 0 : index
    %c0_13 = arith.constant 0 : index
    %17 = vector.load %arg0[%c0_12, %c0_13] : memref<128x128xbf16, #tpu.memory_space<vmem>>, vector<128x128xbf16>
    %cst_14 = arith.constant dense<0.000000e+00> : vector<128x128xf32>
    %18 = tpu.matmul %16, %17, %cst_14 {dimension_numbers = #tpu.dot_dimension_numbers<[1], [0], [0], [1], [0, 0, 1, 1], [], []>} : vector<128x128xbf16>, vector<128x128xbf16>, vector<128x128xf32> -> vector<128x128xf32>
    %19 = arith.addf %18, %7 : vector<128x128xf32>
    %c3_i32 = arith.constant 3 : i32
    %20 = arith.truncf %19 : vector<128x128xf32> to vector<128x128xbf16>
    %c0_15 = arith.constant 0 : index
    %c0_16 = arith.constant 0 : index
    %21 = vector.load %arg0[%c0_15, %c0_16] : memref<128x128xbf16, #tpu.memory_space<vmem>>, vector<128x128xbf16>
    %cst_17 = arith.constant dense<0.000000e+00> : vector<128x128xf32>
    %22 = tpu.matmul %20, %21, %cst_17 {dimension_numbers = #tpu.dot_dimension_numbers<[1], [0], [0], [1], [0, 0, 1, 1], [], []>} : vector<128x128xbf16>, vector<128x128xbf16>, vector<128x128xf32> -> vector<128x128xf32>
    %23 = arith.addf %22, %7 : vector<128x128xf32>
    %c4_i32 = arith.constant 4 : i32
    %24 = arith.truncf %23 : vector<128x128xf32> to vector<128x128xbf16>
    %c0_18 = arith.constant 0 : index
    %c0_19 = arith.constant 0 : index
    %25 = vector.load %arg0[%c0_18, %c0_19] : memref<128x128xbf16, #tpu.memory_space<vmem>>, vector<128x128xbf16>
    %cst_20 = arith.constant dense<0.000000e+00> : vector<128x128xf32>
    %26 = tpu.matmul %24, %25, %cst_20 {dimension_numbers = #tpu.dot_dimension_numbers<[1], [0], [0], [1], [0, 0, 1, 1], [], []>} : vector<128x128xbf16>, vector<128x128xbf16>, vector<128x128xf32> -> vector<128x128xf32>
    %27 = arith.addf %26, %7 : vector<128x128xf32>
    %c5_i32 = arith.constant 5 : i32
    %28 = arith.truncf %27 : vector<128x128xf32> to vector<128x128xbf16>
    %c0_21 = arith.constant 0 : index
    %c0_22 = arith.constant 0 : index
    %29 = vector.load %arg0[%c0_21, %c0_22] : memref<128x128xbf16, #tpu.memory_space<vmem>>, vector<128x128xbf16>
    %cst_23 = arith.constant dense<0.000000e+00> : vector<128x128xf32>
    %30 = tpu.matmul %28, %29, %cst_23 {dimension_numbers = #tpu.dot_dimension_numbers<[1], [0], [0], [1], [0, 0, 1, 1], [], []>} : vector<128x128xbf16>, vector<128x128xbf16>, vector<128x128xf32> -> vector<128x128xf32>
    %31 = arith.addf %30, %7 : vector<128x128xf32>
    %c6_i32 = arith.constant 6 : i32
    %32 = arith.truncf %31 : vector<128x128xf32> to vector<128x128xbf16>
    %c0_24 = arith.constant 0 : index
    %c0_25 = arith.constant 0 : index
    %33 = vector.load %arg0[%c0_24, %c0_25] : memref<128x128xbf16, #tpu.memory_space<vmem>>, vector<128x128xbf16>
    %cst_26 = arith.constant dense<0.000000e+00> : vector<128x128xf32>
    %34 = tpu.matmul %32, %33, %cst_26 {dimension_numbers = #tpu.dot_dimension_numbers<[1], [0], [0], [1], [0, 0, 1, 1], [], []>} : vector<128x128xbf16>, vector<128x128xbf16>, vector<128x128xf32> -> vector<128x128xf32>
    %35 = arith.addf %34, %7 : vector<128x128xf32>
    %c7_i32 = arith.constant 7 : i32
    %36 = arith.truncf %35 : vector<128x128xf32> to vector<128x128xbf16>
    %c0_27 = arith.constant 0 : index
    %c0_28 = arith.constant 0 : index
    %37 = vector.load %arg0[%c0_27, %c0_28] : memref<128x128xbf16, #tpu.memory_space<vmem>>, vector<128x128xbf16>
    %cst_29 = arith.constant dense<0.000000e+00> : vector<128x128xf32>
    %38 = tpu.matmul %36, %37, %cst_29 {dimension_numbers = #tpu.dot_dimension_numbers<[1], [0], [0], [1], [0, 0, 1, 1], [], []>} : vector<128x128xbf16>, vector<128x128xbf16>, vector<128x128xf32> -> vector<128x128xf32>
    %39 = arith.addf %38, %7 : vector<128x128xf32>
    %c8_i32 = arith.constant 8 : i32
    %40 = arith.truncf %39 : vector<128x128xf32> to vector<128x128xbf16>
    %c0_30 = arith.constant 0 : index
    %c0_31 = arith.constant 0 : index
    %41 = vector.load %arg0[%c0_30, %c0_31] : memref<128x128xbf16, #tpu.memory_space<vmem>>, vector<128x128xbf16>
    %cst_32 = arith.constant dense<0.000000e+00> : vector<128x128xf32>
    %42 = tpu.matmul %40, %41, %cst_32 {dimension_numbers = #tpu.dot_dimension_numbers<[1], [0], [0], [1], [0, 0, 1, 1], [], []>} : vector<128x128xbf16>, vector<128x128xbf16>, vector<128x128xf32> -> vector<128x128xf32>
    %43 = arith.addf %42, %7 : vector<128x128xf32>
    %c9_i32 = arith.constant 9 : i32
    %44 = arith.truncf %43 : vector<128x128xf32> to vector<128x128xbf16>
    %c0_33 = arith.constant 0 : index
    %c0_34 = arith.constant 0 : index
    %45 = vector.load %arg0[%c0_33, %c0_34] : memref<128x128xbf16, #tpu.memory_space<vmem>>, vector<128x128xbf16>
    %cst_35 = arith.constant dense<0.000000e+00> : vector<128x128xf32>
    %46 = tpu.matmul %44, %45, %cst_35 {dimension_numbers = #tpu.dot_dimension_numbers<[1], [0], [0], [1], [0, 0, 1, 1], [], []>} : vector<128x128xbf16>, vector<128x128xbf16>, vector<128x128xf32> -> vector<128x128xf32>
    %47 = arith.addf %46, %7 : vector<128x128xf32>
    %cst_36 = arith.constant 0.000000e+00 : f32
    %48 = vector.broadcast %cst_36 : f32 to vector<128x128xf32>
    %49 = arith.maximumf %47, %48 : vector<128x128xf32>
    %50 = arith.truncf %49 : vector<128x128xf32> to vector<128x128xbf16>
    %c0_37 = arith.constant 0 : index
    %c0_38 = arith.constant 0 : index
    %51 = vector.load %arg4[%c0_37, %c0_38] : memref<128x128xbf16, #tpu.memory_space<vmem>>, vector<128x128xbf16>
    %cst_39 = arith.constant dense<0.000000e+00> : vector<128x128xf32>
    %52 = tpu.matmul %51, %50, %cst_39 {dimension_numbers = #tpu.dot_dimension_numbers<[1], [0], [0], [1], [0, 0, 1, 1], [], []>} : vector<128x128xbf16>, vector<128x128xbf16>, vector<128x128xf32> -> vector<128x128xf32>
    %c0_40 = arith.constant 0 : index
    %c0_41 = arith.constant 0 : index
    %53 = vector.load %arg5[%c0_40, %c0_41] : memref<128x1xf32, #tpu.memory_space<vmem>>, vector<128x1xf32>
    %54 = vector.broadcast %53 : vector<128x1xf32> to vector<128x128xf32>
    %55 = arith.addf %52, %54 : vector<128x128xf32>
    %cst_42 = arith.constant 1.000000e-01 : f32
    %56 = vector.broadcast %cst_42 : f32 to vector<128x128xf32>
    %57 = arith.mulf %56, %55 : vector<128x128xf32>
    %c0_i32_43 = arith.constant 0 : i32
    %58 = arith.truncf %55 : vector<128x128xf32> to vector<128x128xbf16>
    %c0_44 = arith.constant 0 : index
    %c0_45 = arith.constant 0 : index
    %59 = vector.load %arg0[%c0_44, %c0_45] : memref<128x128xbf16, #tpu.memory_space<vmem>>, vector<128x128xbf16>
    %cst_46 = arith.constant dense<0.000000e+00> : vector<128x128xf32>
    %60 = tpu.matmul %58, %59, %cst_46 {dimension_numbers = #tpu.dot_dimension_numbers<[1], [0], [0], [1], [0, 0, 1, 1], [], []>} : vector<128x128xbf16>, vector<128x128xbf16>, vector<128x128xf32> -> vector<128x128xf32>
    %61 = arith.addf %60, %57 : vector<128x128xf32>
    %c1_i32_47 = arith.constant 1 : i32
    %62 = arith.truncf %61 : vector<128x128xf32> to vector<128x128xbf16>
    %c0_48 = arith.constant 0 : index
    %c0_49 = arith.constant 0 : index
    %63 = vector.load %arg0[%c0_48, %c0_49] : memref<128x128xbf16, #tpu.memory_space<vmem>>, vector<128x128xbf16>
    %cst_50 = arith.constant dense<0.000000e+00> : vector<128x128xf32>
    %64 = tpu.matmul %62, %63, %cst_50 {dimension_numbers = #tpu.dot_dimension_numbers<[1], [0], [0], [1], [0, 0, 1, 1], [], []>} : vector<128x128xbf16>, vector<128x128xbf16>, vector<128x128xf32> -> vector<128x128xf32>
    %65 = arith.addf %64, %57 : vector<128x128xf32>
    %c2_i32_51 = arith.constant 2 : i32
    %66 = arith.truncf %65 : vector<128x128xf32> to vector<128x128xbf16>
    %c0_52 = arith.constant 0 : index
    %c0_53 = arith.constant 0 : index
    %67 = vector.load %arg0[%c0_52, %c0_53] : memref<128x128xbf16, #tpu.memory_space<vmem>>, vector<128x128xbf16>
    %cst_54 = arith.constant dense<0.000000e+00> : vector<128x128xf32>
    %68 = tpu.matmul %66, %67, %cst_54 {dimension_numbers = #tpu.dot_dimension_numbers<[1], [0], [0], [1], [0, 0, 1, 1], [], []>} : vector<128x128xbf16>, vector<128x128xbf16>, vector<128x128xf32> -> vector<128x128xf32>
    %69 = arith.addf %68, %57 : vector<128x128xf32>
    %c3_i32_55 = arith.constant 3 : i32
    %70 = arith.truncf %69 : vector<128x128xf32> to vector<128x128xbf16>
    %c0_56 = arith.constant 0 : index
    %c0_57 = arith.constant 0 : index
    %71 = vector.load %arg0[%c0_56, %c0_57] : memref<128x128xbf16, #tpu.memory_space<vmem>>, vector<128x128xbf16>
    %cst_58 = arith.constant dense<0.000000e+00> : vector<128x128xf32>
    %72 = tpu.matmul %70, %71, %cst_58 {dimension_numbers = #tpu.dot_dimension_numbers<[1], [0], [0], [1], [0, 0, 1, 1], [], []>} : vector<128x128xbf16>, vector<128x128xbf16>, vector<128x128xf32> -> vector<128x128xf32>
    %73 = arith.addf %72, %57 : vector<128x128xf32>
    %c4_i32_59 = arith.constant 4 : i32
    %74 = arith.truncf %73 : vector<128x128xf32> to vector<128x128xbf16>
    %c0_60 = arith.constant 0 : index
    %c0_61 = arith.constant 0 : index
    %75 = vector.load %arg0[%c0_60, %c0_61] : memref<128x128xbf16, #tpu.memory_space<vmem>>, vector<128x128xbf16>
    %cst_62 = arith.constant dense<0.000000e+00> : vector<128x128xf32>
    %76 = tpu.matmul %74, %75, %cst_62 {dimension_numbers = #tpu.dot_dimension_numbers<[1], [0], [0], [1], [0, 0, 1, 1], [], []>} : vector<128x128xbf16>, vector<128x128xbf16>, vector<128x128xf32> -> vector<128x128xf32>
    %77 = arith.addf %76, %57 : vector<128x128xf32>
    %c5_i32_63 = arith.constant 5 : i32
    %78 = arith.truncf %77 : vector<128x128xf32> to vector<128x128xbf16>
    %c0_64 = arith.constant 0 : index
    %c0_65 = arith.constant 0 : index
    %79 = vector.load %arg0[%c0_64, %c0_65] : memref<128x128xbf16, #tpu.memory_space<vmem>>, vector<128x128xbf16>
    %cst_66 = arith.constant dense<0.000000e+00> : vector<128x128xf32>
    %80 = tpu.matmul %78, %79, %cst_66 {dimension_numbers = #tpu.dot_dimension_numbers<[1], [0], [0], [1], [0, 0, 1, 1], [], []>} : vector<128x128xbf16>, vector<128x128xbf16>, vector<128x128xf32> -> vector<128x128xf32>
    %81 = arith.addf %80, %57 : vector<128x128xf32>
    %c6_i32_67 = arith.constant 6 : i32
    %82 = arith.truncf %81 : vector<128x128xf32> to vector<128x128xbf16>
    %c0_68 = arith.constant 0 : index
    %c0_69 = arith.constant 0 : index
    %83 = vector.load %arg0[%c0_68, %c0_69] : memref<128x128xbf16, #tpu.memory_space<vmem>>, vector<128x128xbf16>
    %cst_70 = arith.constant dense<0.000000e+00> : vector<128x128xf32>
    %84 = tpu.matmul %82, %83, %cst_70 {dimension_numbers = #tpu.dot_dimension_numbers<[1], [0], [0], [1], [0, 0, 1, 1], [], []>} : vector<128x128xbf16>, vector<128x128xbf16>, vector<128x128xf32> -> vector<128x128xf32>
    %85 = arith.addf %84, %57 : vector<128x128xf32>
    %c7_i32_71 = arith.constant 7 : i32
    %86 = arith.truncf %85 : vector<128x128xf32> to vector<128x128xbf16>
    %c0_72 = arith.constant 0 : index
    %c0_73 = arith.constant 0 : index
    %87 = vector.load %arg0[%c0_72, %c0_73] : memref<128x128xbf16, #tpu.memory_space<vmem>>, vector<128x128xbf16>
    %cst_74 = arith.constant dense<0.000000e+00> : vector<128x128xf32>
    %88 = tpu.matmul %86, %87, %cst_74 {dimension_numbers = #tpu.dot_dimension_numbers<[1], [0], [0], [1], [0, 0, 1, 1], [], []>} : vector<128x128xbf16>, vector<128x128xbf16>, vector<128x128xf32> -> vector<128x128xf32>
    %89 = arith.addf %88, %57 : vector<128x128xf32>
    %c8_i32_75 = arith.constant 8 : i32
    %90 = arith.truncf %89 : vector<128x128xf32> to vector<128x128xbf16>
    %c0_76 = arith.constant 0 : index
    %c0_77 = arith.constant 0 : index
    %91 = vector.load %arg0[%c0_76, %c0_77] : memref<128x128xbf16, #tpu.memory_space<vmem>>, vector<128x128xbf16>
    %cst_78 = arith.constant dense<0.000000e+00> : vector<128x128xf32>
    %92 = tpu.matmul %90, %91, %cst_78 {dimension_numbers = #tpu.dot_dimension_numbers<[1], [0], [0], [1], [0, 0, 1, 1], [], []>} : vector<128x128xbf16>, vector<128x128xbf16>, vector<128x128xf32> -> vector<128x128xf32>
    %93 = arith.addf %92, %57 : vector<128x128xf32>
    %c9_i32_79 = arith.constant 9 : i32
    %94 = arith.truncf %93 : vector<128x128xf32> to vector<128x128xbf16>
    %c0_80 = arith.constant 0 : index
    %c0_81 = arith.constant 0 : index
    %95 = vector.load %arg0[%c0_80, %c0_81] : memref<128x128xbf16, #tpu.memory_space<vmem>>, vector<128x128xbf16>
    %cst_82 = arith.constant dense<0.000000e+00> : vector<128x128xf32>
    %96 = tpu.matmul %94, %95, %cst_82 {dimension_numbers = #tpu.dot_dimension_numbers<[1], [0], [0], [1], [0, 0, 1, 1], [], []>} : vector<128x128xbf16>, vector<128x128xbf16>, vector<128x128xf32> -> vector<128x128xf32>
    %97 = arith.addf %96, %57 : vector<128x128xf32>
    %cst_83 = arith.constant 0.000000e+00 : f32
    %98 = vector.broadcast %cst_83 : f32 to vector<128x128xf32>
    %99 = arith.maximumf %97, %98 : vector<128x128xf32>
    %100 = arith.truncf %99 : vector<128x128xf32> to vector<128x128xbf16>
    %c0_84 = arith.constant 0 : index
    %c0_85 = arith.constant 0 : index
    %101 = vector.load %arg6[%c0_84, %c0_85] : memref<128x128xbf16, #tpu.memory_space<vmem>>, vector<128x128xbf16>
    %cst_86 = arith.constant dense<0.000000e+00> : vector<128x128xf32>
    %102 = tpu.matmul %101, %100, %cst_86 {dimension_numbers = #tpu.dot_dimension_numbers<[1], [0], [0], [1], [0, 0, 1, 1], [], []>} : vector<128x128xbf16>, vector<128x128xbf16>, vector<128x128xf32> -> vector<128x128xf32>
    %c0_87 = arith.constant 0 : index
    %c0_88 = arith.constant 0 : index
    %103 = vector.load %arg7[%c0_87, %c0_88] : memref<128x1xf32, #tpu.memory_space<vmem>>, vector<128x1xf32>
    %104 = vector.broadcast %103 : vector<128x1xf32> to vector<128x128xf32>
    %105 = arith.addf %102, %104 : vector<128x128xf32>
    %cst_89 = arith.constant 1.000000e-01 : f32
    %106 = vector.broadcast %cst_89 : f32 to vector<128x128xf32>
    %107 = arith.mulf %106, %105 : vector<128x128xf32>
    %c0_i32_90 = arith.constant 0 : i32
    %108 = arith.truncf %105 : vector<128x128xf32> to vector<128x128xbf16>
    %c0_91 = arith.constant 0 : index
    %c0_92 = arith.constant 0 : index
    %109 = vector.load %arg0[%c0_91, %c0_92] : memref<128x128xbf16, #tpu.memory_space<vmem>>, vector<128x128xbf16>
    %cst_93 = arith.constant dense<0.000000e+00> : vector<128x128xf32>
    %110 = tpu.matmul %108, %109, %cst_93 {dimension_numbers = #tpu.dot_dimension_numbers<[1], [0], [0], [1], [0, 0, 1, 1], [], []>} : vector<128x128xbf16>, vector<128x128xbf16>, vector<128x128xf32> -> vector<128x128xf32>
    %111 = arith.addf %110, %107 : vector<128x128xf32>
    %c1_i32_94 = arith.constant 1 : i32
    %112 = arith.truncf %111 : vector<128x128xf32> to vector<128x128xbf16>
    %c0_95 = arith.constant 0 : index
    %c0_96 = arith.constant 0 : index
    %113 = vector.load %arg0[%c0_95, %c0_96] : memref<128x128xbf16, #tpu.memory_space<vmem>>, vector<128x128xbf16>
    %cst_97 = arith.constant dense<0.000000e+00> : vector<128x128xf32>
    %114 = tpu.matmul %112, %113, %cst_97 {dimension_numbers = #tpu.dot_dimension_numbers<[1], [0], [0], [1], [0, 0, 1, 1], [], []>} : vector<128x128xbf16>, vector<128x128xbf16>, vector<128x128xf32> -> vector<128x128xf32>
    %115 = arith.addf %114, %107 : vector<128x128xf32>
    %c2_i32_98 = arith.constant 2 : i32
    %116 = arith.truncf %115 : vector<128x128xf32> to vector<128x128xbf16>
    %c0_99 = arith.constant 0 : index
    %c0_100 = arith.constant 0 : index
    %117 = vector.load %arg0[%c0_99, %c0_100] : memref<128x128xbf16, #tpu.memory_space<vmem>>, vector<128x128xbf16>
    %cst_101 = arith.constant dense<0.000000e+00> : vector<128x128xf32>
    %118 = tpu.matmul %116, %117, %cst_101 {dimension_numbers = #tpu.dot_dimension_numbers<[1], [0], [0], [1], [0, 0, 1, 1], [], []>} : vector<128x128xbf16>, vector<128x128xbf16>, vector<128x128xf32> -> vector<128x128xf32>
    %119 = arith.addf %118, %107 : vector<128x128xf32>
    %c3_i32_102 = arith.constant 3 : i32
    %120 = arith.truncf %119 : vector<128x128xf32> to vector<128x128xbf16>
    %c0_103 = arith.constant 0 : index
    %c0_104 = arith.constant 0 : index
    %121 = vector.load %arg0[%c0_103, %c0_104] : memref<128x128xbf16, #tpu.memory_space<vmem>>, vector<128x128xbf16>
    %cst_105 = arith.constant dense<0.000000e+00> : vector<128x128xf32>
    %122 = tpu.matmul %120, %121, %cst_105 {dimension_numbers = #tpu.dot_dimension_numbers<[1], [0], [0], [1], [0, 0, 1, 1], [], []>} : vector<128x128xbf16>, vector<128x128xbf16>, vector<128x128xf32> -> vector<128x128xf32>
    %123 = arith.addf %122, %107 : vector<128x128xf32>
    %c4_i32_106 = arith.constant 4 : i32
    %124 = arith.truncf %123 : vector<128x128xf32> to vector<128x128xbf16>
    %c0_107 = arith.constant 0 : index
    %c0_108 = arith.constant 0 : index
    %125 = vector.load %arg0[%c0_107, %c0_108] : memref<128x128xbf16, #tpu.memory_space<vmem>>, vector<128x128xbf16>
    %cst_109 = arith.constant dense<0.000000e+00> : vector<128x128xf32>
    %126 = tpu.matmul %124, %125, %cst_109 {dimension_numbers = #tpu.dot_dimension_numbers<[1], [0], [0], [1], [0, 0, 1, 1], [], []>} : vector<128x128xbf16>, vector<128x128xbf16>, vector<128x128xf32> -> vector<128x128xf32>
    %127 = arith.addf %126, %107 : vector<128x128xf32>
    %c5_i32_110 = arith.constant 5 : i32
    %128 = arith.truncf %127 : vector<128x128xf32> to vector<128x128xbf16>
    %c0_111 = arith.constant 0 : index
    %c0_112 = arith.constant 0 : index
    %129 = vector.load %arg0[%c0_111, %c0_112] : memref<128x128xbf16, #tpu.memory_space<vmem>>, vector<128x128xbf16>
    %cst_113 = arith.constant dense<0.000000e+00> : vector<128x128xf32>
    %130 = tpu.matmul %128, %129, %cst_113 {dimension_numbers = #tpu.dot_dimension_numbers<[1], [0], [0], [1], [0, 0, 1, 1], [], []>} : vector<128x128xbf16>, vector<128x128xbf16>, vector<128x128xf32> -> vector<128x128xf32>
    %131 = arith.addf %130, %107 : vector<128x128xf32>
    %c6_i32_114 = arith.constant 6 : i32
    %132 = arith.truncf %131 : vector<128x128xf32> to vector<128x128xbf16>
    %c0_115 = arith.constant 0 : index
    %c0_116 = arith.constant 0 : index
    %133 = vector.load %arg0[%c0_115, %c0_116] : memref<128x128xbf16, #tpu.memory_space<vmem>>, vector<128x128xbf16>
    %cst_117 = arith.constant dense<0.000000e+00> : vector<128x128xf32>
    %134 = tpu.matmul %132, %133, %cst_117 {dimension_numbers = #tpu.dot_dimension_numbers<[1], [0], [0], [1], [0, 0, 1, 1], [], []>} : vector<128x128xbf16>, vector<128x128xbf16>, vector<128x128xf32> -> vector<128x128xf32>
    %135 = arith.addf %134, %107 : vector<128x128xf32>
    %c7_i32_118 = arith.constant 7 : i32
    %136 = arith.truncf %135 : vector<128x128xf32> to vector<128x128xbf16>
    %c0_119 = arith.constant 0 : index
    %c0_120 = arith.constant 0 : index
    %137 = vector.load %arg0[%c0_119, %c0_120] : memref<128x128xbf16, #tpu.memory_space<vmem>>, vector<128x128xbf16>
    %cst_121 = arith.constant dense<0.000000e+00> : vector<128x128xf32>
    %138 = tpu.matmul %136, %137, %cst_121 {dimension_numbers = #tpu.dot_dimension_numbers<[1], [0], [0], [1], [0, 0, 1, 1], [], []>} : vector<128x128xbf16>, vector<128x128xbf16>, vector<128x128xf32> -> vector<128x128xf32>
    %139 = arith.addf %138, %107 : vector<128x128xf32>
    %c8_i32_122 = arith.constant 8 : i32
    %140 = arith.truncf %139 : vector<128x128xf32> to vector<128x128xbf16>
    %c0_123 = arith.constant 0 : index
    %c0_124 = arith.constant 0 : index
    %141 = vector.load %arg0[%c0_123, %c0_124] : memref<128x128xbf16, #tpu.memory_space<vmem>>, vector<128x128xbf16>
    %cst_125 = arith.constant dense<0.000000e+00> : vector<128x128xf32>
    %142 = tpu.matmul %140, %141, %cst_125 {dimension_numbers = #tpu.dot_dimension_numbers<[1], [0], [0], [1], [0, 0, 1, 1], [], []>} : vector<128x128xbf16>, vector<128x128xbf16>, vector<128x128xf32> -> vector<128x128xf32>
    %143 = arith.addf %142, %107 : vector<128x128xf32>
    %c9_i32_126 = arith.constant 9 : i32
    %144 = arith.truncf %143 : vector<128x128xf32> to vector<128x128xbf16>
    %c0_127 = arith.constant 0 : index
    %c0_128 = arith.constant 0 : index
    %145 = vector.load %arg0[%c0_127, %c0_128] : memref<128x128xbf16, #tpu.memory_space<vmem>>, vector<128x128xbf16>
    %cst_129 = arith.constant dense<0.000000e+00> : vector<128x128xf32>
    %146 = tpu.matmul %144, %145, %cst_129 {dimension_numbers = #tpu.dot_dimension_numbers<[1], [0], [0], [1], [0, 0, 1, 1], [], []>} : vector<128x128xbf16>, vector<128x128xbf16>, vector<128x128xf32> -> vector<128x128xf32>
    %147 = arith.addf %146, %107 : vector<128x128xf32>
    %cst_130 = arith.constant 0.000000e+00 : f32
    %148 = vector.broadcast %cst_130 : f32 to vector<128x128xf32>
    %149 = arith.maximumf %147, %148 : vector<128x128xf32>
    %150 = arith.truncf %149 : vector<128x128xf32> to vector<128x128xbf16>
    %c0_131 = arith.constant 0 : index
    %c0_132 = arith.constant 0 : index
    %151 = vector.load %arg8[%c0_131, %c0_132] : memref<128x128xbf16, #tpu.memory_space<vmem>>, vector<128x128xbf16>
    %cst_133 = arith.constant dense<0.000000e+00> : vector<128x128xf32>
    %152 = tpu.matmul %151, %150, %cst_133 {dimension_numbers = #tpu.dot_dimension_numbers<[1], [0], [0], [1], [0, 0, 1, 1], [], []>} : vector<128x128xbf16>, vector<128x128xbf16>, vector<128x128xf32> -> vector<128x128xf32>
    %c0_134 = arith.constant 0 : index
    %c0_135 = arith.constant 0 : index
    %153 = vector.load %arg9[%c0_134, %c0_135] : memref<128x1xf32, #tpu.memory_space<vmem>>, vector<128x1xf32>
    %154 = vector.broadcast %153 : vector<128x1xf32> to vector<128x128xf32>
    %155 = arith.addf %152, %154 : vector<128x128xf32>
    %156 = tpu.iota {dimensions = array<i32: 0>} : vector<128x128xi32>
    %c4_i32_136 = arith.constant 4 : i32
    %157 = vector.broadcast %c4_i32_136 : i32 to vector<128x128xi32>
    %158 = arith.cmpi slt, %156, %157 : vector<128x128xi32>
    %cst_137 = arith.constant -1.000000e+30 : f32
    %159 = vector.broadcast %cst_137 : f32 to vector<128x128xf32>
    %160 = arith.select %158, %155, %159 : vector<128x128xi1>, vector<128x128xf32>
    %cst_138 = arith.constant dense<0xFF800000> : vector<128xf32>
    %161 = vector.multi_reduction <maximumf>, %160, %cst_138 [0] : vector<128x128xf32> to vector<128xf32>
    %162 = vector.shape_cast %161 : vector<128xf32> to vector<1x128xf32>
    %163 = vector.broadcast %162 : vector<1x128xf32> to vector<128x128xf32>
    %164 = arith.subf %160, %163 : vector<128x128xf32>
    %165 = math.exp %164 : vector<128x128xf32>
    %cst_139 = arith.constant dense<0.000000e+00> : vector<128xf32>
    %166 = vector.multi_reduction <add>, %165, %cst_139 [0] : vector<128x128xf32> to vector<128xf32>
    %167 = vector.shape_cast %166 : vector<128xf32> to vector<1x128xf32>
    %168 = math.log %167 : vector<1x128xf32>
    %169 = vector.broadcast %168 : vector<1x128xf32> to vector<128x128xf32>
    %170 = arith.subf %164, %169 : vector<128x128xf32>
    %c0_140 = arith.constant 0 : index
    %c0_141 = arith.constant 0 : index
    %171 = vector.load %arg10[%c0_140, %c0_141] : memref<128x128xf32, #tpu.memory_space<vmem>>, vector<128x128xf32>
    tpu.vector_store %arg10[%c0_140, %c0_141], %170 {strides = array<i32>} : memref<128x128xf32, #tpu.memory_space<vmem>>, vector<128x128xf32>,
    return
  }
}

</mosaic_0001>

<llo_original>
// kernel: tpu_custom_call.1
$region0: #{tpu_custom_call.1}
  #allocation0 [shape = 'u32[]', space=smem, size = 0x4, offset = 0x4, fixed_abs, tag = 'smem constant byte address 0x4 - core index']
  #allocation1 [shape = 'u32[144,128]{1,0:T(1,128)}', space=vmem, size = 0x12000, scoped, tag = 'internal scratch']
  %s0 = inlined_call_operand.vmem [shape: bf16[128,128], index: 0, kind: input, shape index: {}]
  %s1 = inlined_call_operand.vmem [shape: bf16[128,128], index: 1, kind: input, shape index: {}]
  %s2 = inlined_call_operand.vmem [shape: bf16[128,128], index: 2, kind: input, shape index: {}]
  %s3 = inlined_call_operand.vmem [shape: f32[128,1], index: 3, kind: input, shape index: {}]
  %s4 = inlined_call_operand.vmem [shape: bf16[128,128], index: 4, kind: input, shape index: {}]
  %s5 = inlined_call_operand.vmem [shape: f32[128,1], index: 5, kind: input, shape index: {}]
  %s6 = inlined_call_operand.vmem [shape: bf16[128,128], index: 6, kind: input, shape index: {}]
  %s7 = inlined_call_operand.vmem [shape: f32[128,1], index: 7, kind: input, shape index: {}]
  %s8 = inlined_call_operand.vmem [shape: bf16[128,128], index: 8, kind: input, shape index: {}]
  %s9 = inlined_call_operand.vmem [shape: f32[128,1], index: 9, kind: input, shape index: {}]
  %s10 = inlined_call_operand.hbm [shape: f32[128,128], index: 10, kind: output, shape index: {}]
  %s11 = sld [smem:[#allocation0]]
  $region50: #{tpu_custom_call.1} parent=0
    _
  %s13 = ssub.s32 1, %s11
  %s14 = scalar_select 0, %s13, %s11
  $region1: #{tpu_custom_call.1} parent=0
    #allocation2 [shape = 'u8[65536]{0}', space=vmem, size = 0x10000, scoped, tag = 'output window, operand 0, single buffered']
    #allocation3 [shape = 's32[1]{0}', space=sflag, size = 0x4, scoped, tag = 'scoped memory for tpu_custom_call.1']
    %15 = vsyncpa [#allocation3], 0
    // Predicated region
    $region2: #{tpu_custom_call.1} parent=1 // pred_check
      _
    $region3: #{tpu_custom_call.1} parent=1 // pred_check_branch
      %17 = sbr.rel (0) target = $region5
    $region4: #{tpu_custom_call.1} parent=1 // pred_region
      _
    $region5: #{tpu_custom_call.1} parent=1 // pred_fallthru
      _
    // Predicated region
    $region6: #{tpu_custom_call.1} parent=1 // pred_check
      _
    $region7: #{tpu_custom_call.1} parent=1 // pred_check_branch
      %19 = sbr.rel (0) target = $region9
    $region8: #{tpu_custom_call.1} parent=1 // pred_region
      _
    $region9: #{tpu_custom_call.1} parent=1 // pred_fallthru
      _
    // Predicated region
    $region10: #{tpu_custom_call.1} parent=1 // pred_check
      _
    $region11: #{tpu_custom_call.1} parent=1 // pred_check_branch
      %21 = sbr.rel (0) target = $region13
    $region12: #{tpu_custom_call.1} parent=1 // pred_region
      _
    $region13: #{tpu_custom_call.1} parent=1 // pred_fallthru
      _
    // Predicated region
    $region14: #{tpu_custom_call.1} parent=1 // pred_check
      _
    $region15: #{tpu_custom_call.1} parent=1 // pred_check_branch
      %23 = sbr.rel (0) target = $region17
    $region16: #{tpu_custom_call.1} parent=1 // pred_region
      _
    $region17: #{tpu_custom_call.1} parent=1 // pred_fallthru
      _
    // Predicated region
    $region18: #{tpu_custom_call.1} parent=1 // pred_check
      _
    $region19: #{tpu_custom_call.1} parent=1 // pred_check_branch
      %25 = sbr.rel (0) target = $region21
    $region20: #{tpu_custom_call.1} parent=1 // pred_region
      _
    $region21: #{tpu_custom_call.1} parent=1 // pred_fallthru
      _
    // Predicated region
    $region22: #{tpu_custom_call.1} parent=1 // pred_check
      _
    $region23: #{tpu_custom_call.1} parent=1 // pred_check_branch
      %27 = sbr.rel (0) target = $region25
    $region24: #{tpu_custom_call.1} parent=1 // pred_region
      _
    $region25: #{tpu_custom_call.1} parent=1 // pred_fallthru
      _
    // Predicated region
    $region26: #{tpu_custom_call.1} parent=1 // pred_check
      _
    $region27: #{tpu_custom_call.1} parent=1 // pred_check_branch
      %29 = sbr.rel (0) target = $region29
    $region28: #{tpu_custom_call.1} parent=1 // pred_region
      _
    $region29: #{tpu_custom_call.1} parent=1 // pred_fallthru
      _
    // Predicated region
    $region30: #{tpu_custom_call.1} parent=1 // pred_check
      _
    $region31: #{tpu_custom_call.1} parent=1 // pred_check_branch
      %31 = sbr.rel (0) target = $region33
    $region32: #{tpu_custom_call.1} parent=1 // pred_region
      _
    $region33: #{tpu_custom_call.1} parent=1 // pred_fallthru
      _
    // Predicated region
    $region34: #{tpu_custom_call.1} parent=1 // pred_check
      _
    $region35: #{tpu_custom_call.1} parent=1 // pred_check_branch
      %33 = sbr.rel (0) target = $region37
    $region36: #{tpu_custom_call.1} parent=1 // pred_region
      _
    $region37: #{tpu_custom_call.1} parent=1 // pred_fallthru
      _
    // Predicated region
    $region38: #{tpu_custom_call.1} parent=1 // pred_check
      _
    $region39: #{tpu_custom_call.1} parent=1 // pred_check_branch
      %35 = sbr.rel (0) target = $region41
    $region40: #{tpu_custom_call.1} parent=1 // pred_region
      _
    $region41: #{tpu_custom_call.1} parent=1 // pred_fallthru
      _
    %v37 = vld [vmem:[%s1] sm:$0xf]
    %v38 = vld [vmem:[%s1 + $0x4] sm:$0xf]
    %v39 = vld [vmem:[%s1 + $0x8] sm:$0xf]
    %v40 = vld [vmem:[%s1 + $0xc] sm:$0xf]
    %v41 = vld [vmem:[%s1 + $0x10] sm:$0xf]
    %v42 = vld [vmem:[%s1 + $0x14] sm:$0xf]
    %v43 = vld [vmem:[%s1 + $0x18] sm:$0xf]
    %v44 = vld [vmem:[%s1 + $0x1c] sm:$0xf]
    %v45 = vld [vmem:[%s1 + $0x20] sm:$0xf]
    %v46 = vld [vmem:[%s1 + $0x24] sm:$0xf]
    %v47 = vld [vmem:[%s1 + $0x28] sm:$0xf]
    %v48 = vld [vmem:[%s1 + $0x2c] sm:$0xf]
    %v49 = vld [vmem:[%s1 + $0x30] sm:$0xf]
    %v50 = vld [vmem:[%s1 + $0x34] sm:$0xf]
    %v51 = vld [vmem:[%s1 + $0x38] sm:$0xf]
    %v52 = vld [vmem:[%s1 + $0x3c] sm:$0xf]
    %v53 = vld [vmem:[%s2] sm:$0xf]
    %v54 = vld [vmem:[%s2 + $0x4] sm:$0xf]
    %v55 = vld [vmem:[%s2 + $0x8] sm:$0xf]
    %v56 = vld [vmem:[%s2 + $0xc] sm:$0xf]
    %v57 = vld [vmem:[%s2 + $0x10] sm:$0xf]
    %v58 = vld [vmem:[%s2 + $0x14] sm:$0xf]
    %v59 = vld [vmem:[%s2 + $0x18] sm:$0xf]
    %v60 = vld [vmem:[%s2 + $0x1c] sm:$0xf]
    %v61 = vld [vmem:[%s2 + $0x20] sm:$0xf]
    %v62 = vld [vmem:[%s2 + $0x24] sm:$0xf]
    %v63 = vld [vmem:[%s2 + $0x28] sm:$0xf]
    %v64 = vld [vmem:[%s2 + $0x2c] sm:$0xf]
    %v65 = vld [vmem:[%s2 + $0x30] sm:$0xf]
    %v66 = vld [vmem:[%s2 + $0x34] sm:$0xf]
    %v67 = vld [vmem:[%s2 + $0x38] sm:$0xf]
    %v68 = vld [vmem:[%s2 + $0x3c] sm:$0xf]
    %v69 = vld [vmem:[%s3] sm:$0xff]
    %v70 = vld [vmem:[%s3 + $0x8] sm:$0xff]
    %v71 = vld [vmem:[%s3 + $0x10] sm:$0xff]
    %v72 = vld [vmem:[%s3 + $0x18] sm:$0xff]
    %v73 = vld [vmem:[%s3 + $0x20] sm:$0xff]
    %v74 = vld [vmem:[%s3 + $0x28] sm:$0xff]
    %v75 = vld [vmem:[%s3 + $0x30] sm:$0xff]
    %v76 = vld [vmem:[%s3 + $0x38] sm:$0xff]
    %v77 = vld [vmem:[%s3 + $0x40] sm:$0xff]
    %v78 = vld [vmem:[%s3 + $0x48] sm:$0xff]
    %v79 = vld [vmem:[%s3 + $0x50] sm:$0xff]
    %v80 = vld [vmem:[%s3 + $0x58] sm:$0xff]
    %v81 = vld [vmem:[%s3 + $0x60] sm:$0xff]
    %v82 = vld [vmem:[%s3 + $0x68] sm:$0xff]
    %v83 = vld [vmem:[%s3 + $0x70] sm:$0xff]
    %v84 = vld [vmem:[%s3 + $0x78] sm:$0xff]
    %86 = vset.pattern.permute.xlu0 0
    %87 = vperm.xlu0 %86, %v69
    %v88 = vpop.permute.xlu0 %87
    %91 = vset.pattern.permute.xlu0 0
    %92 = vperm.xlu0 %91, %v70
    %v93 = vpop.permute.xlu0 %92
    %96 = vset.pattern.permute.xlu0 0
    %97 = vperm.xlu0 %96, %v71
    %v98 = vpop.permute.xlu0 %97
    %101 = vset.pattern.permute.xlu0 0
    %102 = vperm.xlu0 %101, %v72
    %v103 = vpop.permute.xlu0 %102
    %106 = vset.pattern.permute.xlu0 0
    %107 = vperm.xlu0 %106, %v73
    %v108 = vpop.permute.xlu0 %107
    %111 = vset.pattern.permute.xlu0 0
    %112 = vperm.xlu0 %111, %v74
    %v113 = vpop.permute.xlu0 %112
    %116 = vset.pattern.permute.xlu0 0
    %117 = vperm.xlu0 %116, %v75
    %v118 = vpop.permute.xlu0 %117
    %121 = vset.pattern.permute.xlu0 0
    %122 = vperm.xlu0 %121, %v76
    %v123 = vpop.permute.xlu0 %122
    %126 = vset.pattern.permute.xlu0 0
    %127 = vperm.xlu0 %126, %v77
    %v128 = vpop.permute.xlu0 %127
    %131 = vset.pattern.permute.xlu0 0
    %132 = vperm.xlu0 %131, %v78
    %v133 = vpop.permute.xlu0 %132
    %136 = vset.pattern.permute.xlu0 0
    %137 = vperm.xlu0 %136, %v79
    %v138 = vpop.permute.xlu0 %137
    %141 = vset.pattern.permute.xlu0 0
    %142 = vperm.xlu0 %141, %v80
    %v143 = vpop.permute.xlu0 %142
    %146 = vset.pattern.permute.xlu0 0
    %147 = vperm.xlu0 %146, %v81
    %v148 = vpop.permute.xlu0 %147
    %151 = vset.pattern.permute.xlu0 0
    %152 = vperm.xlu0 %151, %v82
    %v153 = vpop.permute.xlu0 %152
    %156 = vset.pattern.permute.xlu0 0
    %157 = vperm.xlu0 %156, %v83
    %v158 = vpop.permute.xlu0 %157
    %161 = vset.pattern.permute.xlu0 0
    %162 = vperm.xlu0 %161, %v84
    %v163 = vpop.permute.xlu0 %162
    %v181 = vunpack.c.l.b16 %v53
    %v182 = vunpack.c.l.b16 %v54
    %v183 = vunpack.c.l.b16 %v55
    %v184 = vunpack.c.l.b16 %v56
    %v185 = vunpack.c.l.b16 %v57
    %v186 = vunpack.c.l.b16 %v58
    %v187 = vunpack.c.l.b16 %v59
    %v188 = vunpack.c.l.b16 %v60
    %v189 = vunpack.c.l.b16 %v61
    %v190 = vunpack.c.l.b16 %v62
    %v191 = vunpack.c.l.b16 %v63
    %v192 = vunpack.c.l.b16 %v64
    %v193 = vunpack.c.l.b16 %v65
    %v194 = vunpack.c.l.b16 %v66
    %v195 = vunpack.c.l.b16 %v67
    %v196 = vunpack.c.l.b16 %v68
    %v197 = vpack.c.b16 %v182, %v181
    %v198 = vpack.c.b16 %v184, %v183
    %v199 = vpack.c.b16 %v186, %v185
    %v200 = vpack.c.b16 %v188, %v187
    %v201 = vpack.c.b16 %v190, %v189
    %v202 = vpack.c.b16 %v192, %v191
    %v203 = vpack.c.b16 %v194, %v193
    %v204 = vpack.c.b16 %v196, %v195
    %v229 = vunpack.c.l.b16 %v37
    %v230 = vunpack.c.l.b16 %v38
    %v231 = vunpack.c.l.b16 %v39
    %v232 = vunpack.c.l.b16 %v40
    %v233 = vunpack.c.l.b16 %v41
    %v234 = vunpack.c.l.b16 %v42
    %v235 = vunpack.c.l.b16 %v43
    %v236 = vunpack.c.l.b16 %v44
    %v237 = vunpack.c.l.b16 %v45
    %v238 = vunpack.c.l.b16 %v46
    %v239 = vunpack.c.l.b16 %v47
    %v240 = vunpack.c.l.b16 %v48
    %v241 = vunpack.c.l.b16 %v49
    %v242 = vunpack.c.l.b16 %v50
    %v243 = vunpack.c.l.b16 %v51
    %v244 = vunpack.c.l.b16 %v52
    %v245 = vpack.c.b16 %v230, %v229
    %v246 = vpack.c.b16 %v232, %v231
    %v247 = vpack.c.b16 %v234, %v233
    %v248 = vpack.c.b16 %v236, %v235
    %v249 = vpack.c.b16 %v238, %v237
    %v250 = vpack.c.b16 %v240, %v239
    %v251 = vpack.c.b16 %v242, %v241
    %v252 = vpack.c.b16 %v244, %v243
    %261 = vmatprep.subr.bf16.mxu0 0
    %262 = vmatpush1.bf16.msra.mxu0 %v252
    %263 = vmatprep.subr.bf16.mxu0 0
    %264 = vmatpush1.bf16.msra.mxu0 %v251
    %265 = vmatprep.subr.bf16.mxu0 0
    %266 = vmatpush1.bf16.msra.mxu0 %v250
    %267 = vmatprep.subr.bf16.mxu0 0
    %268 = vmatpush1.bf16.msra.mxu0 %v249
    %269 = vmatprep.subr.bf16.mxu0 0
    %270 = vmatpush1.bf16.msra.mxu0 %v248
    %271 = vmatprep.subr.bf16.mxu0 0
    %272 = vmatpush1.bf16.msra.mxu0 %v247
    %273 = vmatprep.subr.bf16.mxu0 0
    %274 = vmatpush1.bf16.msra.mxu0 %v246
    %275 = vmatprep.subr.bf16.mxu0 0
    %276 = vmatpush1.bf16.msra.mxu0 %v245
    %277 = vmatprep.subr.bf16.mxu0 0
    %278 = vmatpush2.bf16.msra.mxu0 0
    %279 = vmatprep.subr.bf16.mxu0 0
    %280 = vmatpush2.bf16.msra.mxu0 0
    %281 = vmatprep.subr.bf16.mxu0 0
    %282 = vmatpush2.bf16.msra.mxu0 0
    %283 = vmatprep.subr.bf16.mxu0 0
    %284 = vmatpush2.bf16.msra.mxu0 0
    %285 = vmatprep.subr.bf16.mxu0 0
    %286 = vmatpush2.bf16.msra.mxu0 0
    %287 = vmatprep.subr.bf16.mxu0 0
    %288 = vmatpush2.bf16.msra.mxu0 0
    %289 = vmatprep.subr.bf16.mxu0 0
    %290 = vmatpush2.bf16.msra.mxu0 0
    %291 = vmatprep.subr.bf16.mxu0 0
    %292 = vmatpush2.bf16.msra.mxu0 0
    %293 = vmatprep.mubr.bf16.mxu0 0
    %294 = vmatmul.mubr.bf16.gmra.mxu0 %v197
    %v295 = vpop.f32.mrf.mxu0
    %v296 = vadd.f32 %v88, %v295
    %v297 = vpop.f32.mrf.mxu0
    %v298 = vpop.f32.mrf.mxu0
    %v299 = vadd.f32 %v93, %v298
    %v300 = vpop.f32.mrf.mxu0
    %301 = vmatprep.mubr.bf16.mxu0 0
    %302 = vmatmul.mubr.bf16.gmra.mxu0 %v198
    %v303 = vpop.f32.mrf.mxu0
    %v304 = vadd.f32 %v98, %v303
    %v305 = vpop.f32.mrf.mxu0
    %v306 = vpop.f32.mrf.mxu0
    %v307 = vadd.f32 %v103, %v306
    %v308 = vpop.f32.mrf.mxu0
    %309 = vmatprep.mubr.bf16.mxu0 0
    %310 = vmatmul.mubr.bf16.gmra.mxu0 %v199
    %v311 = vpop.f32.mrf.mxu0
    %v312 = vadd.f32 %v108, %v311
    %v313 = vpop.f32.mrf.mxu0
    %v314 = vpop.f32.mrf.mxu0
    %v315 = vadd.f32 %v113, %v314
    %v316 = vpop.f32.mrf.mxu0
    %317 = vmatprep.mubr.bf16.mxu0 0
    %318 = vmatmul.mubr.bf16.gmra.mxu0 %v200
    %v319 = vpop.f32.mrf.mxu0
    %v320 = vadd.f32 %v118, %v319
    %v321 = vpop.f32.mrf.mxu0
    %v322 = vpop.f32.mrf.mxu0
    %v323 = vadd.f32 %v123, %v322
    %v324 = vpop.f32.mrf.mxu0
    %325 = vmatprep.mubr.bf16.mxu0 0
    %326 = vmatmul.mubr.bf16.gmra.mxu0 %v201
    %v327 = vpop.f32.mrf.mxu0
    %v328 = vadd.f32 %v128, %v327
    %v329 = vpop.f32.mrf.mxu0
    %v330 = vpop.f32.mrf.mxu0
    %v331 = vadd.f32 %v133, %v330
    %v332 = vpop.f32.mrf.mxu0
    %333 = vmatprep.mubr.bf16.mxu0 0
    %334 = vmatmul.mubr.bf16.gmra.mxu0 %v202
    %v335 = vpop.f32.mrf.mxu0
    %v336 = vadd.f32 %v138, %v335
    %v337 = vpop.f32.mrf.mxu0
    %v338 = vpop.f32.mrf.mxu0
    %v339 = vadd.f32 %v143, %v338
    %v340 = vpop.f32.mrf.mxu0
    %341 = vmatprep.mubr.bf16.mxu0 0
    %342 = vmatmul.mubr.bf16.gmra.mxu0 %v203
    %v343 = vpop.f32.mrf.mxu0
    %v344 = vadd.f32 %v148, %v343
    %v345 = vpop.f32.mrf.mxu0
    %v346 = vpop.f32.mrf.mxu0
    %v347 = vadd.f32 %v153, %v346
    %v348 = vpop.f32.mrf.mxu0
    %349 = vmatprep.mubr.bf16.mxu0 0
    %350 = vmatmul.mubr.bf16.gmra.mxu0 %v204
    %v351 = vpop.f32.mrf.mxu0
    %v352 = vadd.f32 %v158, %v351
    %v353 = vpop.f32.mrf.mxu0
    %v354 = vpop.f32.mrf.mxu0
    %v355 = vadd.f32 %v163, %v354
    %v356 = vpop.f32.mrf.mxu0
    %357 = vdwg.mxu0
    %v358 = vmul.f32 %v296, 0.1
    %v359 = vmul.f32 %v299, 0.1
    %v360 = vmul.f32 %v304, 0.1
    %v361 = vmul.f32 %v307, 0.1
    %v362 = vmul.f32 %v312, 0.1
    %v363 = vmul.f32 %v315, 0.1
    %v364 = vmul.f32 %v320, 0.1
    %v365 = vmul.f32 %v323, 0.1
    %v366 = vmul.f32 %v328, 0.1
    %v367 = vmul.f32 %v331, 0.1
    %v368 = vmul.f32 %v336, 0.1
    %v369 = vmul.f32 %v339, 0.1
    %v370 = vmul.f32 %v344, 0.1
    %v371 = vmul.f32 %v347, 0.1
    %v372 = vmul.f32 %v352, 0.1
    %v373 = vmul.f32 %v355, 0.1
    %v374 = vpack.c.bf16 %v299, %v296
    %v375 = vpack.c.bf16 %v307, %v304
    %v376 = vpack.c.bf16 %v315, %v312
    %v377 = vpack.c.bf16 %v323, %v320
    %v378 = vpack.c.bf16 %v331, %v328
    %v379 = vpack.c.bf16 %v339, %v336
    %v380 = vpack.c.bf16 %v347, %v344
    %v381 = vpack.c.bf16 %v355, %v352
    %v382 = vld [vmem:[%s0] sm:$0xf]
    %v383 = vld [vmem:[%s0 + $0x4] sm:$0xf]
    %v384 = vld [vmem:[%s0 + $0x8] sm:$0xf]
    %v385 = vld [vmem:[%s0 + $0xc] sm:$0xf]
    %v386 = vld [vmem:[%s0 + $0x10] sm:$0xf]
    %v387 = vld [vmem:[%s0 + $0x14] sm:$0xf]
    %v388 = vld [vmem:[%s0 + $0x18] sm:$0xf]
    %v389 = vld [vmem:[%s0 + $0x1c] sm:$0xf]
    %v390 = vld [vmem:[%s0 + $0x20] sm:$0xf]
    %v391 = vld [vmem:[%s0 + $0x24] sm:$0xf]
    %v392 = vld [vmem:[%s0 + $0x28] sm:$0xf]
    %v393 = vld [vmem:[%s0 + $0x2c] sm:$0xf]
    %v394 = vld [vmem:[%s0 + $0x30] sm:$0xf]
    %v395 = vld [vmem:[%s0 + $0x34] sm:$0xf]
    %v396 = vld [vmem:[%s0 + $0x38] sm:$0xf]
    %v397 = vld [vmem:[%s0 + $0x3c] sm:$0xf]
    %v414 = vunpack.c.l.b16 %v382
    %v415 = vunpack.c.l.b16 %v383
    %v416 = vunpack.c.l.b16 %v384
    %v417 = vunpack.c.l.b16 %v385
    %v418 = vunpack.c.l.b16 %v386
    %v419 = vunpack.c.l.b16 %v387
    %v420 = vunpack.c.l.b16 %v388
    %v421 = vunpack.c.l.b16 %v389
    %v422 = vunpack.c.l.b16 %v390
    %v423 = vunpack.c.l.b16 %v391
    %v424 = vunpack.c.l.b16 %v392
    %v425 = vunpack.c.l.b16 %v393
    %v426 = vunpack.c.l.b16 %v394
    %v427 = vunpack.c.l.b16 %v395
    %v428 = vunpack.c.l.b16 %v396
    %v429 = vunpack.c.l.b16 %v397
    %v430 = vpack.c.b16 %v415, %v414
    %v431 = vpack.c.b16 %v417, %v416
    %v432 = vpack.c.b16 %v419, %v418
    %v433 = vpack.c.b16 %v421, %v420
    %v434 = vpack.c.b16 %v423, %v422
    %v435 = vpack.c.b16 %v425, %v424
    %v436 = vpack.c.b16 %v427, %v426
    %v437 = vpack.c.b16 %v429, %v428
    %446 = vmatprep.subr.bf16.mxu0 0
    %447 = vmatpush1.bf16.msra.mxu0 %v437
    %448 = vmatprep.subr.bf16.mxu0 0
    %449 = vmatpush1.bf16.msra.mxu0 %v436
    %450 = vmatprep.subr.bf16.mxu0 0
    %451 = vmatpush1.bf16.msra.mxu0 %v435
    %452 = vmatprep.subr.bf16.mxu0 0
    %453 = vmatpush1.bf16.msra.mxu0 %v434
    %454 = vmatprep.subr.bf16.mxu0 0
    %455 = vmatpush1.bf16.msra.mxu0 %v433
    %456 = vmatprep.subr.bf16.mxu0 0
    %457 = vmatpush1.bf16.msra.mxu0 %v432
    %458 = vmatprep.subr.bf16.mxu0 0
    %459 = vmatpush1.bf16.msra.mxu0 %v431
    %460 = vmatprep.subr.bf16.mxu0 0
    %461 = vmatpush1.bf16.msra.mxu0 %v430
    %462 = vmatprep.subr.bf16.mxu0 0
    %463 = vmatpush2.bf16.msra.mxu0 0
    %464 = vmatprep.subr.bf16.mxu0 0
    %465 = vmatpush2.bf16.msra.mxu0 0
    %466 = vmatprep.subr.bf16.mxu0 0
    %467 = vmatpush2.bf16.msra.mxu0 0
    %468 = vmatprep.subr.bf16.mxu0 0
    %469 = vmatpush2.bf16.msra.mxu0 0
    %470 = vmatprep.subr.bf16.mxu0 0
    %471 = vmatpush2.bf16.msra.mxu0 0
    %472 = vmatprep.subr.bf16.mxu0 0
    %473 = vmatpush2.bf16.msra.mxu0 0
    %474 = vmatprep.subr.bf16.mxu0 0
    %475 = vmatpush2.bf16.msra.mxu0 0
    %476 = vmatprep.subr.bf16.mxu0 0
    %477 = vmatpush2.bf16.msra.mxu0 0
    %478 = vmatprep.mubr.bf16.mxu0 0
    %479 = vmatmul.mubr.bf16.gmra.mxu0 %v374
    %v480 = vpop.f32.mrf.mxu0
    %v481 = vadd.f32 %v358, %v480
    %v482 = vpop.f32.mrf.mxu0
    %v483 = vpop.f32.mrf.mxu0
    %v484 = vadd.f32 %v359, %v483
    %v485 = vpop.f32.mrf.mxu0
    %486 = vmatprep.mubr.bf16.mxu0 0
    %487 = vmatmul.mubr.bf16.gmra.mxu0 %v375
    %v488 = vpop.f32.mrf.mxu0
    %v489 = vadd.f32 %v360, %v488
    %v490 = vpop.f32.mrf.mxu0
    %v491 = vpop.f32.mrf.mxu0
    %v492 = vadd.f32 %v361, %v491
    %v493 = vpop.f32.mrf.mxu0
    %494 = vmatprep.mubr.bf16.mxu0 0
    %495 = vmatmul.mubr.bf16.gmra.mxu0 %v376
    %v496 = vpop.f32.mrf.mxu0
    %v497 = vadd.f32 %v362, %v496
    %v498 = vpop.f32.mrf.mxu0
    %v499 = vpop.f32.mrf.mxu0
    %v500 = vadd.f32 %v363, %v499
    %v501 = vpop.f32.mrf.mxu0
    %502 = vmatprep.mubr.bf16.mxu0 0
    %503 = vmatmul.mubr.bf16.gmra.mxu0 %v377
    %v504 = vpop.f32.mrf.mxu0
    %v505 = vadd.f32 %v364, %v504
    %v506 = vpop.f32.mrf.mxu0
    %v507 = vpop.f32.mrf.mxu0
    %v508 = vadd.f32 %v365, %v507
    %v509 = vpop.f32.mrf.mxu0
    %510 = vmatprep.mubr.bf16.mxu0 0
    %511 = vmatmul.mubr.bf16.gmra.mxu0 %v378
    %v512 = vpop.f32.mrf.mxu0
    %v513 = vadd.f32 %v366, %v512
    %v514 = vpop.f32.mrf.mxu0
    %v515 = vpop.f32.mrf.mxu0
    %v516 = vadd.f32 %v367, %v515
    %v517 = vpop.f32.mrf.mxu0
    %518 = vmatprep.mubr.bf16.mxu0 0
    %519 = vmatmul.mubr.bf16.gmra.mxu0 %v379
    %v520 = vpop.f32.mrf.mxu0
    %v521 = vadd.f32 %v368, %v520
    %v522 = vpop.f32.mrf.mxu0
    %v523 = vpop.f32.mrf.mxu0
    %v524 = vadd.f32 %v369, %v523
    %v525 = vpop.f32.mrf.mxu0
    %526 = vmatprep.mubr.bf16.mxu0 0
    %527 = vmatmul.mubr.bf16.gmra.mxu0 %v380
    %v528 = vpop.f32.mrf.mxu0
    %v529 = vadd.f32 %v370, %v528
    %v530 = vpop.f32.mrf.mxu0
    %v531 = vpop.f32.mrf.mxu0
    %v532 = vadd.f32 %v371, %v531
    %v533 = vpop.f32.mrf.mxu0
    %534 = vmatprep.mubr.bf16.mxu0 0
    %535 = vmatmul.mubr.bf16.gmra.mxu0 %v381
    %v536 = vpop.f32.mrf.mxu0
    %v537 = vadd.f32 %v372, %v536
    %v538 = vpop.f32.mrf.mxu0
    %v539 = vpop.f32.mrf.mxu0
    %v540 = vadd.f32 %v373, %v539
    %v541 = vpop.f32.mrf.mxu0
    %542 = vdwg.mxu0
    %v543 = vpack.c.bf16 %v484, %v481
    %v544 = vpack.c.bf16 %v492, %v489
    %v545 = vpack.c.bf16 %v500, %v497
    %v546 = vpack.c.bf16 %v508, %v505
    %v547 = vpack.c.bf16 %v516, %v513
    %v548 = vpack.c.bf16 %v524, %v521
    %v549 = vpack.c.bf16 %v532, %v529
    %v550 = vpack.c.bf16 %v540, %v537
    %551 = vmatprep.subr.bf16.mxu0 0
    %552 = vmatpush1.bf16.msra.mxu0 %v437
    %553 = vmatprep.subr.bf16.mxu0 0
    %554 = vmatpush1.bf16.msra.mxu0 %v436
    %555 = vmatprep.subr.bf16.mxu0 0
    %556 = vmatpush1.bf16.msra.mxu0 %v435
    %557 = vmatprep.subr.bf16.mxu0 0
    %558 = vmatpush1.bf16.msra.mxu0 %v434
    %559 = vmatprep.subr.bf16.mxu0 0
    %560 = vmatpush1.bf16.msra.mxu0 %v433
    %561 = vmatprep.subr.bf16.mxu0 0
    %562 = vmatpush1.bf16.msra.mxu0 %v432
    %563 = vmatprep.subr.bf16.mxu0 0
    %564 = vmatpush1.bf16.msra.mxu0 %v431
    %565 = vmatprep.subr.bf16.mxu0 0
    %566 = vmatpush1.bf16.msra.mxu0 %v430
    %567 = vmatprep.subr.bf16.mxu0 0
    %568 = vmatpush2.bf16.msra.mxu0 0
    %569 = vmatprep.subr.bf16.mxu0 0
    %570 = vmatpush2.bf16.msra.mxu0 0
    %571 = vmatprep.subr.bf16.mxu0 0
    %572 = vmatpush2.bf16.msra.mxu0 0
    %573 = vmatprep.subr.bf16.mxu0 0
    %574 = vmatpush2.bf16.msra.mxu0 0
    %575 = vmatprep.subr.bf16.mxu0 0
    %576 = vmatpush2.bf16.msra.mxu0 0
    %577 = vmatprep.subr.bf16.mxu0 0
    %578 = vmatpush2.bf16.msra.mxu0 0
    %579 = vmatprep.subr.bf16.mxu0 0
    %580 = vmatpush2.bf16.msra.mxu0 0
    %581 = vmatprep.subr.bf16.mxu0 0
    %582 = vmatpush2.bf16.msra.mxu0 0
    %583 = vmatprep.mubr.bf16.mxu0 0
    %584 = vmatmul.mubr.bf16.gmra.mxu0 %v543
    %v585 = vpop.f32.mrf.mxu0
    %v586 = vadd.f32 %v358, %v585
    %v587 = vpop.f32.mrf.mxu0
    %v588 = vpop.f32.mrf.mxu0
    %v589 = vadd.f32 %v359, %v588
    %v590 = vpop.f32.mrf.mxu0
    %591 = vmatprep.mubr.bf16.mxu0 0
    %592 = vmatmul.mubr.bf16.gmra.mxu0 %v544
    %v593 = vpop.f32.mrf.mxu0
    %v594 = vadd.f32 %v360, %v593
    %v595 = vpop.f32.mrf.mxu0
    %v596 = vpop.f32.mrf.mxu0
    %v597 = vadd.f32 %v361, %v596
    %v598 = vpop.f32.mrf.mxu0
    %599 = vmatprep.mubr.bf16.mxu0 0
    %600 = vmatmul.mubr.bf16.gmra.mxu0 %v545
    %v601 = vpop.f32.mrf.mxu0
    %v602 = vadd.f32 %v362, %v601
    %v603 = vpop.f32.mrf.mxu0
    %v604 = vpop.f32.mrf.mxu0
    %v605 = vadd.f32 %v363, %v604
    %v606 = vpop.f32.mrf.mxu0
    %607 = vmatprep.mubr.bf16.mxu0 0
    %608 = vmatmul.mubr.bf16.gmra.mxu0 %v546
    %v609 = vpop.f32.mrf.mxu0
    %v610 = vadd.f32 %v364, %v609
    %v611 = vpop.f32.mrf.mxu0
    %v612 = vpop.f32.mrf.mxu0
    %v613 = vadd.f32 %v365, %v612
    %v614 = vpop.f32.mrf.mxu0
    %615 = vmatprep.mubr.bf16.mxu0 0
    %616 = vmatmul.mubr.bf16.gmra.mxu0 %v547
    %v617 = vpop.f32.mrf.mxu0
    %v618 = vadd.f32 %v366, %v617
    %v619 = vpop.f32.mrf.mxu0
    %v620 = vpop.f32.mrf.mxu0
    %v621 = vadd.f32 %v367, %v620
    %v622 = vpop.f32.mrf.mxu0
    %623 = vmatprep.mubr.bf16.mxu0 0
    %624 = vmatmul.mubr.bf16.gmra.mxu0 %v548
    %v625 = vpop.f32.mrf.mxu0
    %v626 = vadd.f32 %v368, %v625
    %v627 = vpop.f32.mrf.mxu0
    %v628 = vpop.f32.mrf.mxu0
    %v629 = vadd.f32 %v369, %v628
    %v630 = vpop.f32.mrf.mxu0
    %631 = vmatprep.mubr.bf16.mxu0 0
    %632 = vmatmul.mubr.bf16.gmra.mxu0 %v549
    %v633 = vpop.f32.mrf.mxu0
    %v634 = vadd.f32 %v370, %v633
    %v635 = vpop.f32.mrf.mxu0
    %v636 = vpop.f32.mrf.mxu0
    %v637 = vadd.f32 %v371, %v636
    %v638 = vpop.f32.mrf.mxu0
    %639 = vmatprep.mubr.bf16.mxu0 0
    %640 = vmatmul.mubr.bf16.gmra.mxu0 %v550
    %v641 = vpop.f32.mrf.mxu0
    %v642 = vadd.f32 %v372, %v641
    %v643 = vpop.f32.mrf.mxu0
    %v644 = vpop.f32.mrf.mxu0
    %v645 = vadd.f32 %v373, %v644
    %v646 = vpop.f32.mrf.mxu0
    %647 = vdwg.mxu0
    %v648 = vpack.c.bf16 %v589, %v586
    %v649 = vpack.c.bf16 %v597, %v594
    %v650 = vpack.c.bf16 %v605, %v602
    %v651 = vpack.c.bf16 %v613, %v610
    %v652 = vpack.c.bf16 %v621, %v618
    %v653 = vpack.c.bf16 %v629, %v626
    %v654 = vpack.c.bf16 %v637, %v634
    %v655 = vpack.c.bf16 %v645, %v642
    %656 = vmatprep.subr.bf16.mxu0 0
    %657 = vmatpush1.bf16.msra.mxu0 %v437
    %658 = vmatprep.subr.bf16.mxu0 0
    %659 = vmatpush1.bf16.msra.mxu0 %v436
    %660 = vmatprep.subr.bf16.mxu0 0
    %661 = vmatpush1.bf16.msra.mxu0 %v435
    %662 = vmatprep.subr.bf16.mxu0 0
    %663 = vmatpush1.bf16.msra.mxu0 %v434
    %664 = vmatprep.subr.bf16.mxu0 0
    %665 = vmatpush1.bf16.msra.mxu0 %v433
    %666 = vmatprep.subr.bf16.mxu0 0
    %667 = vmatpush1.bf16.msra.mxu0 %v432
    %668 = vmatprep.subr.bf16.mxu0 0
    %669 = vmatpush1.bf16.msra.mxu0 %v431
    %670 = vmatprep.subr.bf16.mxu0 0
    %671 = vmatpush1.bf16.msra.mxu0 %v430
    %672 = vmatprep.subr.bf16.mxu0 0
    %673 = vmatpush2.bf16.msra.mxu0 0
    %674 = vmatprep.subr.bf16.mxu0 0
    %675 = vmatpush2.bf16.msra.mxu0 0
    %676 = vmatprep.subr.bf16.mxu0 0
    %677 = vmatpush2.bf16.msra.mxu0 0
    %678 = vmatprep.subr.bf16.mxu0 0
    %679 = vmatpush2.bf16.msra.mxu0 0
    %680 = vmatprep.subr.bf16.mxu0 0
    %681 = vmatpush2.bf16.msra.mxu0 0
    %682 = vmatprep.subr.bf16.mxu0 0
    %683 = vmatpush2.bf16.msra.mxu0 0
    %684 = vmatprep.subr.bf16.mxu0 0
    %685 = vmatpush2.bf16.msra.mxu0 0
    %686 = vmatprep.subr.bf16.mxu0 0
    %687 = vmatpush2.bf16.msra.mxu0 0
    %688 = vmatprep.mubr.bf16.mxu0 0
    %689 = vmatmul.mubr.bf16.gmra.mxu0 %v648
    %v690 = vpop.f32.mrf.mxu0
    %v691 = vadd.f32 %v358, %v690
    %v692 = vpop.f32.mrf.mxu0
    %v693 = vpop.f32.mrf.mxu0
    %v694 = vadd.f32 %v359, %v693
    %v695 = vpop.f32.mrf.mxu0
    %696 = vmatprep.mubr.bf16.mxu0 0
    %697 = vmatmul.mubr.bf16.gmra.mxu0 %v649
    %v698 = vpop.f32.mrf.mxu0
    %v699 = vadd.f32 %v360, %v698
    %v700 = vpop.f32.mrf.mxu0
    %v701 = vpop.f32.mrf.mxu0
    %v702 = vadd.f32 %v361, %v701
    %v703 = vpop.f32.mrf.mxu0
    %704 = vmatprep.mubr.bf16.mxu0 0
    %705 = vmatmul.mubr.bf16.gmra.mxu0 %v650
    %v706 = vpop.f32.mrf.mxu0
    %v707 = vadd.f32 %v362, %v706
    %v708 = vpop.f32.mrf.mxu0
    %v709 = vpop.f32.mrf.mxu0
    %v710 = vadd.f32 %v363, %v709
    %v711 = vpop.f32.mrf.mxu0
    %712 = vmatprep.mubr.bf16.mxu0 0
    %713 = vmatmul.mubr.bf16.gmra.mxu0 %v651
    %v714 = vpop.f32.mrf.mxu0
    %v715 = vadd.f32 %v364, %v714
    %v716 = vpop.f32.mrf.mxu0
    %v717 = vpop.f32.mrf.mxu0
    %v718 = vadd.f32 %v365, %v717
    %v719 = vpop.f32.mrf.mxu0
    %720 = vmatprep.mubr.bf16.mxu0 0
    %721 = vmatmul.mubr.bf16.gmra.mxu0 %v652
    %v722 = vpop.f32.mrf.mxu0
    %v723 = vadd.f32 %v366, %v722
    %v724 = vpop.f32.mrf.mxu0
    %v725 = vpop.f32.mrf.mxu0
    %v726 = vadd.f32 %v367, %v725
    %v727 = vpop.f32.mrf.mxu0
    %728 = vmatprep.mubr.bf16.mxu0 0
    %729 = vmatmul.mubr.bf16.gmra.mxu0 %v653
    %v730 = vpop.f32.mrf.mxu0
    %v731 = vadd.f32 %v368, %v730
    %v732 = vpop.f32.mrf.mxu0
    %v733 = vpop.f32.mrf.mxu0
    %v734 = vadd.f32 %v369, %v733
    %v735 = vpop.f32.mrf.mxu0
    %736 = vmatprep.mubr.bf16.mxu0 0
    %737 = vmatmul.mubr.bf16.gmra.mxu0 %v654
    %v738 = vpop.f32.mrf.mxu0
    %v739 = vadd.f32 %v370, %v738
    %v740 = vpop.f32.mrf.mxu0
    %v741 = vpop.f32.mrf.mxu0
    %v742 = vadd.f32 %v371, %v741
    %v743 = vpop.f32.mrf.mxu0
    %744 = vmatprep.mubr.bf16.mxu0 0
    %745 = vmatmul.mubr.bf16.gmra.mxu0 %v655
    %v746 = vpop.f32.mrf.mxu0
    %v747 = vadd.f32 %v372, %v746
    %v748 = vpop.f32.mrf.mxu0
    %v749 = vpop.f32.mrf.mxu0
    %v750 = vadd.f32 %v373, %v749
    %v751 = vpop.f32.mrf.mxu0
    %752 = vdwg.mxu0
    %v753 = vpack.c.bf16 %v694, %v691
    %v754 = vpack.c.bf16 %v702, %v699
    %v755 = vpack.c.bf16 %v710, %v707
    %v756 = vpack.c.bf16 %v718, %v715
    %v757 = vpack.c.bf16 %v726, %v723
    %v758 = vpack.c.bf16 %v734, %v731
    %v759 = vpack.c.bf16 %v742, %v739
    %v760 = vpack.c.bf16 %v750, %v747
    %761 = vmatprep.subr.bf16.mxu0 0
    %762 = vmatpush1.bf16.msra.mxu0 %v437
    %763 = vmatprep.subr.bf16.mxu0 0
    %764 = vmatpush1.bf16.msra.mxu0 %v436
    %765 = vmatprep.subr.bf16.mxu0 0
    %766 = vmatpush1.bf16.msra.mxu0 %v435
    %767 = vmatprep.subr.bf16.mxu0 0
    %768 = vmatpush1.bf16.msra.mxu0 %v434
    %769 = vmatprep.subr.bf16.mxu0 0
    %770 = vmatpush1.bf16.msra.mxu0 %v433
    %771 = vmatprep.subr.bf16.mxu0 0
    %772 = vmatpush1.bf16.msra.mxu0 %v432
    %773 = vmatprep.subr.bf16.mxu0 0
    %774 = vmatpush1.bf16.msra.mxu0 %v431
    %775 = vmatprep.subr.bf16.mxu0 0
    %776 = vmatpush1.bf16.msra.mxu0 %v430
    %777 = vmatprep.subr.bf16.mxu0 0
    %778 = vmatpush2.bf16.msra.mxu0 0
    %779 = vmatprep.subr.bf16.mxu0 0
    %780 = vmatpush2.bf16.msra.mxu0 0
    %781 = vmatprep.subr.bf16.mxu0 0
    %782 = vmatpush2.bf16.msra.mxu0 0
    %783 = vmatprep.subr.bf16.mxu0 0
    %784 = vmatpush2.bf16.msra.mxu0 0
    %785 = vmatprep.subr.bf16.mxu0 0
    %786 = vmatpush2.bf16.msra.mxu0 0
    %787 = vmatprep.subr.bf16.mxu0 0
    %788 = vmatpush2.bf16.msra.mxu0 0
    %789 = vmatprep.subr.bf16.mxu0 0
    %790 = vmatpush2.bf16.msra.mxu0 0
    %791 = vmatprep.subr.bf16.mxu0 0
    %792 = vmatpush2.bf16.msra.mxu0 0
    %793 = vmatprep.mubr.bf16.mxu0 0
    %794 = vmatmul.mubr.bf16.gmra.mxu0 %v753
    %v795 = vpop.f32.mrf.mxu0
    %v796 = vadd.f32 %v358, %v795
    %v797 = vpop.f32.mrf.mxu0
    %v798 = vpop.f32.mrf.mxu0
    %v799 = vadd.f32 %v359, %v798
    %v800 = vpop.f32.mrf.mxu0
    %801 = vmatprep.mubr.bf16.mxu0 0
    %802 = vmatmul.mubr.bf16.gmra.mxu0 %v754
    %v803 = vpop.f32.mrf.mxu0
    %v804 = vadd.f32 %v360, %v803
    %v805 = vpop.f32.mrf.mxu0
    %v806 = vpop.f32.mrf.mxu0
    %v807 = vadd.f32 %v361, %v806
    %v808 = vpop.f32.mrf.mxu0
    %809 = vmatprep.mubr.bf16.mxu0 0
    %810 = vmatmul.mubr.bf16.gmra.mxu0 %v755
    %v811 = vpop.f32.mrf.mxu0
    %v812 = vadd.f32 %v362, %v811
    %v813 = vpop.f32.mrf.mxu0
    %v814 = vpop.f32.mrf.mxu0
    %v815 = vadd.f32 %v363, %v814
    %v816 = vpop.f32.mrf.mxu0
    %817 = vmatprep.mubr.bf16.mxu0 0
    %818 = vmatmul.mubr.bf16.gmra.mxu0 %v756
    %v819 = vpop.f32.mrf.mxu0
    %v820 = vadd.f32 %v364, %v819
    %v821 = vpop.f32.mrf.mxu0
    %v822 = vpop.f32.mrf.mxu0
    %v823 = vadd.f32 %v365, %v822
    %v824 = vpop.f32.mrf.mxu0
    %825 = vmatprep.mubr.bf16.mxu0 0
    %826 = vmatmul.mubr.bf16.gmra.mxu0 %v757
    %v827 = vpop.f32.mrf.mxu0
    %v828 = vadd.f32 %v366, %v827
    %v829 = vpop.f32.mrf.mxu0
    %v830 = vpop.f32.mrf.mxu0
    %v831 = vadd.f32 %v367, %v830
    %v832 = vpop.f32.mrf.mxu0
    %833 = vmatprep.mubr.bf16.mxu0 0
    %834 = vmatmul.mubr.bf16.gmra.mxu0 %v758
    %v835 = vpop.f32.mrf.mxu0
    %v836 = vadd.f32 %v368, %v835
    %v837 = vpop.f32.mrf.mxu0
    %v838 = vpop.f32.mrf.mxu0
    %v839 = vadd.f32 %v369, %v838
    %v840 = vpop.f32.mrf.mxu0
    %841 = vmatprep.mubr.bf16.mxu0 0
    %842 = vmatmul.mubr.bf16.gmra.mxu0 %v759
    %v843 = vpop.f32.mrf.mxu0
    %v844 = vadd.f32 %v370, %v843
    %v845 = vpop.f32.mrf.mxu0
    %v846 = vpop.f32.mrf.mxu0
    %v847 = vadd.f32 %v371, %v846
    %v848 = vpop.f32.mrf.mxu0
    %849 = vmatprep.mubr.bf16.mxu0 0
    %850 = vmatmul.mubr.bf16.gmra.mxu0 %v760
    %v851 = vpop.f32.mrf.mxu0
    %v852 = vadd.f32 %v372, %v851
    %v853 = vpop.f32.mrf.mxu0
    %v854 = vpop.f32.mrf.mxu0
    %v855 = vadd.f32 %v373, %v854
    %v856 = vpop.f32.mrf.mxu0
    %857 = vdwg.mxu0
    %v858 = vpack.c.bf16 %v799, %v796
    %v859 = vpack.c.bf16 %v807, %v804
    %v860 = vpack.c.bf16 %v815, %v812
    %v861 = vpack.c.bf16 %v823, %v820
    %v862 = vpack.c.bf16 %v831, %v828
    %v863 = vpack.c.bf16 %v839, %v836
    %v864 = vpack.c.bf16 %v847, %v844
    %v865 = vpack.c.bf16 %v855, %v852
    %866 = vmatprep.subr.bf16.mxu0 0
    %867 = vmatpush1.bf16.msra.mxu0 %v437
    %868 = vmatprep.subr.bf16.mxu0 0
    %869 = vmatpush1.bf16.msra.mxu0 %v436
    %870 = vmatprep.subr.bf16.mxu0 0
    %871 = vmatpush1.bf16.msra.mxu0 %v435
    %872 = vmatprep.subr.bf16.mxu0 0
    %873 = vmatpush1.bf16.msra.mxu0 %v434
    %874 = vmatprep.subr.bf16.mxu0 0
    %875 = vmatpush1.bf16.msra.mxu0 %v433
    %876 = vmatprep.subr.bf16.mxu0 0
    %877 = vmatpush1.bf16.msra.mxu0 %v432
    %878 = vmatprep.subr.bf16.mxu0 0
    %879 = vmatpush1.bf16.msra.mxu0 %v431
    %880 = vmatprep.subr.bf16.mxu0 0
    %881 = vmatpush1.bf16.msra.mxu0 %v430
    %882 = vmatprep.subr.bf16.mxu0 0
    %883 = vmatpush2.bf16.msra.mxu0 0
    %884 = vmatprep.subr.bf16.mxu0 0
    %885 = vmatpush2.bf16.msra.mxu0 0
    %886 = vmatprep.subr.bf16.mxu0 0
    %887 = vmatpush2.bf16.msra.mxu0 0
    %888 = vmatprep.subr.bf16.mxu0 0
    %889 = vmatpush2.bf16.msra.mxu0 0
    %890 = vmatprep.subr.bf16.mxu0 0
    %891 = vmatpush2.bf16.msra.mxu0 0
    %892 = vmatprep.subr.bf16.mxu0 0
    %893 = vmatpush2.bf16.msra.mxu0 0
    %894 = vmatprep.subr.bf16.mxu0 0
    %895 = vmatpush2.bf16.msra.mxu0 0
    %896 = vmatprep.subr.bf16.mxu0 0
    %897 = vmatpush2.bf16.msra.mxu0 0
    %898 = vmatprep.mubr.bf16.mxu0 0
    %899 = vmatmul.mubr.bf16.gmra.mxu0 %v858
    %v900 = vpop.f32.mrf.mxu0
    %v901 = vadd.f32 %v358, %v900
    %v902 = vpop.f32.mrf.mxu0
    %v903 = vpop.f32.mrf.mxu0
    %v904 = vadd.f32 %v359, %v903
    %v905 = vpop.f32.mrf.mxu0
    %906 = vmatprep.mubr.bf16.mxu0 0
    %907 = vmatmul.mubr.bf16.gmra.mxu0 %v859
    %v908 = vpop.f32.mrf.mxu0
    %v909 = vadd.f32 %v360, %v908
    %v910 = vpop.f32.mrf.mxu0
    %v911 = vpop.f32.mrf.mxu0
    %v912 = vadd.f32 %v361, %v911
    %v913 = vpop.f32.mrf.mxu0
    %914 = vmatprep.mubr.bf16.mxu0 0
    %915 = vmatmul.mubr.bf16.gmra.mxu0 %v860
    %v916 = vpop.f32.mrf.mxu0
    %v917 = vadd.f32 %v362, %v916
    %v918 = vpop.f32.mrf.mxu0
    %v919 = vpop.f32.mrf.mxu0
    %v920 = vadd.f32 %v363, %v919
    %v921 = vpop.f32.mrf.mxu0
    %922 = vmatprep.mubr.bf16.mxu0 0
    %923 = vmatmul.mubr.bf16.gmra.mxu0 %v861
    %v924 = vpop.f32.mrf.mxu0
    %v925 = vadd.f32 %v364, %v924
    %v926 = vpop.f32.mrf.mxu0
    %v927 = vpop.f32.mrf.mxu0
    %v928 = vadd.f32 %v365, %v927
    %v929 = vpop.f32.mrf.mxu0
    %930 = vmatprep.mubr.bf16.mxu0 0
    %931 = vmatmul.mubr.bf16.gmra.mxu0 %v862
    %v932 = vpop.f32.mrf.mxu0
    %v933 = vadd.f32 %v366, %v932
    %v934 = vpop.f32.mrf.mxu0
    %v935 = vpop.f32.mrf.mxu0
    %v936 = vadd.f32 %v367, %v935
    %v937 = vpop.f32.mrf.mxu0
    %938 = vmatprep.mubr.bf16.mxu0 0
    %939 = vmatmul.mubr.bf16.gmra.mxu0 %v863
    %v940 = vpop.f32.mrf.mxu0
    %v941 = vadd.f32 %v368, %v940
    %v942 = vpop.f32.mrf.mxu0
    %v943 = vpop.f32.mrf.mxu0
    %v944 = vadd.f32 %v369, %v943
    %v945 = vpop.f32.mrf.mxu0
    %946 = vmatprep.mubr.bf16.mxu0 0
    %947 = vmatmul.mubr.bf16.gmra.mxu0 %v864
    %v948 = vpop.f32.mrf.mxu0
    %v949 = vadd.f32 %v370, %v948
    %v950 = vpop.f32.mrf.mxu0
    %v951 = vpop.f32.mrf.mxu0
    %v952 = vadd.f32 %v371, %v951
    %v953 = vpop.f32.mrf.mxu0
    %954 = vmatprep.mubr.bf16.mxu0 0
    %955 = vmatmul.mubr.bf16.gmra.mxu0 %v865
    %v956 = vpop.f32.mrf.mxu0
    %v957 = vadd.f32 %v372, %v956
    %v958 = vpop.f32.mrf.mxu0
    %v959 = vpop.f32.mrf.mxu0
    %v960 = vadd.f32 %v373, %v959
    %v961 = vpop.f32.mrf.mxu0
    %962 = vdwg.mxu0
    %v963 = vpack.c.bf16 %v904, %v901
    %v964 = vpack.c.bf16 %v912, %v909
    %v965 = vpack.c.bf16 %v920, %v917
    %v966 = vpack.c.bf16 %v928, %v925
    %v967 = vpack.c.bf16 %v936, %v933
    %v968 = vpack.c.bf16 %v944, %v941
    %v969 = vpack.c.bf16 %v952, %v949
    %v970 = vpack.c.bf16 %v960, %v957
    %971 = vmatprep.subr.bf16.mxu0 0
    %972 = vmatpush1.bf16.msra.mxu0 %v437
    %973 = vmatprep.subr.bf16.mxu0 0
    %974 = vmatpush1.bf16.msra.mxu0 %v436
    %975 = vmatprep.subr.bf16.mxu0 0
    %976 = vmatpush1.bf16.msra.mxu0 %v435
    %977 = vmatprep.subr.bf16.mxu0 0
    %978 = vmatpush1.bf16.msra.mxu0 %v434
    %979 = vmatprep.subr.bf16.mxu0 0
    %980 = vmatpush1.bf16.msra.mxu0 %v433
    %981 = vmatprep.subr.bf16.mxu0 0
    %982 = vmatpush1.bf16.msra.mxu0 %v432
    %983 = vmatprep.subr.bf16.mxu0 0
    %984 = vmatpush1.bf16.msra.mxu0 %v431
    %985 = vmatprep.subr.bf16.mxu0 0
    %986 = vmatpush1.bf16.msra.mxu0 %v430
    %987 = vmatprep.subr.bf16.mxu0 0
    %988 = vmatpush2.bf16.msra.mxu0 0
    %989 = vmatprep.subr.bf16.mxu0 0
    %990 = vmatpush2.bf16.msra.mxu0 0
    %991 = vmatprep.subr.bf16.mxu0 0
    %992 = vmatpush2.bf16.msra.mxu0 0
    %993 = vmatprep.subr.bf16.mxu0 0
    %994 = vmatpush2.bf16.msra.mxu0 0
    %995 = vmatprep.subr.bf16.mxu0 0
    %996 = vmatpush2.bf16.msra.mxu0 0
    %997 = vmatprep.subr.bf16.mxu0 0
    %998 = vmatpush2.bf16.msra.mxu0 0
    %999 = vmatprep.subr.bf16.mxu0 0
    %1000 = vmatpush2.bf16.msra.mxu0 0
    %1001 = vmatprep.subr.bf16.mxu0 0
    %1002 = vmatpush2.bf16.msra.mxu0 0
    %1003 = vmatprep.mubr.bf16.mxu0 0
    %1004 = vmatmul.mubr.bf16.gmra.mxu0 %v963
    %v1005 = vpop.f32.mrf.mxu0
    %v1006 = vadd.f32 %v358, %v1005
    %v1007 = vpop.f32.mrf.mxu0
    %v1008 = vpop.f32.mrf.mxu0
    %v1009 = vadd.f32 %v359, %v1008
    %v1010 = vpop.f32.mrf.mxu0
    %1011 = vmatprep.mubr.bf16.mxu0 0
    %1012 = vmatmul.mubr.bf16.gmra.mxu0 %v964
    %v1013 = vpop.f32.mrf.mxu0
    %v1014 = vadd.f32 %v360, %v1013
    %v1015 = vpop.f32.mrf.mxu0
    %v1016 = vpop.f32.mrf.mxu0
    %v1017 = vadd.f32 %v361, %v1016
    %v1018 = vpop.f32.mrf.mxu0
    %1019 = vmatprep.mubr.bf16.mxu0 0
    %1020 = vmatmul.mubr.bf16.gmra.mxu0 %v965
    %v1021 = vpop.f32.mrf.mxu0
    %v1022 = vadd.f32 %v362, %v1021
    %v1023 = vpop.f32.mrf.mxu0
    %v1024 = vpop.f32.mrf.mxu0
    %v1025 = vadd.f32 %v363, %v1024
    %v1026 = vpop.f32.mrf.mxu0
    %1027 = vmatprep.mubr.bf16.mxu0 0
    %1028 = vmatmul.mubr.bf16.gmra.mxu0 %v966
    %v1029 = vpop.f32.mrf.mxu0
    %v1030 = vadd.f32 %v364, %v1029
    %v1031 = vpop.f32.mrf.mxu0
    %v1032 = vpop.f32.mrf.mxu0
    %v1033 = vadd.f32 %v365, %v1032
    %v1034 = vpop.f32.mrf.mxu0
    %1035 = vmatprep.mubr.bf16.mxu0 0
    %1036 = vmatmul.mubr.bf16.gmra.mxu0 %v967
    %v1037 = vpop.f32.mrf.mxu0
    %v1038 = vadd.f32 %v366, %v1037
    %v1039 = vpop.f32.mrf.mxu0
    %v1040 = vpop.f32.mrf.mxu0
    %v1041 = vadd.f32 %v367, %v1040
    %v1042 = vpop.f32.mrf.mxu0
    %1043 = vmatprep.mubr.bf16.mxu0 0
    %1044 = vmatmul.mubr.bf16.gmra.mxu0 %v968
    %v1045 = vpop.f32.mrf.mxu0
    %v1046 = vadd.f32 %v368, %v1045
    %v1047 = vpop.f32.mrf.mxu0
    %v1048 = vpop.f32.mrf.mxu0
    %v1049 = vadd.f32 %v369, %v1048
    %v1050 = vpop.f32.mrf.mxu0
    %1051 = vmatprep.mubr.bf16.mxu0 0
    %1052 = vmatmul.mubr.bf16.gmra.mxu0 %v969
    %v1053 = vpop.f32.mrf.mxu0
    %v1054 = vadd.f32 %v370, %v1053
    %v1055 = vpop.f32.mrf.mxu0
    %v1056 = vpop.f32.mrf.mxu0
    %v1057 = vadd.f32 %v371, %v1056
    %v1058 = vpop.f32.mrf.mxu0
    %1059 = vmatprep.mubr.bf16.mxu0 0
    %1060 = vmatmul.mubr.bf16.gmra.mxu0 %v970
    %v1061 = vpop.f32.mrf.mxu0
    %v1062 = vadd.f32 %v372, %v1061
    %v1063 = vpop.f32.mrf.mxu0
    %v1064 = vpop.f32.mrf.mxu0
    %v1065 = vadd.f32 %v373, %v1064
    %v1066 = vpop.f32.mrf.mxu0
    %1067 = vdwg.mxu0
    %v1068 = vpack.c.bf16 %v1009, %v1006
    %v1069 = vpack.c.bf16 %v1017, %v1014
    %v1070 = vpack.c.bf16 %v1025, %v1022
    %v1071 = vpack.c.bf16 %v1033, %v1030
    %v1072 = vpack.c.bf16 %v1041, %v1038
    %v1073 = vpack.c.bf16 %v1049, %v1046
    %v1074 = vpack.c.bf16 %v1057, %v1054
    %v1075 = vpack.c.bf16 %v1065, %v1062
    %1076 = vmatprep.subr.bf16.mxu0 0
    %1077 = vmatpush1.bf16.msra.mxu0 %v437
    %1078 = vmatprep.subr.bf16.mxu0 0
    %1079 = vmatpush1.bf16.msra.mxu0 %v436
    %1080 = vmatprep.subr.bf16.mxu0 0
    %1081 = vmatpush1.bf16.msra.mxu0 %v435
    %1082 = vmatprep.subr.bf16.mxu0 0
    %1083 = vmatpush1.bf16.msra.mxu0 %v434
    %1084 = vmatprep.subr.bf16.mxu0 0
    %1085 = vmatpush1.bf16.msra.mxu0 %v433
    %1086 = vmatprep.subr.bf16.mxu0 0
    %1087 = vmatpush1.bf16.msra.mxu0 %v432
    %1088 = vmatprep.subr.bf16.mxu0 0
    %1089 = vmatpush1.bf16.msra.mxu0 %v431
    %1090 = vmatprep.subr.bf16.mxu0 0
    %1091 = vmatpush1.bf16.msra.mxu0 %v430
    %1092 = vmatprep.subr.bf16.mxu0 0
    %1093 = vmatpush2.bf16.msra.mxu0 0
    %1094 = vmatprep.subr.bf16.mxu0 0
    %1095 = vmatpush2.bf16.msra.mxu0 0
    %1096 = vmatprep.subr.bf16.mxu0 0
    %1097 = vmatpush2.bf16.msra.mxu0 0
    %1098 = vmatprep.subr.bf16.mxu0 0
    %1099 = vmatpush2.bf16.msra.mxu0 0
    %1100 = vmatprep.subr.bf16.mxu0 0
    %1101 = vmatpush2.bf16.msra.mxu0 0
    %1102 = vmatprep.subr.bf16.mxu0 0
    %1103 = vmatpush2.bf16.msra.mxu0 0
    %1104 = vmatprep.subr.bf16.mxu0 0
    %1105 = vmatpush2.bf16.msra.mxu0 0
    %1106 = vmatprep.subr.bf16.mxu0 0
    %1107 = vmatpush2.bf16.msra.mxu0 0
    %1108 = vmatprep.mubr.bf16.mxu0 0
    %1109 = vmatmul.mubr.bf16.gmra.mxu0 %v1068
    %v1110 = vpop.f32.mrf.mxu0
    %v1111 = vadd.f32 %v358, %v1110
    %v1112 = vpop.f32.mrf.mxu0
    %v1113 = vpop.f32.mrf.mxu0
    %v1114 = vadd.f32 %v359, %v1113
    %v1115 = vpop.f32.mrf.mxu0
    %1116 = vmatprep.mubr.bf16.mxu0 0
    %1117 = vmatmul.mubr.bf16.gmra.mxu0 %v1069
    %v1118 = vpop.f32.mrf.mxu0
    %v1119 = vadd.f32 %v360, %v1118
    %v1120 = vpop.f32.mrf.mxu0
    %v1121 = vpop.f32.mrf.mxu0
    %v1122 = vadd.f32 %v361, %v1121
    %v1123 = vpop.f32.mrf.mxu0
    %1124 = vmatprep.mubr.bf16.mxu0 0
    %1125 = vmatmul.mubr.bf16.gmra.mxu0 %v1070
    %v1126 = vpop.f32.mrf.mxu0
    %v1127 = vadd.f32 %v362, %v1126
    %v1128 = vpop.f32.mrf.mxu0
    %v1129 = vpop.f32.mrf.mxu0
    %v1130 = vadd.f32 %v363, %v1129
    %v1131 = vpop.f32.mrf.mxu0
    %1132 = vmatprep.mubr.bf16.mxu0 0
    %1133 = vmatmul.mubr.bf16.gmra.mxu0 %v1071
    %v1134 = vpop.f32.mrf.mxu0
    %v1135 = vadd.f32 %v364, %v1134
    %v1136 = vpop.f32.mrf.mxu0
    %v1137 = vpop.f32.mrf.mxu0
    %v1138 = vadd.f32 %v365, %v1137
    %v1139 = vpop.f32.mrf.mxu0
    %1140 = vmatprep.mubr.bf16.mxu0 0
    %1141 = vmatmul.mubr.bf16.gmra.mxu0 %v1072
    %v1142 = vpop.f32.mrf.mxu0
    %v1143 = vadd.f32 %v366, %v1142
    %v1144 = vpop.f32.mrf.mxu0
    %v1145 = vpop.f32.mrf.mxu0
    %v1146 = vadd.f32 %v367, %v1145
    %v1147 = vpop.f32.mrf.mxu0
    %1148 = vmatprep.mubr.bf16.mxu0 0
    %1149 = vmatmul.mubr.bf16.gmra.mxu0 %v1073
    %v1150 = vpop.f32.mrf.mxu0
    %v1151 = vadd.f32 %v368, %v1150
    %v1152 = vpop.f32.mrf.mxu0
    %v1153 = vpop.f32.mrf.mxu0
    %v1154 = vadd.f32 %v369, %v1153
    %v1155 = vpop.f32.mrf.mxu0
    %1156 = vmatprep.mubr.bf16.mxu0 0
    %1157 = vmatmul.mubr.bf16.gmra.mxu0 %v1074
    %v1158 = vpop.f32.mrf.mxu0
    %v1159 = vadd.f32 %v370, %v1158
    %v1160 = vpop.f32.mrf.mxu0
    %v1161 = vpop.f32.mrf.mxu0
    %v1162 = vadd.f32 %v371, %v1161
    %v1163 = vpop.f32.mrf.mxu0
    %1164 = vmatprep.mubr.bf16.mxu0 0
    %1165 = vmatmul.mubr.bf16.gmra.mxu0 %v1075
    %v1166 = vpop.f32.mrf.mxu0
    %v1167 = vadd.f32 %v372, %v1166
    %v1168 = vpop.f32.mrf.mxu0
    %v1169 = vpop.f32.mrf.mxu0
    %v1170 = vadd.f32 %v373, %v1169
    %v1171 = vpop.f32.mrf.mxu0
    %1172 = vdwg.mxu0
    %v1173 = vpack.c.bf16 %v1114, %v1111
    %v1174 = vpack.c.bf16 %v1122, %v1119
    %v1175 = vpack.c.bf16 %v1130, %v1127
    %v1176 = vpack.c.bf16 %v1138, %v1135
    %v1177 = vpack.c.bf16 %v1146, %v1143
    %v1178 = vpack.c.bf16 %v1154, %v1151
    %v1179 = vpack.c.bf16 %v1162, %v1159
    %v1180 = vpack.c.bf16 %v1170, %v1167
    %1181 = vmatprep.subr.bf16.mxu0 0
    %1182 = vmatpush1.bf16.msra.mxu0 %v437
    %1183 = vmatprep.subr.bf16.mxu0 0
    %1184 = vmatpush1.bf16.msra.mxu0 %v436
    %1185 = vmatprep.subr.bf16.mxu0 0
    %1186 = vmatpush1.bf16.msra.mxu0 %v435
    %1187 = vmatprep.subr.bf16.mxu0 0
    %1188 = vmatpush1.bf16.msra.mxu0 %v434
    %1189 = vmatprep.subr.bf16.mxu0 0
    %1190 = vmatpush1.bf16.msra.mxu0 %v433
    %1191 = vmatprep.subr.bf16.mxu0 0
    %1192 = vmatpush1.bf16.msra.mxu0 %v432
    %1193 = vmatprep.subr.bf16.mxu0 0
    %1194 = vmatpush1.bf16.msra.mxu0 %v431
    %1195 = vmatprep.subr.bf16.mxu0 0
    %1196 = vmatpush1.bf16.msra.mxu0 %v430
    %1197 = vmatprep.subr.bf16.mxu0 0
    %1198 = vmatpush2.bf16.msra.mxu0 0
    %1199 = vmatprep.subr.bf16.mxu0 0
    %1200 = vmatpush2.bf16.msra.mxu0 0
    %1201 = vmatprep.subr.bf16.mxu0 0
    %1202 = vmatpush2.bf16.msra.mxu0 0
    %1203 = vmatprep.subr.bf16.mxu0 0
    %1204 = vmatpush2.bf16.msra.mxu0 0
    %1205 = vmatprep.subr.bf16.mxu0 0
    %1206 = vmatpush2.bf16.msra.mxu0 0
    %1207 = vmatprep.subr.bf16.mxu0 0
    %1208 = vmatpush2.bf16.msra.mxu0 0
    %1209 = vmatprep.subr.bf16.mxu0 0
    %1210 = vmatpush2.bf16.msra.mxu0 0
    %1211 = vmatprep.subr.bf16.mxu0 0
    %1212 = vmatpush2.bf16.msra.mxu0 0
    %1213 = vmatprep.mubr.bf16.mxu0 0
    %1214 = vmatmul.mubr.bf16.gmra.mxu0 %v1173
    %v1215 = vpop.f32.mrf.mxu0
    %v1216 = vadd.f32 %v358, %v1215
    %v1217 = vpop.f32.mrf.mxu0
    %v1218 = vpop.f32.mrf.mxu0
    %v1219 = vadd.f32 %v359, %v1218
    %v1220 = vpop.f32.mrf.mxu0
    %1221 = vmatprep.mubr.bf16.mxu0 0
    %1222 = vmatmul.mubr.bf16.gmra.mxu0 %v1174
    %v1223 = vpop.f32.mrf.mxu0
    %v1224 = vadd.f32 %v360, %v1223
    %v1225 = vpop.f32.mrf.mxu0
    %v1226 = vpop.f32.mrf.mxu0
    %v1227 = vadd.f32 %v361, %v1226
    %v1228 = vpop.f32.mrf.mxu0
    %1229 = vmatprep.mubr.bf16.mxu0 0
    %1230 = vmatmul.mubr.bf16.gmra.mxu0 %v1175
    %v1231 = vpop.f32.mrf.mxu0
    %v1232 = vadd.f32 %v362, %v1231
    %v1233 = vpop.f32.mrf.mxu0
    %v1234 = vpop.f32.mrf.mxu0
    %v1235 = vadd.f32 %v363, %v1234
    %v1236 = vpop.f32.mrf.mxu0
    %1237 = vmatprep.mubr.bf16.mxu0 0
    %1238 = vmatmul.mubr.bf16.gmra.mxu0 %v1176
    %v1239 = vpop.f32.mrf.mxu0
    %v1240 = vadd.f32 %v364, %v1239
    %v1241 = vpop.f32.mrf.mxu0
    %v1242 = vpop.f32.mrf.mxu0
    %v1243 = vadd.f32 %v365, %v1242
    %v1244 = vpop.f32.mrf.mxu0
    %1245 = vmatprep.mubr.bf16.mxu0 0
    %1246 = vmatmul.mubr.bf16.gmra.mxu0 %v1177
    %v1247 = vpop.f32.mrf.mxu0
    %v1248 = vadd.f32 %v366, %v1247
    %v1249 = vpop.f32.mrf.mxu0
    %v1250 = vpop.f32.mrf.mxu0
    %v1251 = vadd.f32 %v367, %v1250
    %v1252 = vpop.f32.mrf.mxu0
    %1253 = vmatprep.mubr.bf16.mxu0 0
    %1254 = vmatmul.mubr.bf16.gmra.mxu0 %v1178
    %v1255 = vpop.f32.mrf.mxu0
    %v1256 = vadd.f32 %v368, %v1255
    %v1257 = vpop.f32.mrf.mxu0
    %v1258 = vpop.f32.mrf.mxu0
    %v1259 = vadd.f32 %v369, %v1258
    %v1260 = vpop.f32.mrf.mxu0
    %1261 = vmatprep.mubr.bf16.mxu0 0
    %1262 = vmatmul.mubr.bf16.gmra.mxu0 %v1179
    %v1263 = vpop.f32.mrf.mxu0
    %v1264 = vadd.f32 %v370, %v1263
    %v1265 = vpop.f32.mrf.mxu0
    %v1266 = vpop.f32.mrf.mxu0
    %v1267 = vadd.f32 %v371, %v1266
    %v1268 = vpop.f32.mrf.mxu0
    %1269 = vmatprep.mubr.bf16.mxu0 0
    %1270 = vmatmul.mubr.bf16.gmra.mxu0 %v1180
    %v1271 = vpop.f32.mrf.mxu0
    %v1272 = vadd.f32 %v372, %v1271
    %v1273 = vpop.f32.mrf.mxu0
    %v1274 = vpop.f32.mrf.mxu0
    %v1275 = vadd.f32 %v373, %v1274
    %v1276 = vpop.f32.mrf.mxu0
    %1277 = vdwg.mxu0
    %v1278 = vpack.c.bf16 %v1219, %v1216
    %v1279 = vpack.c.bf16 %v1227, %v1224
    %v1280 = vpack.c.bf16 %v1235, %v1232
    %v1281 = vpack.c.bf16 %v1243, %v1240
    %v1282 = vpack.c.bf16 %v1251, %v1248
    %v1283 = vpack.c.bf16 %v1259, %v1256
    %v1284 = vpack.c.bf16 %v1267, %v1264
    %v1285 = vpack.c.bf16 %v1275, %v1272
    %1286 = vmatprep.subr.bf16.mxu0 0
    %1287 = vmatpush1.bf16.msra.mxu0 %v437
    %1288 = vmatprep.subr.bf16.mxu0 0
    %1289 = vmatpush1.bf16.msra.mxu0 %v436
    %1290 = vmatprep.subr.bf16.mxu0 0
    %1291 = vmatpush1.bf16.msra.mxu0 %v435
    %1292 = vmatprep.subr.bf16.mxu0 0
    %1293 = vmatpush1.bf16.msra.mxu0 %v434
    %1294 = vmatprep.subr.bf16.mxu0 0
    %1295 = vmatpush1.bf16.msra.mxu0 %v433
    %1296 = vmatprep.subr.bf16.mxu0 0
    %1297 = vmatpush1.bf16.msra.mxu0 %v432
    %1298 = vmatprep.subr.bf16.mxu0 0
    %1299 = vmatpush1.bf16.msra.mxu0 %v431
    %1300 = vmatprep.subr.bf16.mxu0 0
    %1301 = vmatpush1.bf16.msra.mxu0 %v430
    %1302 = vmatprep.subr.bf16.mxu0 0
    %1303 = vmatpush2.bf16.msra.mxu0 0
    %1304 = vmatprep.subr.bf16.mxu0 0
    %1305 = vmatpush2.bf16.msra.mxu0 0
    %1306 = vmatprep.subr.bf16.mxu0 0
    %1307 = vmatpush2.bf16.msra.mxu0 0
    %1308 = vmatprep.subr.bf16.mxu0 0
    %1309 = vmatpush2.bf16.msra.mxu0 0
    %1310 = vmatprep.subr.bf16.mxu0 0
    %1311 = vmatpush2.bf16.msra.mxu0 0
    %1312 = vmatprep.subr.bf16.mxu0 0
    %1313 = vmatpush2.bf16.msra.mxu0 0
    %1314 = vmatprep.subr.bf16.mxu0 0
    %1315 = vmatpush2.bf16.msra.mxu0 0
    %1316 = vmatprep.subr.bf16.mxu0 0
    %1317 = vmatpush2.bf16.msra.mxu0 0
    %1318 = vmatprep.mubr.bf16.mxu0 0
    %1319 = vmatmul.mubr.bf16.gmra.mxu0 %v1278
    %v1320 = vpop.f32.mrf.mxu0
    %v1321 = vadd.f32 %v358, %v1320
    %v1322 = vpop.f32.mrf.mxu0
    %v1323 = vpop.f32.mrf.mxu0
    %v1324 = vadd.f32 %v359, %v1323
    %v1325 = vpop.f32.mrf.mxu0
    %1326 = vmatprep.mubr.bf16.mxu0 0
    %1327 = vmatmul.mubr.bf16.gmra.mxu0 %v1279
    %v1328 = vpop.f32.mrf.mxu0
    %v1329 = vadd.f32 %v360, %v1328
    %v1330 = vpop.f32.mrf.mxu0
    %v1331 = vpop.f32.mrf.mxu0
    %v1332 = vadd.f32 %v361, %v1331
    %v1333 = vpop.f32.mrf.mxu0
    %1334 = vmatprep.mubr.bf16.mxu0 0
    %1335 = vmatmul.mubr.bf16.gmra.mxu0 %v1280
    %v1336 = vpop.f32.mrf.mxu0
    %v1337 = vadd.f32 %v362, %v1336
    %v1338 = vpop.f32.mrf.mxu0
    %v1339 = vpop.f32.mrf.mxu0
    %v1340 = vadd.f32 %v363, %v1339
    %v1341 = vpop.f32.mrf.mxu0
    %1342 = vmatprep.mubr.bf16.mxu0 0
    %1343 = vmatmul.mubr.bf16.gmra.mxu0 %v1281
    %v1344 = vpop.f32.mrf.mxu0
    %v1345 = vadd.f32 %v364, %v1344
    %v1346 = vpop.f32.mrf.mxu0
    %v1347 = vpop.f32.mrf.mxu0
    %v1348 = vadd.f32 %v365, %v1347
    %v1349 = vpop.f32.mrf.mxu0
    %1350 = vmatprep.mubr.bf16.mxu0 0
    %1351 = vmatmul.mubr.bf16.gmra.mxu0 %v1282
    %v1352 = vpop.f32.mrf.mxu0
    %v1353 = vadd.f32 %v366, %v1352
    %v1354 = vpop.f32.mrf.mxu0
    %v1355 = vpop.f32.mrf.mxu0
    %v1356 = vadd.f32 %v367, %v1355
    %v1357 = vpop.f32.mrf.mxu0
    %1358 = vmatprep.mubr.bf16.mxu0 0
    %1359 = vmatmul.mubr.bf16.gmra.mxu0 %v1283
    %v1360 = vpop.f32.mrf.mxu0
    %v1361 = vadd.f32 %v368, %v1360
    %v1362 = vpop.f32.mrf.mxu0
    %v1363 = vpop.f32.mrf.mxu0
    %v1364 = vadd.f32 %v369, %v1363
    %v1365 = vpop.f32.mrf.mxu0
    %1366 = vmatprep.mubr.bf16.mxu0 0
    %1367 = vmatmul.mubr.bf16.gmra.mxu0 %v1284
    %v1368 = vpop.f32.mrf.mxu0
    %v1369 = vadd.f32 %v370, %v1368
    %v1370 = vpop.f32.mrf.mxu0
    %v1371 = vpop.f32.mrf.mxu0
    %v1372 = vadd.f32 %v371, %v1371
    %v1373 = vpop.f32.mrf.mxu0
    %1374 = vmatprep.mubr.bf16.mxu0 0
    %1375 = vmatmul.mubr.bf16.gmra.mxu0 %v1285
    %v1376 = vpop.f32.mrf.mxu0
    %v1377 = vadd.f32 %v372, %v1376
    %v1378 = vpop.f32.mrf.mxu0
    %v1379 = vpop.f32.mrf.mxu0
    %v1380 = vadd.f32 %v373, %v1379
    %v1381 = vpop.f32.mrf.mxu0
    %1382 = vdwg.mxu0
    %v1383 = vpack.c.bf16 %v1324, %v1321
    %v1384 = vpack.c.bf16 %v1332, %v1329
    %v1385 = vpack.c.bf16 %v1340, %v1337
    %v1386 = vpack.c.bf16 %v1348, %v1345
    %v1387 = vpack.c.bf16 %v1356, %v1353
    %v1388 = vpack.c.bf16 %v1364, %v1361
    %v1389 = vpack.c.bf16 %v1372, %v1369
    %v1390 = vpack.c.bf16 %v1380, %v1377
    %1391 = vmatprep.subr.bf16.mxu0 0
    %1392 = vmatpush1.bf16.msra.mxu0 %v437
    %1393 = vmatprep.subr.bf16.mxu0 0
    %1394 = vmatpush1.bf16.msra.mxu0 %v436
    %1395 = vmatprep.subr.bf16.mxu0 0
    %1396 = vmatpush1.bf16.msra.mxu0 %v435
    %1397 = vmatprep.subr.bf16.mxu0 0
    %1398 = vmatpush1.bf16.msra.mxu0 %v434
    %1399 = vmatprep.subr.bf16.mxu0 0
    %1400 = vmatpush1.bf16.msra.mxu0 %v433
    %1401 = vmatprep.subr.bf16.mxu0 0
    %1402 = vmatpush1.bf16.msra.mxu0 %v432
    %1403 = vmatprep.subr.bf16.mxu0 0
    %1404 = vmatpush1.bf16.msra.mxu0 %v431
    %1405 = vmatprep.subr.bf16.mxu0 0
    %1406 = vmatpush1.bf16.msra.mxu0 %v430
    %1407 = vmatprep.subr.bf16.mxu0 0
    %1408 = vmatpush2.bf16.msra.mxu0 0
    %1409 = vmatprep.subr.bf16.mxu0 0
    %1410 = vmatpush2.bf16.msra.mxu0 0
    %1411 = vmatprep.subr.bf16.mxu0 0
    %1412 = vmatpush2.bf16.msra.mxu0 0
    %1413 = vmatprep.subr.bf16.mxu0 0
    %1414 = vmatpush2.bf16.msra.mxu0 0
    %1415 = vmatprep.subr.bf16.mxu0 0
    %1416 = vmatpush2.bf16.msra.mxu0 0
    %1417 = vmatprep.subr.bf16.mxu0 0
    %1418 = vmatpush2.bf16.msra.mxu0 0
    %1419 = vmatprep.subr.bf16.mxu0 0
    %1420 = vmatpush2.bf16.msra.mxu0 0
    %1421 = vmatprep.subr.bf16.mxu0 0
    %1422 = vmatpush2.bf16.msra.mxu0 0
    %1423 = vmatprep.mubr.bf16.mxu0 0
    %1424 = vmatmul.mubr.bf16.gmra.mxu0 %v1383
    %v1425 = vpop.f32.mrf.mxu0
    %v1426 = vadd.f32 %v358, %v1425
    %v1427 = vpop.f32.mrf.mxu0
    %v1428 = vpop.f32.mrf.mxu0
    %v1429 = vadd.f32 %v359, %v1428
    %v1430 = vpop.f32.mrf.mxu0
    %1431 = vmatprep.mubr.bf16.mxu0 0
    %1432 = vmatmul.mubr.bf16.gmra.mxu0 %v1384
    %v1433 = vpop.f32.mrf.mxu0
    %v1434 = vadd.f32 %v360, %v1433
    %v1435 = vpop.f32.mrf.mxu0
    %v1436 = vpop.f32.mrf.mxu0
    %v1437 = vadd.f32 %v361, %v1436
    %v1438 = vpop.f32.mrf.mxu0
    %1439 = vmatprep.mubr.bf16.mxu0 0
    %1440 = vmatmul.mubr.bf16.gmra.mxu0 %v1385
    %v1441 = vpop.f32.mrf.mxu0
    %v1442 = vadd.f32 %v362, %v1441
    %v1443 = vpop.f32.mrf.mxu0
    %v1444 = vpop.f32.mrf.mxu0
    %v1445 = vadd.f32 %v363, %v1444
    %v1446 = vpop.f32.mrf.mxu0
    %1447 = vmatprep.mubr.bf16.mxu0 0
    %1448 = vmatmul.mubr.bf16.gmra.mxu0 %v1386
    %v1449 = vpop.f32.mrf.mxu0
    %v1450 = vadd.f32 %v364, %v1449
    %v1451 = vpop.f32.mrf.mxu0
    %v1452 = vpop.f32.mrf.mxu0
    %v1453 = vadd.f32 %v365, %v1452
    %v1454 = vpop.f32.mrf.mxu0
    %1455 = vmatprep.mubr.bf16.mxu0 0
    %1456 = vmatmul.mubr.bf16.gmra.mxu0 %v1387
    %v1457 = vpop.f32.mrf.mxu0
    %v1458 = vadd.f32 %v366, %v1457
    %v1459 = vpop.f32.mrf.mxu0
    %v1460 = vpop.f32.mrf.mxu0
    %v1461 = vadd.f32 %v367, %v1460
    %v1462 = vpop.f32.mrf.mxu0
    %1463 = vmatprep.mubr.bf16.mxu0 0
    %1464 = vmatmul.mubr.bf16.gmra.mxu0 %v1388
    %v1465 = vpop.f32.mrf.mxu0
    %v1466 = vadd.f32 %v368, %v1465
    %v1467 = vpop.f32.mrf.mxu0
    %v1468 = vpop.f32.mrf.mxu0
    %v1469 = vadd.f32 %v369, %v1468
    %v1470 = vpop.f32.mrf.mxu0
    %1471 = vmatprep.mubr.bf16.mxu0 0
    %1472 = vmatmul.mubr.bf16.gmra.mxu0 %v1389
    %v1473 = vpop.f32.mrf.mxu0
    %v1474 = vadd.f32 %v370, %v1473
    %v1475 = vpop.f32.mrf.mxu0
    %v1476 = vpop.f32.mrf.mxu0
    %v1477 = vadd.f32 %v371, %v1476
    %v1478 = vpop.f32.mrf.mxu0
    %1479 = vmatprep.mubr.bf16.mxu0 0
    %1480 = vmatmul.mubr.bf16.gmra.mxu0 %v1390
    %v1481 = vpop.f32.mrf.mxu0
    %v1482 = vadd.f32 %v372, %v1481
    %v1483 = vpop.f32.mrf.mxu0
    %v1484 = vpop.f32.mrf.mxu0
    %v1485 = vadd.f32 %v373, %v1484
    %v1486 = vpop.f32.mrf.mxu0
    %1487 = vdwg.mxu0
    %v1488 = vmax.f32 %v1426, 0.0
    %v1489 = vmax.f32 %v1429, 0.0
    %v1490 = vmax.f32 %v1434, 0.0
    %v1491 = vmax.f32 %v1437, 0.0
    %v1492 = vmax.f32 %v1442, 0.0
    %v1493 = vmax.f32 %v1445, 0.0
    %v1494 = vmax.f32 %v1450, 0.0
    %v1495 = vmax.f32 %v1453, 0.0
    %v1496 = vmax.f32 %v1458, 0.0
    %v1497 = vmax.f32 %v1461, 0.0
    %v1498 = vmax.f32 %v1466, 0.0
    %v1499 = vmax.f32 %v1469, 0.0
    %v1500 = vmax.f32 %v1474, 0.0
    %v1501 = vmax.f32 %v1477, 0.0
    %v1502 = vmax.f32 %v1482, 0.0
    %v1503 = vmax.f32 %v1485, 0.0
    %v1504 = vpack.c.bf16 %v1489, %v1488
    %v1505 = vpack.c.bf16 %v1491, %v1490
    %v1506 = vpack.c.bf16 %v1493, %v1492
    %v1507 = vpack.c.bf16 %v1495, %v1494
    %v1508 = vpack.c.bf16 %v1497, %v1496
    %v1509 = vpack.c.bf16 %v1499, %v1498
    %v1510 = vpack.c.bf16 %v1501, %v1500
    %v1511 = vpack.c.bf16 %v1503, %v1502
    %v1512 = vld [vmem:[%s4] sm:$0xf]
    %v1513 = vld [vmem:[%s4 + $0x4] sm:$0xf]
    %v1514 = vld [vmem:[%s4 + $0x8] sm:$0xf]
    %v1515 = vld [vmem:[%s4 + $0xc] sm:$0xf]
    %v1516 = vld [vmem:[%s4 + $0x10] sm:$0xf]
    %v1517 = vld [vmem:[%s4 + $0x14] sm:$0xf]
    %v1518 = vld [vmem:[%s4 + $0x18] sm:$0xf]
    %v1519 = vld [vmem:[%s4 + $0x1c] sm:$0xf]
    %v1520 = vld [vmem:[%s4 + $0x20] sm:$0xf]
    %v1521 = vld [vmem:[%s4 + $0x24] sm:$0xf]
    %v1522 = vld [vmem:[%s4 + $0x28] sm:$0xf]
    %v1523 = vld [vmem:[%s4 + $0x2c] sm:$0xf]
    %v1524 = vld [vmem:[%s4 + $0x30] sm:$0xf]
    %v1525 = vld [vmem:[%s4 + $0x34] sm:$0xf]
    %v1526 = vld [vmem:[%s4 + $0x38] sm:$0xf]
    %v1527 = vld [vmem:[%s4 + $0x3c] sm:$0xf]
    %v1528 = vld [vmem:[%s5] sm:$0xff]
    %v1529 = vld [vmem:[%s5 + $0x8] sm:$0xff]
    %v1530 = vld [vmem:[%s5 + $0x10] sm:$0xff]
    %v1531 = vld [vmem:[%s5 + $0x18] sm:$0xff]
    %v1532 = vld [vmem:[%s5 + $0x20] sm:$0xff]
    %v1533 = vld [vmem:[%s5 + $0x28] sm:$0xff]
    %v1534 = vld [vmem:[%s5 + $0x30] sm:$0xff]
    %v1535 = vld [vmem:[%s5 + $0x38] sm:$0xff]
    %v1536 = vld [vmem:[%s5 + $0x40] sm:$0xff]
    %v1537 = vld [vmem:[%s5 + $0x48] sm:$0xff]
    %v1538 = vld [vmem:[%s5 + $0x50] sm:$0xff]
    %v1539 = vld [vmem:[%s5 + $0x58] sm:$0xff]
    %v1540 = vld [vmem:[%s5 + $0x60] sm:$0xff]
    %v1541 = vld [vmem:[%s5 + $0x68] sm:$0xff]
    %v1542 = vld [vmem:[%s5 + $0x70] sm:$0xff]
    %v1543 = vld [vmem:[%s5 + $0x78] sm:$0xff]
    %1545 = vset.pattern.permute.xlu0 0
    %1546 = vperm.xlu0 %1545, %v1528
    %v1547 = vpop.permute.xlu0 %1546
    %1550 = vset.pattern.permute.xlu0 0
    %1551 = vperm.xlu0 %1550, %v1529
    %v1552 = vpop.permute.xlu0 %1551
    %1555 = vset.pattern.permute.xlu0 0
    %1556 = vperm.xlu0 %1555, %v1530
    %v1557 = vpop.permute.xlu0 %1556
    %1560 = vset.pattern.permute.xlu0 0
    %1561 = vperm.xlu0 %1560, %v1531
    %v1562 = vpop.permute.xlu0 %1561
    %1565 = vset.pattern.permute.xlu0 0
    %1566 = vperm.xlu0 %1565, %v1532
    %v1567 = vpop.permute.xlu0 %1566
    %1570 = vset.pattern.permute.xlu0 0
    %1571 = vperm.xlu0 %1570, %v1533
    %v1572 = vpop.permute.xlu0 %1571
    %1575 = vset.pattern.permute.xlu0 0
    %1576 = vperm.xlu0 %1575, %v1534
    %v1577 = vpop.permute.xlu0 %1576
    %1580 = vset.pattern.permute.xlu0 0
    %1581 = vperm.xlu0 %1580, %v1535
    %v1582 = vpop.permute.xlu0 %1581
    %1585 = vset.pattern.permute.xlu0 0
    %1586 = vperm.xlu0 %1585, %v1536
    %v1587 = vpop.permute.xlu0 %1586
    %1590 = vset.pattern.permute.xlu0 0
    %1591 = vperm.xlu0 %1590, %v1537
    %v1592 = vpop.permute.xlu0 %1591
    %1595 = vset.pattern.permute.xlu0 0
    %1596 = vperm.xlu0 %1595, %v1538
    %v1597 = vpop.permute.xlu0 %1596
    %1600 = vset.pattern.permute.xlu0 0
    %1601 = vperm.xlu0 %1600, %v1539
    %v1602 = vpop.permute.xlu0 %1601
    %1605 = vset.pattern.permute.xlu0 0
    %1606 = vperm.xlu0 %1605, %v1540
    %v1607 = vpop.permute.xlu0 %1606
    %1610 = vset.pattern.permute.xlu0 0
    %1611 = vperm.xlu0 %1610, %v1541
    %v1612 = vpop.permute.xlu0 %1611
    %1615 = vset.pattern.permute.xlu0 0
    %1616 = vperm.xlu0 %1615, %v1542
    %v1617 = vpop.permute.xlu0 %1616
    %1620 = vset.pattern.permute.xlu0 0
    %1621 = vperm.xlu0 %1620, %v1543
    %v1622 = vpop.permute.xlu0 %1621
    %v1640 = vunpack.c.l.b16 %v1512
    %v1641 = vunpack.c.l.b16 %v1513
    %v1642 = vunpack.c.l.b16 %v1514
    %v1643 = vunpack.c.l.b16 %v1515
    %v1644 = vunpack.c.l.b16 %v1516
    %v1645 = vunpack.c.l.b16 %v1517
    %v1646 = vunpack.c.l.b16 %v1518
    %v1647 = vunpack.c.l.b16 %v1519
    %v1648 = vunpack.c.l.b16 %v1520
    %v1649 = vunpack.c.l.b16 %v1521
    %v1650 = vunpack.c.l.b16 %v1522
    %v1651 = vunpack.c.l.b16 %v1523
    %v1652 = vunpack.c.l.b16 %v1524
    %v1653 = vunpack.c.l.b16 %v1525
    %v1654 = vunpack.c.l.b16 %v1526
    %v1655 = vunpack.c.l.b16 %v1527
    %v1656 = vpack.c.b16 %v1641, %v1640
    %v1657 = vpack.c.b16 %v1643, %v1642
    %v1658 = vpack.c.b16 %v1645, %v1644
    %v1659 = vpack.c.b16 %v1647, %v1646
    %v1660 = vpack.c.b16 %v1649, %v1648
    %v1661 = vpack.c.b16 %v1651, %v1650
    %v1662 = vpack.c.b16 %v1653, %v1652
    %v1663 = vpack.c.b16 %v1655, %v1654
    %1672 = vmatprep.subr.bf16.mxu0 0
    %1673 = vmatpush1.bf16.msra.mxu0 %v1511
    %1674 = vmatprep.subr.bf16.mxu0 0
    %1675 = vmatpush1.bf16.msra.mxu0 %v1510
    %1676 = vmatprep.subr.bf16.mxu0 0
    %1677 = vmatpush1.bf16.msra.mxu0 %v1509
    %1678 = vmatprep.subr.bf16.mxu0 0
    %1679 = vmatpush1.bf16.msra.mxu0 %v1508
    %1680 = vmatprep.subr.bf16.mxu0 0
    %1681 = vmatpush1.bf16.msra.mxu0 %v1507
    %1682 = vmatprep.subr.bf16.mxu0 0
    %1683 = vmatpush1.bf16.msra.mxu0 %v1506
    %1684 = vmatprep.subr.bf16.mxu0 0
    %1685 = vmatpush1.bf16.msra.mxu0 %v1505
    %1686 = vmatprep.subr.bf16.mxu0 0
    %1687 = vmatpush1.bf16.msra.mxu0 %v1504
    %1688 = vmatprep.subr.bf16.mxu0 0
    %1689 = vmatpush2.bf16.msra.mxu0 0
    %1690 = vmatprep.subr.bf16.mxu0 0
    %1691 = vmatpush2.bf16.msra.mxu0 0
    %1692 = vmatprep.subr.bf16.mxu0 0
    %1693 = vmatpush2.bf16.msra.mxu0 0
    %1694 = vmatprep.subr.bf16.mxu0 0
    %1695 = vmatpush2.bf16.msra.mxu0 0
    %1696 = vmatprep.subr.bf16.mxu0 0
    %1697 = vmatpush2.bf16.msra.mxu0 0
    %1698 = vmatprep.subr.bf16.mxu0 0
    %1699 = vmatpush2.bf16.msra.mxu0 0
    %1700 = vmatprep.subr.bf16.mxu0 0
    %1701 = vmatpush2.bf16.msra.mxu0 0
    %1702 = vmatprep.subr.bf16.mxu0 0
    %1703 = vmatpush2.bf16.msra.mxu0 0
    %1704 = vmatprep.mubr.bf16.mxu0 0
    %1705 = vmatmul.mubr.bf16.gmra.mxu0 %v1656
    %v1706 = vpop.f32.mrf.mxu0
    %v1707 = vadd.f32 %v1547, %v1706
    %v1708 = vpop.f32.mrf.mxu0
    %v1709 = vpop.f32.mrf.mxu0
    %v1710 = vadd.f32 %v1552, %v1709
    %v1711 = vpop.f32.mrf.mxu0
    %1712 = vmatprep.mubr.bf16.mxu0 0
    %1713 = vmatmul.mubr.bf16.gmra.mxu0 %v1657
    %v1714 = vpop.f32.mrf.mxu0
    %v1715 = vadd.f32 %v1557, %v1714
    %v1716 = vpop.f32.mrf.mxu0
    %v1717 = vpop.f32.mrf.mxu0
    %v1718 = vadd.f32 %v1562, %v1717
    %v1719 = vpop.f32.mrf.mxu0
    %1720 = vmatprep.mubr.bf16.mxu0 0
    %1721 = vmatmul.mubr.bf16.gmra.mxu0 %v1658
    %v1722 = vpop.f32.mrf.mxu0
    %v1723 = vadd.f32 %v1567, %v1722
    %v1724 = vpop.f32.mrf.mxu0
    %v1725 = vpop.f32.mrf.mxu0
    %v1726 = vadd.f32 %v1572, %v1725
    %v1727 = vpop.f32.mrf.mxu0
    %1728 = vmatprep.mubr.bf16.mxu0 0
    %1729 = vmatmul.mubr.bf16.gmra.mxu0 %v1659
    %v1730 = vpop.f32.mrf.mxu0
    %v1731 = vadd.f32 %v1577, %v1730
    %v1732 = vpop.f32.mrf.mxu0
    %v1733 = vpop.f32.mrf.mxu0
    %v1734 = vadd.f32 %v1582, %v1733
    %v1735 = vpop.f32.mrf.mxu0
    %1736 = vmatprep.mubr.bf16.mxu0 0
    %1737 = vmatmul.mubr.bf16.gmra.mxu0 %v1660
    %v1738 = vpop.f32.mrf.mxu0
    %v1739 = vadd.f32 %v1587, %v1738
    %v1740 = vpop.f32.mrf.mxu0
    %v1741 = vpop.f32.mrf.mxu0
    %v1742 = vadd.f32 %v1592, %v1741
    %v1743 = vpop.f32.mrf.mxu0
    %1744 = vmatprep.mubr.bf16.mxu0 0
    %1745 = vmatmul.mubr.bf16.gmra.mxu0 %v1661
    %v1746 = vpop.f32.mrf.mxu0
    %v1747 = vadd.f32 %v1597, %v1746
    %v1748 = vpop.f32.mrf.mxu0
    %v1749 = vpop.f32.mrf.mxu0
    %v1750 = vadd.f32 %v1602, %v1749
    %v1751 = vpop.f32.mrf.mxu0
    %1752 = vmatprep.mubr.bf16.mxu0 0
    %1753 = vmatmul.mubr.bf16.gmra.mxu0 %v1662
    %v1754 = vpop.f32.mrf.mxu0
    %v1755 = vadd.f32 %v1607, %v1754
    %v1756 = vpop.f32.mrf.mxu0
    %v1757 = vpop.f32.mrf.mxu0
    %v1758 = vadd.f32 %v1612, %v1757
    %v1759 = vpop.f32.mrf.mxu0
    %1760 = vmatprep.mubr.bf16.mxu0 0
    %1761 = vmatmul.mubr.bf16.gmra.mxu0 %v1663
    %v1762 = vpop.f32.mrf.mxu0
    %v1763 = vadd.f32 %v1617, %v1762
    %v1764 = vpop.f32.mrf.mxu0
    %v1765 = vpop.f32.mrf.mxu0
    %v1766 = vadd.f32 %v1622, %v1765
    %v1767 = vpop.f32.mrf.mxu0
    %1768 = vdwg.mxu0
    %v1769 = vmul.f32 %v1707, 0.1
    %v1770 = vmul.f32 %v1710, 0.1
    %v1771 = vmul.f32 %v1715, 0.1
    %v1772 = vmul.f32 %v1718, 0.1
    %v1773 = vmul.f32 %v1723, 0.1
    %v1774 = vmul.f32 %v1726, 0.1
    %v1775 = vmul.f32 %v1731, 0.1
    %v1776 = vmul.f32 %v1734, 0.1
    %v1777 = vmul.f32 %v1739, 0.1
    %v1778 = vmul.f32 %v1742, 0.1
    %v1779 = vmul.f32 %v1747, 0.1
    %v1780 = vmul.f32 %v1750, 0.1
    %v1781 = vmul.f32 %v1755, 0.1
    %v1782 = vmul.f32 %v1758, 0.1
    %v1783 = vmul.f32 %v1763, 0.1
    %v1784 = vmul.f32 %v1766, 0.1
    %v1785 = vpack.c.bf16 %v1710, %v1707
    %v1786 = vpack.c.bf16 %v1718, %v1715
    %v1787 = vpack.c.bf16 %v1726, %v1723
    %v1788 = vpack.c.bf16 %v1734, %v1731
    %v1789 = vpack.c.bf16 %v1742, %v1739
    %v1790 = vpack.c.bf16 %v1750, %v1747
    %v1791 = vpack.c.bf16 %v1758, %v1755
    %v1792 = vpack.c.bf16 %v1766, %v1763
    %1793 = vmatprep.subr.bf16.mxu0 0
    %1794 = vmatpush1.bf16.msra.mxu0 %v437
    %1795 = vmatprep.subr.bf16.mxu0 0
    %1796 = vmatpush1.bf16.msra.mxu0 %v436
    %1797 = vmatprep.subr.bf16.mxu0 0
    %1798 = vmatpush1.bf16.msra.mxu0 %v435
    %1799 = vmatprep.subr.bf16.mxu0 0
    %1800 = vmatpush1.bf16.msra.mxu0 %v434
    %1801 = vmatprep.subr.bf16.mxu0 0
    %1802 = vmatpush1.bf16.msra.mxu0 %v433
    %1803 = vmatprep.subr.bf16.mxu0 0
    %1804 = vmatpush1.bf16.msra.mxu0 %v432
    %1805 = vmatprep.subr.bf16.mxu0 0
    %1806 = vmatpush1.bf16.msra.mxu0 %v431
    %1807 = vmatprep.subr.bf16.mxu0 0
    %1808 = vmatpush1.bf16.msra.mxu0 %v430
    %1809 = vmatprep.subr.bf16.mxu0 0
    %1810 = vmatpush2.bf16.msra.mxu0 0
    %1811 = vmatprep.subr.bf16.mxu0 0
    %1812 = vmatpush2.bf16.msra.mxu0 0
    %1813 = vmatprep.subr.bf16.mxu0 0
    %1814 = vmatpush2.bf16.msra.mxu0 0
    %1815 = vmatprep.subr.bf16.mxu0 0
    %1816 = vmatpush2.bf16.msra.mxu0 0
    %1817 = vmatprep.subr.bf16.mxu0 0
    %1818 = vmatpush2.bf16.msra.mxu0 0
    %1819 = vmatprep.subr.bf16.mxu0 0
    %1820 = vmatpush2.bf16.msra.mxu0 0
    %1821 = vmatprep.subr.bf16.mxu0 0
    %1822 = vmatpush2.bf16.msra.mxu0 0
    %1823 = vmatprep.subr.bf16.mxu0 0
    %1824 = vmatpush2.bf16.msra.mxu0 0
    %1825 = vmatprep.mubr.bf16.mxu0 0
    %1826 = vmatmul.mubr.bf16.gmra.mxu0 %v1785
    %v1827 = vpop.f32.mrf.mxu0
    %v1828 = vadd.f32 %v1769, %v1827
    %v1829 = vpop.f32.mrf.mxu0
    %v1830 = vpop.f32.mrf.mxu0
    %v1831 = vadd.f32 %v1770, %v1830
    %v1832 = vpop.f32.mrf.mxu0
    %1833 = vmatprep.mubr.bf16.mxu0 0
    %1834 = vmatmul.mubr.bf16.gmra.mxu0 %v1786
    %v1835 = vpop.f32.mrf.mxu0
    %v1836 = vadd.f32 %v1771, %v1835
    %v1837 = vpop.f32.mrf.mxu0
    %v1838 = vpop.f32.mrf.mxu0
    %v1839 = vadd.f32 %v1772, %v1838
    %v1840 = vpop.f32.mrf.mxu0
    %1841 = vmatprep.mubr.bf16.mxu0 0
    %1842 = vmatmul.mubr.bf16.gmra.mxu0 %v1787
    %v1843 = vpop.f32.mrf.mxu0
    %v1844 = vadd.f32 %v1773, %v1843
    %v1845 = vpop.f32.mrf.mxu0
    %v1846 = vpop.f32.mrf.mxu0
    %v1847 = vadd.f32 %v1774, %v1846
    %v1848 = vpop.f32.mrf.mxu0
    %1849 = vmatprep.mubr.bf16.mxu0 0
    %1850 = vmatmul.mubr.bf16.gmra.mxu0 %v1788
    %v1851 = vpop.f32.mrf.mxu0
    %v1852 = vadd.f32 %v1775, %v1851
    %v1853 = vpop.f32.mrf.mxu0
    %v1854 = vpop.f32.mrf.mxu0
    %v1855 = vadd.f32 %v1776, %v1854
    %v1856 = vpop.f32.mrf.mxu0
    %1857 = vmatprep.mubr.bf16.mxu0 0
    %1858 = vmatmul.mubr.bf16.gmra.mxu0 %v1789
    %v1859 = vpop.f32.mrf.mxu0
    %v1860 = vadd.f32 %v1777, %v1859
    %v1861 = vpop.f32.mrf.mxu0
    %v1862 = vpop.f32.mrf.mxu0
    %v1863 = vadd.f32 %v1778, %v1862
    %v1864 = vpop.f32.mrf.mxu0
    %1865 = vmatprep.mubr.bf16.mxu0 0
    %1866 = vmatmul.mubr.bf16.gmra.mxu0 %v1790
    %v1867 = vpop.f32.mrf.mxu0
    %v1868 = vadd.f32 %v1779, %v1867
    %v1869 = vpop.f32.mrf.mxu0
    %v1870 = vpop.f32.mrf.mxu0
    %v1871 = vadd.f32 %v1780, %v1870
    %v1872 = vpop.f32.mrf.mxu0
    %1873 = vmatprep.mubr.bf16.mxu0 0
    %1874 = vmatmul.mubr.bf16.gmra.mxu0 %v1791
    %v1875 = vpop.f32.mrf.mxu0
    %v1876 = vadd.f32 %v1781, %v1875
    %v1877 = vpop.f32.mrf.mxu0
    %v1878 = vpop.f32.mrf.mxu0
    %v1879 = vadd.f32 %v1782, %v1878
    %v1880 = vpop.f32.mrf.mxu0
    %1881 = vmatprep.mubr.bf16.mxu0 0
    %1882 = vmatmul.mubr.bf16.gmra.mxu0 %v1792
    %v1883 = vpop.f32.mrf.mxu0
    %v1884 = vadd.f32 %v1783, %v1883
    %v1885 = vpop.f32.mrf.mxu0
    %v1886 = vpop.f32.mrf.mxu0
    %v1887 = vadd.f32 %v1784, %v1886
    %v1888 = vpop.f32.mrf.mxu0
    %1889 = vdwg.mxu0
    %v1890 = vpack.c.bf16 %v1831, %v1828
    %v1891 = vpack.c.bf16 %v1839, %v1836
    %v1892 = vpack.c.bf16 %v1847, %v1844
    %v1893 = vpack.c.bf16 %v1855, %v1852
    %v1894 = vpack.c.bf16 %v1863, %v1860
    %v1895 = vpack.c.bf16 %v1871, %v1868
    %v1896 = vpack.c.bf16 %v1879, %v1876
    %v1897 = vpack.c.bf16 %v1887, %v1884
    %1898 = vmatprep.subr.bf16.mxu0 0
    %1899 = vmatpush1.bf16.msra.mxu0 %v437
    %1900 = vmatprep.subr.bf16.mxu0 0
    %1901 = vmatpush1.bf16.msra.mxu0 %v436
    %1902 = vmatprep.subr.bf16.mxu0 0
    %1903 = vmatpush1.bf16.msra.mxu0 %v435
    %1904 = vmatprep.subr.bf16.mxu0 0
    %1905 = vmatpush1.bf16.msra.mxu0 %v434
    %1906 = vmatprep.subr.bf16.mxu0 0
    %1907 = vmatpush1.bf16.msra.mxu0 %v433
    %1908 = vmatprep.subr.bf16.mxu0 0
    %1909 = vmatpush1.bf16.msra.mxu0 %v432
    %1910 = vmatprep.subr.bf16.mxu0 0
    %1911 = vmatpush1.bf16.msra.mxu0 %v431
    %1912 = vmatprep.subr.bf16.mxu0 0
    %1913 = vmatpush1.bf16.msra.mxu0 %v430
    %1914 = vmatprep.subr.bf16.mxu0 0
    %1915 = vmatpush2.bf16.msra.mxu0 0
    %1916 = vmatprep.subr.bf16.mxu0 0
    %1917 = vmatpush2.bf16.msra.mxu0 0
    %1918 = vmatprep.subr.bf16.mxu0 0
    %1919 = vmatpush2.bf16.msra.mxu0 0
    %1920 = vmatprep.subr.bf16.mxu0 0
    %1921 = vmatpush2.bf16.msra.mxu0 0
    %1922 = vmatprep.subr.bf16.mxu0 0
    %1923 = vmatpush2.bf16.msra.mxu0 0
    %1924 = vmatprep.subr.bf16.mxu0 0
    %1925 = vmatpush2.bf16.msra.mxu0 0
    %1926 = vmatprep.subr.bf16.mxu0 0
    %1927 = vmatpush2.bf16.msra.mxu0 0
    %1928 = vmatprep.subr.bf16.mxu0 0
    %1929 = vmatpush2.bf16.msra.mxu0 0
    %1930 = vmatprep.mubr.bf16.mxu0 0
    %1931 = vmatmul.mubr.bf16.gmra.mxu0 %v1890
    %v1932 = vpop.f32.mrf.mxu0
    %v1933 = vadd.f32 %v1769, %v1932
    %v1934 = vpop.f32.mrf.mxu0
    %v1935 = vpop.f32.mrf.mxu0
    %v1936 = vadd.f32 %v1770, %v1935
    %v1937 = vpop.f32.mrf.mxu0
    %1938 = vmatprep.mubr.bf16.mxu0 0
    %1939 = vmatmul.mubr.bf16.gmra.mxu0 %v1891
    %v1940 = vpop.f32.mrf.mxu0
    %v1941 = vadd.f32 %v1771, %v1940
    %v1942 = vpop.f32.mrf.mxu0
    %v1943 = vpop.f32.mrf.mxu0
    %v1944 = vadd.f32 %v1772, %v1943
    %v1945 = vpop.f32.mrf.mxu0
    %1946 = vmatprep.mubr.bf16.mxu0 0
    %1947 = vmatmul.mubr.bf16.gmra.mxu0 %v1892
    %v1948 = vpop.f32.mrf.mxu0
    %v1949 = vadd.f32 %v1773, %v1948
    %v1950 = vpop.f32.mrf.mxu0
    %v1951 = vpop.f32.mrf.mxu0
    %v1952 = vadd.f32 %v1774, %v1951
    %v1953 = vpop.f32.mrf.mxu0
    %1954 = vmatprep.mubr.bf16.mxu0 0
    %1955 = vmatmul.mubr.bf16.gmra.mxu0 %v1893
    %v1956 = vpop.f32.mrf.mxu0
    %v1957 = vadd.f32 %v1775, %v1956
    %v1958 = vpop.f32.mrf.mxu0
    %v1959 = vpop.f32.mrf.mxu0
    %v1960 = vadd.f32 %v1776, %v1959
    %v1961 = vpop.f32.mrf.mxu0
    %1962 = vmatprep.mubr.bf16.mxu0 0
    %1963 = vmatmul.mubr.bf16.gmra.mxu0 %v1894
    %v1964 = vpop.f32.mrf.mxu0
    %v1965 = vadd.f32 %v1777, %v1964
    %v1966 = vpop.f32.mrf.mxu0
    %v1967 = vpop.f32.mrf.mxu0
    %v1968 = vadd.f32 %v1778, %v1967
    %v1969 = vpop.f32.mrf.mxu0
    %1970 = vmatprep.mubr.bf16.mxu0 0
    %1971 = vmatmul.mubr.bf16.gmra.mxu0 %v1895
    %v1972 = vpop.f32.mrf.mxu0
    %v1973 = vadd.f32 %v1779, %v1972
    %v1974 = vpop.f32.mrf.mxu0
    %v1975 = vpop.f32.mrf.mxu0
    %v1976 = vadd.f32 %v1780, %v1975
    %v1977 = vpop.f32.mrf.mxu0
    %1978 = vmatprep.mubr.bf16.mxu0 0
    %1979 = vmatmul.mubr.bf16.gmra.mxu0 %v1896
    %v1980 = vpop.f32.mrf.mxu0
    %v1981 = vadd.f32 %v1781, %v1980
    %v1982 = vpop.f32.mrf.mxu0
    %v1983 = vpop.f32.mrf.mxu0
    %v1984 = vadd.f32 %v1782, %v1983
    %v1985 = vpop.f32.mrf.mxu0
    %1986 = vmatprep.mubr.bf16.mxu0 0
    %1987 = vmatmul.mubr.bf16.gmra.mxu0 %v1897
    %v1988 = vpop.f32.mrf.mxu0
    %v1989 = vadd.f32 %v1783, %v1988
    %v1990 = vpop.f32.mrf.mxu0
    %v1991 = vpop.f32.mrf.mxu0
    %v1992 = vadd.f32 %v1784, %v1991
    %v1993 = vpop.f32.mrf.mxu0
    %1994 = vdwg.mxu0
    %v1995 = vpack.c.bf16 %v1936, %v1933
    %v1996 = vpack.c.bf16 %v1944, %v1941
    %v1997 = vpack.c.bf16 %v1952, %v1949
    %v1998 = vpack.c.bf16 %v1960, %v1957
    %v1999 = vpack.c.bf16 %v1968, %v1965
    %v2000 = vpack.c.bf16 %v1976, %v1973
    %v2001 = vpack.c.bf16 %v1984, %v1981
    %v2002 = vpack.c.bf16 %v1992, %v1989
    %2003 = vmatprep.subr.bf16.mxu0 0
    %2004 = vmatpush1.bf16.msra.mxu0 %v437
    %2005 = vmatprep.subr.bf16.mxu0 0
    %2006 = vmatpush1.bf16.msra.mxu0 %v436
    %2007 = vmatprep.subr.bf16.mxu0 0
    %2008 = vmatpush1.bf16.msra.mxu0 %v435
    %2009 = vmatprep.subr.bf16.mxu0 0
    %2010 = vmatpush1.bf16.msra.mxu0 %v434
    %2011 = vmatprep.subr.bf16.mxu0 0
    %2012 = vmatpush1.bf16.msra.mxu0 %v433
    %2013 = vmatprep.subr.bf16.mxu0 0
    %2014 = vmatpush1.bf16.msra.mxu0 %v432
    %2015 = vmatprep.subr.bf16.mxu0 0
    %2016 = vmatpush1.bf16.msra.mxu0 %v431
    %2017 = vmatprep.subr.bf16.mxu0 0
    %2018 = vmatpush1.bf16.msra.mxu0 %v430
    %2019 = vmatprep.subr.bf16.mxu0 0
    %2020 = vmatpush2.bf16.msra.mxu0 0
    %2021 = vmatprep.subr.bf16.mxu0 0
    %2022 = vmatpush2.bf16.msra.mxu0 0
    %2023 = vmatprep.subr.bf16.mxu0 0
    %2024 = vmatpush2.bf16.msra.mxu0 0
    %2025 = vmatprep.subr.bf16.mxu0 0
    %2026 = vmatpush2.bf16.msra.mxu0 0
    %2027 = vmatprep.subr.bf16.mxu0 0
    %2028 = vmatpush2.bf16.msra.mxu0 0
    %2029 = vmatprep.subr.bf16.mxu0 0
    %2030 = vmatpush2.bf16.msra.mxu0 0
    %2031 = vmatprep.subr.bf16.mxu0 0
    %2032 = vmatpush2.bf16.msra.mxu0 0
    %2033 = vmatprep.subr.bf16.mxu0 0
    %2034 = vmatpush2.bf16.msra.mxu0 0
    %2035 = vmatprep.mubr.bf16.mxu0 0
    %2036 = vmatmul.mubr.bf16.gmra.mxu0 %v1995
    %v2037 = vpop.f32.mrf.mxu0
    %v2038 = vadd.f32 %v1769, %v2037
    %v2039 = vpop.f32.mrf.mxu0
    %v2040 = vpop.f32.mrf.mxu0
    %v2041 = vadd.f32 %v1770, %v2040
    %v2042 = vpop.f32.mrf.mxu0
    %2043 = vmatprep.mubr.bf16.mxu0 0
    %2044 = vmatmul.mubr.bf16.gmra.mxu0 %v1996
    %v2045 = vpop.f32.mrf.mxu0
    %v2046 = vadd.f32 %v1771, %v2045
    %v2047 = vpop.f32.mrf.mxu0
    %v2048 = vpop.f32.mrf.mxu0
    %v2049 = vadd.f32 %v1772, %v2048
    %v2050 = vpop.f32.mrf.mxu0
    %2051 = vmatprep.mubr.bf16.mxu0 0
    %2052 = vmatmul.mubr.bf16.gmra.mxu0 %v1997
    %v2053 = vpop.f32.mrf.mxu0
    %v2054 = vadd.f32 %v1773, %v2053
    %v2055 = vpop.f32.mrf.mxu0
    %v2056 = vpop.f32.mrf.mxu0
    %v2057 = vadd.f32 %v1774, %v2056
    %v2058 = vpop.f32.mrf.mxu0
    %2059 = vmatprep.mubr.bf16.mxu0 0
    %2060 = vmatmul.mubr.bf16.gmra.mxu0 %v1998
    %v2061 = vpop.f32.mrf.mxu0
    %v2062 = vadd.f32 %v1775, %v2061
    %v2063 = vpop.f32.mrf.mxu0
    %v2064 = vpop.f32.mrf.mxu0
    %v2065 = vadd.f32 %v1776, %v2064
    %v2066 = vpop.f32.mrf.mxu0
    %2067 = vmatprep.mubr.bf16.mxu0 0
    %2068 = vmatmul.mubr.bf16.gmra.mxu0 %v1999
    %v2069 = vpop.f32.mrf.mxu0
    %v2070 = vadd.f32 %v1777, %v2069
    %v2071 = vpop.f32.mrf.mxu0
    %v2072 = vpop.f32.mrf.mxu0
    %v2073 = vadd.f32 %v1778, %v2072
    %v2074 = vpop.f32.mrf.mxu0
    %2075 = vmatprep.mubr.bf16.mxu0 0
    %2076 = vmatmul.mubr.bf16.gmra.mxu0 %v2000
    %v2077 = vpop.f32.mrf.mxu0
    %v2078 = vadd.f32 %v1779, %v2077
    %v2079 = vpop.f32.mrf.mxu0
    %v2080 = vpop.f32.mrf.mxu0
    %v2081 = vadd.f32 %v1780, %v2080
    %v2082 = vpop.f32.mrf.mxu0
    %2083 = vmatprep.mubr.bf16.mxu0 0
    %2084 = vmatmul.mubr.bf16.gmra.mxu0 %v2001
    %v2085 = vpop.f32.mrf.mxu0
    %v2086 = vadd.f32 %v1781, %v2085
    %v2087 = vpop.f32.mrf.mxu0
    %v2088 = vpop.f32.mrf.mxu0
    %v2089 = vadd.f32 %v1782, %v2088
    %v2090 = vpop.f32.mrf.mxu0
    %2091 = vmatprep.mubr.bf16.mxu0 0
    %2092 = vmatmul.mubr.bf16.gmra.mxu0 %v2002
    %v2093 = vpop.f32.mrf.mxu0
    %v2094 = vadd.f32 %v1783, %v2093
    %v2095 = vpop.f32.mrf.mxu0
    %v2096 = vpop.f32.mrf.mxu0
    %v2097 = vadd.f32 %v1784, %v2096
    %v2098 = vpop.f32.mrf.mxu0
    %2099 = vdwg.mxu0
    %v2100 = vpack.c.bf16 %v2041, %v2038
    %v2101 = vpack.c.bf16 %v2049, %v2046
    %v2102 = vpack.c.bf16 %v2057, %v2054
    %v2103 = vpack.c.bf16 %v2065, %v2062
    %v2104 = vpack.c.bf16 %v2073, %v2070
    %v2105 = vpack.c.bf16 %v2081, %v2078
    %v2106 = vpack.c.bf16 %v2089, %v2086
    %v2107 = vpack.c.bf16 %v2097, %v2094
    %2108 = vmatprep.subr.bf16.mxu0 0
    %2109 = vmatpush1.bf16.msra.mxu0 %v437
    %2110 = vmatprep.subr.bf16.mxu0 0
    %2111 = vmatpush1.bf16.msra.mxu0 %v436
    %2112 = vmatprep.subr.bf16.mxu0 0
    %2113 = vmatpush1.bf16.msra.mxu0 %v435
    %2114 = vmatprep.subr.bf16.mxu0 0
    %2115 = vmatpush1.bf16.msra.mxu0 %v434
    %2116 = vmatprep.subr.bf16.mxu0 0
    %2117 = vmatpush1.bf16.msra.mxu0 %v433
    %2118 = vmatprep.subr.bf16.mxu0 0
    %2119 = vmatpush1.bf16.msra.mxu0 %v432
    %2120 = vmatprep.subr.bf16.mxu0 0
    %2121 = vmatpush1.bf16.msra.mxu0 %v431
    %2122 = vmatprep.subr.bf16.mxu0 0
    %2123 = vmatpush1.bf16.msra.mxu0 %v430
    %2124 = vmatprep.subr.bf16.mxu0 0
    %2125 = vmatpush2.bf16.msra.mxu0 0
    %2126 = vmatprep.subr.bf16.mxu0 0
    %2127 = vmatpush2.bf16.msra.mxu0 0
    %2128 = vmatprep.subr.bf16.mxu0 0
    %2129 = vmatpush2.bf16.msra.mxu0 0
    %2130 = vmatprep.subr.bf16.mxu0 0
    %2131 = vmatpush2.bf16.msra.mxu0 0
    %2132 = vmatprep.subr.bf16.mxu0 0
    %2133 = vmatpush2.bf16.msra.mxu0 0
    %2134 = vmatprep.subr.bf16.mxu0 0
    %2135 = vmatpush2.bf16.msra.mxu0 0
    %2136 = vmatprep.subr.bf16.mxu0 0
    %2137 = vmatpush2.bf16.msra.mxu0 0
    %2138 = vmatprep.subr.bf16.mxu0 0
    %2139 = vmatpush2.bf16.msra.mxu0 0
    %2140 = vmatprep.mubr.bf16.mxu0 0
    %2141 = vmatmul.mubr.bf16.gmra.mxu0 %v2100
    %v2142 = vpop.f32.mrf.mxu0
    %v2143 = vadd.f32 %v1769, %v2142
    %v2144 = vpop.f32.mrf.mxu0
    %v2145 = vpop.f32.mrf.mxu0
    %v2146 = vadd.f32 %v1770, %v2145
    %v2147 = vpop.f32.mrf.mxu0
    %2148 = vmatprep.mubr.bf16.mxu0 0
    %2149 = vmatmul.mubr.bf16.gmra.mxu0 %v2101
    %v2150 = vpop.f32.mrf.mxu0
    %v2151 = vadd.f32 %v1771, %v2150
    %v2152 = vpop.f32.mrf.mxu0
    %v2153 = vpop.f32.mrf.mxu0
    %v2154 = vadd.f32 %v1772, %v2153
    %v2155 = vpop.f32.mrf.mxu0
    %2156 = vmatprep.mubr.bf16.mxu0 0
    %2157 = vmatmul.mubr.bf16.gmra.mxu0 %v2102
    %v2158 = vpop.f32.mrf.mxu0
    %v2159 = vadd.f32 %v1773, %v2158
    %v2160 = vpop.f32.mrf.mxu0
    %v2161 = vpop.f32.mrf.mxu0
    %v2162 = vadd.f32 %v1774, %v2161
    %v2163 = vpop.f32.mrf.mxu0
    %2164 = vmatprep.mubr.bf16.mxu0 0
    %2165 = vmatmul.mubr.bf16.gmra.mxu0 %v2103
    %v2166 = vpop.f32.mrf.mxu0
    %v2167 = vadd.f32 %v1775, %v2166
    %v2168 = vpop.f32.mrf.mxu0
    %v2169 = vpop.f32.mrf.mxu0
    %v2170 = vadd.f32 %v1776, %v2169
    %v2171 = vpop.f32.mrf.mxu0
    %2172 = vmatprep.mubr.bf16.mxu0 0
    %2173 = vmatmul.mubr.bf16.gmra.mxu0 %v2104
    %v2174 = vpop.f32.mrf.mxu0
    %v2175 = vadd.f32 %v1777, %v2174
    %v2176 = vpop.f32.mrf.mxu0
    %v2177 = vpop.f32.mrf.mxu0
    %v2178 = vadd.f32 %v1778, %v2177
    %v2179 = vpop.f32.mrf.mxu0
    %2180 = vmatprep.mubr.bf16.mxu0 0
    %2181 = vmatmul.mubr.bf16.gmra.mxu0 %v2105
    %v2182 = vpop.f32.mrf.mxu0
    %v2183 = vadd.f32 %v1779, %v2182
    %v2184 = vpop.f32.mrf.mxu0
    %v2185 = vpop.f32.mrf.mxu0
    %v2186 = vadd.f32 %v1780, %v2185
    %v2187 = vpop.f32.mrf.mxu0
    %2188 = vmatprep.mubr.bf16.mxu0 0
    %2189 = vmatmul.mubr.bf16.gmra.mxu0 %v2106
    %v2190 = vpop.f32.mrf.mxu0
    %v2191 = vadd.f32 %v1781, %v2190
    %v2192 = vpop.f32.mrf.mxu0
    %v2193 = vpop.f32.mrf.mxu0
    %v2194 = vadd.f32 %v1782, %v2193
    %v2195 = vpop.f32.mrf.mxu0
    %2196 = vmatprep.mubr.bf16.mxu0 0
    %2197 = vmatmul.mubr.bf16.gmra.mxu0 %v2107
    %v2198 = vpop.f32.mrf.mxu0
    %v2199 = vadd.f32 %v1783, %v2198
    %v2200 = vpop.f32.mrf.mxu0
    %v2201 = vpop.f32.mrf.mxu0
    %v2202 = vadd.f32 %v1784, %v2201
    %v2203 = vpop.f32.mrf.mxu0
    %2204 = vdwg.mxu0
    %v2205 = vpack.c.bf16 %v2146, %v2143
    %v2206 = vpack.c.bf16 %v2154, %v2151
    %v2207 = vpack.c.bf16 %v2162, %v2159
    %v2208 = vpack.c.bf16 %v2170, %v2167
    %v2209 = vpack.c.bf16 %v2178, %v2175
    %v2210 = vpack.c.bf16 %v2186, %v2183
    %v2211 = vpack.c.bf16 %v2194, %v2191
    %v2212 = vpack.c.bf16 %v2202, %v2199
    %2213 = vmatprep.subr.bf16.mxu0 0
    %2214 = vmatpush1.bf16.msra.mxu0 %v437
    %2215 = vmatprep.subr.bf16.mxu0 0
    %2216 = vmatpush1.bf16.msra.mxu0 %v436
    %2217 = vmatprep.subr.bf16.mxu0 0
    %2218 = vmatpush1.bf16.msra.mxu0 %v435
    %2219 = vmatprep.subr.bf16.mxu0 0
    %2220 = vmatpush1.bf16.msra.mxu0 %v434
    %2221 = vmatprep.subr.bf16.mxu0 0
    %2222 = vmatpush1.bf16.msra.mxu0 %v433
    %2223 = vmatprep.subr.bf16.mxu0 0
    %2224 = vmatpush1.bf16.msra.mxu0 %v432
    %2225 = vmatprep.subr.bf16.mxu0 0
    %2226 = vmatpush1.bf16.msra.mxu0 %v431
    %2227 = vmatprep.subr.bf16.mxu0 0
    %2228 = vmatpush1.bf16.msra.mxu0 %v430
    %2229 = vmatprep.subr.bf16.mxu0 0
    %2230 = vmatpush2.bf16.msra.mxu0 0
    %2231 = vmatprep.subr.bf16.mxu0 0
    %2232 = vmatpush2.bf16.msra.mxu0 0
    %2233 = vmatprep.subr.bf16.mxu0 0
    %2234 = vmatpush2.bf16.msra.mxu0 0
    %2235 = vmatprep.subr.bf16.mxu0 0
    %2236 = vmatpush2.bf16.msra.mxu0 0
    %2237 = vmatprep.subr.bf16.mxu0 0
    %2238 = vmatpush2.bf16.msra.mxu0 0
    %2239 = vmatprep.subr.bf16.mxu0 0
    %2240 = vmatpush2.bf16.msra.mxu0 0
    %2241 = vmatprep.subr.bf16.mxu0 0
    %2242 = vmatpush2.bf16.msra.mxu0 0
    %2243 = vmatprep.subr.bf16.mxu0 0
    %2244 = vmatpush2.bf16.msra.mxu0 0
    %2245 = vmatprep.mubr.bf16.mxu0 0
    %2246 = vmatmul.mubr.bf16.gmra.mxu0 %v2205
    %v2247 = vpop.f32.mrf.mxu0
    %v2248 = vadd.f32 %v1769, %v2247
    %v2249 = vpop.f32.mrf.mxu0
    %v2250 = vpop.f32.mrf.mxu0
    %v2251 = vadd.f32 %v1770, %v2250
    %v2252 = vpop.f32.mrf.mxu0
    %2253 = vmatprep.mubr.bf16.mxu0 0
    %2254 = vmatmul.mubr.bf16.gmra.mxu0 %v2206
    %v2255 = vpop.f32.mrf.mxu0
    %v2256 = vadd.f32 %v1771, %v2255
    %v2257 = vpop.f32.mrf.mxu0
    %v2258 = vpop.f32.mrf.mxu0
    %v2259 = vadd.f32 %v1772, %v2258
    %v2260 = vpop.f32.mrf.mxu0
    %2261 = vmatprep.mubr.bf16.mxu0 0
    %2262 = vmatmul.mubr.bf16.gmra.mxu0 %v2207
    %v2263 = vpop.f32.mrf.mxu0
    %v2264 = vadd.f32 %v1773, %v2263
    %v2265 = vpop.f32.mrf.mxu0
    %v2266 = vpop.f32.mrf.mxu0
    %v2267 = vadd.f32 %v1774, %v2266
    %v2268 = vpop.f32.mrf.mxu0
    %2269 = vmatprep.mubr.bf16.mxu0 0
    %2270 = vmatmul.mubr.bf16.gmra.mxu0 %v2208
    %v2271 = vpop.f32.mrf.mxu0
    %v2272 = vadd.f32 %v1775, %v2271
    %v2273 = vpop.f32.mrf.mxu0
    %v2274 = vpop.f32.mrf.mxu0
    %v2275 = vadd.f32 %v1776, %v2274
    %v2276 = vpop.f32.mrf.mxu0
    %2277 = vmatprep.mubr.bf16.mxu0 0
    %2278 = vmatmul.mubr.bf16.gmra.mxu0 %v2209
    %v2279 = vpop.f32.mrf.mxu0
    %v2280 = vadd.f32 %v1777, %v2279
    %v2281 = vpop.f32.mrf.mxu0
    %v2282 = vpop.f32.mrf.mxu0
    %v2283 = vadd.f32 %v1778, %v2282
    %v2284 = vpop.f32.mrf.mxu0
    %2285 = vmatprep.mubr.bf16.mxu0 0
    %2286 = vmatmul.mubr.bf16.gmra.mxu0 %v2210
    %v2287 = vpop.f32.mrf.mxu0
    %v2288 = vadd.f32 %v1779, %v2287
    %v2289 = vpop.f32.mrf.mxu0
    %v2290 = vpop.f32.mrf.mxu0
    %v2291 = vadd.f32 %v1780, %v2290
    %v2292 = vpop.f32.mrf.mxu0
    %2293 = vmatprep.mubr.bf16.mxu0 0
    %2294 = vmatmul.mubr.bf16.gmra.mxu0 %v2211
    %v2295 = vpop.f32.mrf.mxu0
    %v2296 = vadd.f32 %v1781, %v2295
    %v2297 = vpop.f32.mrf.mxu0
    %v2298 = vpop.f32.mrf.mxu0
    %v2299 = vadd.f32 %v1782, %v2298
    %v2300 = vpop.f32.mrf.mxu0
    %2301 = vmatprep.mubr.bf16.mxu0 0
    %2302 = vmatmul.mubr.bf16.gmra.mxu0 %v2212
    %v2303 = vpop.f32.mrf.mxu0
    %v2304 = vadd.f32 %v1783, %v2303
    %v2305 = vpop.f32.mrf.mxu0
    %v2306 = vpop.f32.mrf.mxu0
    %v2307 = vadd.f32 %v1784, %v2306
    %v2308 = vpop.f32.mrf.mxu0
    %2309 = vdwg.mxu0
    %v2310 = vpack.c.bf16 %v2251, %v2248
    %v2311 = vpack.c.bf16 %v2259, %v2256
    %v2312 = vpack.c.bf16 %v2267, %v2264
    %v2313 = vpack.c.bf16 %v2275, %v2272
    %v2314 = vpack.c.bf16 %v2283, %v2280
    %v2315 = vpack.c.bf16 %v2291, %v2288
    %v2316 = vpack.c.bf16 %v2299, %v2296
    %v2317 = vpack.c.bf16 %v2307, %v2304
    %2318 = vmatprep.subr.bf16.mxu0 0
    %2319 = vmatpush1.bf16.msra.mxu0 %v437
    %2320 = vmatprep.subr.bf16.mxu0 0
    %2321 = vmatpush1.bf16.msra.mxu0 %v436
    %2322 = vmatprep.subr.bf16.mxu0 0
    %2323 = vmatpush1.bf16.msra.mxu0 %v435
    %2324 = vmatprep.subr.bf16.mxu0 0
    %2325 = vmatpush1.bf16.msra.mxu0 %v434
    %2326 = vmatprep.subr.bf16.mxu0 0
    %2327 = vmatpush1.bf16.msra.mxu0 %v433
    %2328 = vmatprep.subr.bf16.mxu0 0
    %2329 = vmatpush1.bf16.msra.mxu0 %v432
    %2330 = vmatprep.subr.bf16.mxu0 0
    %2331 = vmatpush1.bf16.msra.mxu0 %v431
    %2332 = vmatprep.subr.bf16.mxu0 0
    %2333 = vmatpush1.bf16.msra.mxu0 %v430
    %2334 = vmatprep.subr.bf16.mxu0 0
    %2335 = vmatpush2.bf16.msra.mxu0 0
    %2336 = vmatprep.subr.bf16.mxu0 0
    %2337 = vmatpush2.bf16.msra.mxu0 0
    %2338 = vmatprep.subr.bf16.mxu0 0
    %2339 = vmatpush2.bf16.msra.mxu0 0
    %2340 = vmatprep.subr.bf16.mxu0 0
    %2341 = vmatpush2.bf16.msra.mxu0 0
    %2342 = vmatprep.subr.bf16.mxu0 0
    %2343 = vmatpush2.bf16.msra.mxu0 0
    %2344 = vmatprep.subr.bf16.mxu0 0
    %2345 = vmatpush2.bf16.msra.mxu0 0
    %2346 = vmatprep.subr.bf16.mxu0 0
    %2347 = vmatpush2.bf16.msra.mxu0 0
    %2348 = vmatprep.subr.bf16.mxu0 0
    %2349 = vmatpush2.bf16.msra.mxu0 0
    %2350 = vmatprep.mubr.bf16.mxu0 0
    %2351 = vmatmul.mubr.bf16.gmra.mxu0 %v2310
    %v2352 = vpop.f32.mrf.mxu0
    %v2353 = vadd.f32 %v1769, %v2352
    %v2354 = vpop.f32.mrf.mxu0
    %v2355 = vpop.f32.mrf.mxu0
    %v2356 = vadd.f32 %v1770, %v2355
    %v2357 = vpop.f32.mrf.mxu0
    %2358 = vmatprep.mubr.bf16.mxu0 0
    %2359 = vmatmul.mubr.bf16.gmra.mxu0 %v2311
    %v2360 = vpop.f32.mrf.mxu0
    %v2361 = vadd.f32 %v1771, %v2360
    %v2362 = vpop.f32.mrf.mxu0
    %v2363 = vpop.f32.mrf.mxu0
    %v2364 = vadd.f32 %v1772, %v2363
    %v2365 = vpop.f32.mrf.mxu0
    %2366 = vmatprep.mubr.bf16.mxu0 0
    %2367 = vmatmul.mubr.bf16.gmra.mxu0 %v2312
    %v2368 = vpop.f32.mrf.mxu0
    %v2369 = vadd.f32 %v1773, %v2368
    %v2370 = vpop.f32.mrf.mxu0
    %v2371 = vpop.f32.mrf.mxu0
    %v2372 = vadd.f32 %v1774, %v2371
    %v2373 = vpop.f32.mrf.mxu0
    %2374 = vmatprep.mubr.bf16.mxu0 0
    %2375 = vmatmul.mubr.bf16.gmra.mxu0 %v2313
    %v2376 = vpop.f32.mrf.mxu0
    %v2377 = vadd.f32 %v1775, %v2376
    %v2378 = vpop.f32.mrf.mxu0
    %v2379 = vpop.f32.mrf.mxu0
    %v2380 = vadd.f32 %v1776, %v2379
    %v2381 = vpop.f32.mrf.mxu0
    %2382 = vmatprep.mubr.bf16.mxu0 0
    %2383 = vmatmul.mubr.bf16.gmra.mxu0 %v2314
    %v2384 = vpop.f32.mrf.mxu0
    %v2385 = vadd.f32 %v1777, %v2384
    %v2386 = vpop.f32.mrf.mxu0
    %v2387 = vpop.f32.mrf.mxu0
    %v2388 = vadd.f32 %v1778, %v2387
    %v2389 = vpop.f32.mrf.mxu0
    %2390 = vmatprep.mubr.bf16.mxu0 0
    %2391 = vmatmul.mubr.bf16.gmra.mxu0 %v2315
    %v2392 = vpop.f32.mrf.mxu0
    %v2393 = vadd.f32 %v1779, %v2392
    %v2394 = vpop.f32.mrf.mxu0
    %v2395 = vpop.f32.mrf.mxu0
    %v2396 = vadd.f32 %v1780, %v2395
    %v2397 = vpop.f32.mrf.mxu0
    %2398 = vmatprep.mubr.bf16.mxu0 0
    %2399 = vmatmul.mubr.bf16.gmra.mxu0 %v2316
    %v2400 = vpop.f32.mrf.mxu0
    %v2401 = vadd.f32 %v1781, %v2400
    %v2402 = vpop.f32.mrf.mxu0
    %v2403 = vpop.f32.mrf.mxu0
    %v2404 = vadd.f32 %v1782, %v2403
    %v2405 = vpop.f32.mrf.mxu0
    %2406 = vmatprep.mubr.bf16.mxu0 0
    %2407 = vmatmul.mubr.bf16.gmra.mxu0 %v2317
    %v2408 = vpop.f32.mrf.mxu0
    %v2409 = vadd.f32 %v1783, %v2408
    %v2410 = vpop.f32.mrf.mxu0
    %v2411 = vpop.f32.mrf.mxu0
    %v2412 = vadd.f32 %v1784, %v2411
    %v2413 = vpop.f32.mrf.mxu0
    %2414 = vdwg.mxu0
    %v2415 = vpack.c.bf16 %v2356, %v2353
    %v2416 = vpack.c.bf16 %v2364, %v2361
    %v2417 = vpack.c.bf16 %v2372, %v2369
    %v2418 = vpack.c.bf16 %v2380, %v2377
    %v2419 = vpack.c.bf16 %v2388, %v2385
    %v2420 = vpack.c.bf16 %v2396, %v2393
    %v2421 = vpack.c.bf16 %v2404, %v2401
    %v2422 = vpack.c.bf16 %v2412, %v2409
    %2423 = vmatprep.subr.bf16.mxu0 0
    %2424 = vmatpush1.bf16.msra.mxu0 %v437
    %2425 = vmatprep.subr.bf16.mxu0 0
    %2426 = vmatpush1.bf16.msra.mxu0 %v436
    %2427 = vmatprep.subr.bf16.mxu0 0
    %2428 = vmatpush1.bf16.msra.mxu0 %v435
    %2429 = vmatprep.subr.bf16.mxu0 0
    %2430 = vmatpush1.bf16.msra.mxu0 %v434
    %2431 = vmatprep.subr.bf16.mxu0 0
    %2432 = vmatpush1.bf16.msra.mxu0 %v433
    %2433 = vmatprep.subr.bf16.mxu0 0
    %2434 = vmatpush1.bf16.msra.mxu0 %v432
    %2435 = vmatprep.subr.bf16.mxu0 0
    %2436 = vmatpush1.bf16.msra.mxu0 %v431
    %2437 = vmatprep.subr.bf16.mxu0 0
    %2438 = vmatpush1.bf16.msra.mxu0 %v430
    %2439 = vmatprep.subr.bf16.mxu0 0
    %2440 = vmatpush2.bf16.msra.mxu0 0
    %2441 = vmatprep.subr.bf16.mxu0 0
    %2442 = vmatpush2.bf16.msra.mxu0 0
    %2443 = vmatprep.subr.bf16.mxu0 0
    %2444 = vmatpush2.bf16.msra.mxu0 0
    %2445 = vmatprep.subr.bf16.mxu0 0
    %2446 = vmatpush2.bf16.msra.mxu0 0
    %2447 = vmatprep.subr.bf16.mxu0 0
    %2448 = vmatpush2.bf16.msra.mxu0 0
    %2449 = vmatprep.subr.bf16.mxu0 0
    %2450 = vmatpush2.bf16.msra.mxu0 0
    %2451 = vmatprep.subr.bf16.mxu0 0
    %2452 = vmatpush2.bf16.msra.mxu0 0
    %2453 = vmatprep.subr.bf16.mxu0 0
    %2454 = vmatpush2.bf16.msra.mxu0 0
    %2455 = vmatprep.mubr.bf16.mxu0 0
    %2456 = vmatmul.mubr.bf16.gmra.mxu0 %v2415
    %v2457 = vpop.f32.mrf.mxu0
    %v2458 = vadd.f32 %v1769, %v2457
    %v2459 = vpop.f32.mrf.mxu0
    %v2460 = vpop.f32.mrf.mxu0
    %v2461 = vadd.f32 %v1770, %v2460
    %v2462 = vpop.f32.mrf.mxu0
    %2463 = vmatprep.mubr.bf16.mxu0 0
    %2464 = vmatmul.mubr.bf16.gmra.mxu0 %v2416
    %v2465 = vpop.f32.mrf.mxu0
    %v2466 = vadd.f32 %v1771, %v2465
    %v2467 = vpop.f32.mrf.mxu0
    %v2468 = vpop.f32.mrf.mxu0
    %v2469 = vadd.f32 %v1772, %v2468
    %v2470 = vpop.f32.mrf.mxu0
    %2471 = vmatprep.mubr.bf16.mxu0 0
    %2472 = vmatmul.mubr.bf16.gmra.mxu0 %v2417
    %v2473 = vpop.f32.mrf.mxu0
    %v2474 = vadd.f32 %v1773, %v2473
    %v2475 = vpop.f32.mrf.mxu0
    %v2476 = vpop.f32.mrf.mxu0
    %v2477 = vadd.f32 %v1774, %v2476
    %v2478 = vpop.f32.mrf.mxu0
    %2479 = vmatprep.mubr.bf16.mxu0 0
    %2480 = vmatmul.mubr.bf16.gmra.mxu0 %v2418
    %v2481 = vpop.f32.mrf.mxu0
    %v2482 = vadd.f32 %v1775, %v2481
    %v2483 = vpop.f32.mrf.mxu0
    %v2484 = vpop.f32.mrf.mxu0
    %v2485 = vadd.f32 %v1776, %v2484
    %v2486 = vpop.f32.mrf.mxu0
    %2487 = vmatprep.mubr.bf16.mxu0 0
    %2488 = vmatmul.mubr.bf16.gmra.mxu0 %v2419
    %v2489 = vpop.f32.mrf.mxu0
    %v2490 = vadd.f32 %v1777, %v2489
    %v2491 = vpop.f32.mrf.mxu0
    %v2492 = vpop.f32.mrf.mxu0
    %v2493 = vadd.f32 %v1778, %v2492
    %v2494 = vpop.f32.mrf.mxu0
    %2495 = vmatprep.mubr.bf16.mxu0 0
    %2496 = vmatmul.mubr.bf16.gmra.mxu0 %v2420
    %v2497 = vpop.f32.mrf.mxu0
    %v2498 = vadd.f32 %v1779, %v2497
    %v2499 = vpop.f32.mrf.mxu0
    %v2500 = vpop.f32.mrf.mxu0
    %v2501 = vadd.f32 %v1780, %v2500
    %v2502 = vpop.f32.mrf.mxu0
    %2503 = vmatprep.mubr.bf16.mxu0 0
    %2504 = vmatmul.mubr.bf16.gmra.mxu0 %v2421
    %v2505 = vpop.f32.mrf.mxu0
    %v2506 = vadd.f32 %v1781, %v2505
    %v2507 = vpop.f32.mrf.mxu0
    %v2508 = vpop.f32.mrf.mxu0
    %v2509 = vadd.f32 %v1782, %v2508
    %v2510 = vpop.f32.mrf.mxu0
    %2511 = vmatprep.mubr.bf16.mxu0 0
    %2512 = vmatmul.mubr.bf16.gmra.mxu0 %v2422
    %v2513 = vpop.f32.mrf.mxu0
    %v2514 = vadd.f32 %v1783, %v2513
    %v2515 = vpop.f32.mrf.mxu0
    %v2516 = vpop.f32.mrf.mxu0
    %v2517 = vadd.f32 %v1784, %v2516
    %v2518 = vpop.f32.mrf.mxu0
    %2519 = vdwg.mxu0
    %v2520 = vpack.c.bf16 %v2461, %v2458
    %v2521 = vpack.c.bf16 %v2469, %v2466
    %v2522 = vpack.c.bf16 %v2477, %v2474
    %v2523 = vpack.c.bf16 %v2485, %v2482
    %v2524 = vpack.c.bf16 %v2493, %v2490
    %v2525 = vpack.c.bf16 %v2501, %v2498
    %v2526 = vpack.c.bf16 %v2509, %v2506
    %v2527 = vpack.c.bf16 %v2517, %v2514
    %2528 = vmatprep.subr.bf16.mxu0 0
    %2529 = vmatpush1.bf16.msra.mxu0 %v437
    %2530 = vmatprep.subr.bf16.mxu0 0
    %2531 = vmatpush1.bf16.msra.mxu0 %v436
    %2532 = vmatprep.subr.bf16.mxu0 0
    %2533 = vmatpush1.bf16.msra.mxu0 %v435
    %2534 = vmatprep.subr.bf16.mxu0 0
    %2535 = vmatpush1.bf16.msra.mxu0 %v434
    %2536 = vmatprep.subr.bf16.mxu0 0
    %2537 = vmatpush1.bf16.msra.mxu0 %v433
    %2538 = vmatprep.subr.bf16.mxu0 0
    %2539 = vmatpush1.bf16.msra.mxu0 %v432
    %2540 = vmatprep.subr.bf16.mxu0 0
    %2541 = vmatpush1.bf16.msra.mxu0 %v431
    %2542 = vmatprep.subr.bf16.mxu0 0
    %2543 = vmatpush1.bf16.msra.mxu0 %v430
    %2544 = vmatprep.subr.bf16.mxu0 0
    %2545 = vmatpush2.bf16.msra.mxu0 0
    %2546 = vmatprep.subr.bf16.mxu0 0
    %2547 = vmatpush2.bf16.msra.mxu0 0
    %2548 = vmatprep.subr.bf16.mxu0 0
    %2549 = vmatpush2.bf16.msra.mxu0 0
    %2550 = vmatprep.subr.bf16.mxu0 0
    %2551 = vmatpush2.bf16.msra.mxu0 0
    %2552 = vmatprep.subr.bf16.mxu0 0
    %2553 = vmatpush2.bf16.msra.mxu0 0
    %2554 = vmatprep.subr.bf16.mxu0 0
    %2555 = vmatpush2.bf16.msra.mxu0 0
    %2556 = vmatprep.subr.bf16.mxu0 0
    %2557 = vmatpush2.bf16.msra.mxu0 0
    %2558 = vmatprep.subr.bf16.mxu0 0
    %2559 = vmatpush2.bf16.msra.mxu0 0
    %2560 = vmatprep.mubr.bf16.mxu0 0
    %2561 = vmatmul.mubr.bf16.gmra.mxu0 %v2520
    %v2562 = vpop.f32.mrf.mxu0
    %v2563 = vadd.f32 %v1769, %v2562
    %v2564 = vpop.f32.mrf.mxu0
    %v2565 = vpop.f32.mrf.mxu0
    %v2566 = vadd.f32 %v1770, %v2565
    %v2567 = vpop.f32.mrf.mxu0
    %2568 = vmatprep.mubr.bf16.mxu0 0
    %2569 = vmatmul.mubr.bf16.gmra.mxu0 %v2521
    %v2570 = vpop.f32.mrf.mxu0
    %v2571 = vadd.f32 %v1771, %v2570
    %v2572 = vpop.f32.mrf.mxu0
    %v2573 = vpop.f32.mrf.mxu0
    %v2574 = vadd.f32 %v1772, %v2573
    %v2575 = vpop.f32.mrf.mxu0
    %2576 = vmatprep.mubr.bf16.mxu0 0
    %2577 = vmatmul.mubr.bf16.gmra.mxu0 %v2522
    %v2578 = vpop.f32.mrf.mxu0
    %v2579 = vadd.f32 %v1773, %v2578
    %v2580 = vpop.f32.mrf.mxu0
    %v2581 = vpop.f32.mrf.mxu0
    %v2582 = vadd.f32 %v1774, %v2581
    %v2583 = vpop.f32.mrf.mxu0
    %2584 = vmatprep.mubr.bf16.mxu0 0
    %2585 = vmatmul.mubr.bf16.gmra.mxu0 %v2523
    %v2586 = vpop.f32.mrf.mxu0
    %v2587 = vadd.f32 %v1775, %v2586
    %v2588 = vpop.f32.mrf.mxu0
    %v2589 = vpop.f32.mrf.mxu0
    %v2590 = vadd.f32 %v1776, %v2589
    %v2591 = vpop.f32.mrf.mxu0
    %2592 = vmatprep.mubr.bf16.mxu0 0
    %2593 = vmatmul.mubr.bf16.gmra.mxu0 %v2524
    %v2594 = vpop.f32.mrf.mxu0
    %v2595 = vadd.f32 %v1777, %v2594
    %v2596 = vpop.f32.mrf.mxu0
    %v2597 = vpop.f32.mrf.mxu0
    %v2598 = vadd.f32 %v1778, %v2597
    %v2599 = vpop.f32.mrf.mxu0
    %2600 = vmatprep.mubr.bf16.mxu0 0
    %2601 = vmatmul.mubr.bf16.gmra.mxu0 %v2525
    %v2602 = vpop.f32.mrf.mxu0
    %v2603 = vadd.f32 %v1779, %v2602
    %v2604 = vpop.f32.mrf.mxu0
    %v2605 = vpop.f32.mrf.mxu0
    %v2606 = vadd.f32 %v1780, %v2605
    %v2607 = vpop.f32.mrf.mxu0
    %2608 = vmatprep.mubr.bf16.mxu0 0
    %2609 = vmatmul.mubr.bf16.gmra.mxu0 %v2526
    %v2610 = vpop.f32.mrf.mxu0
    %v2611 = vadd.f32 %v1781, %v2610
    %v2612 = vpop.f32.mrf.mxu0
    %v2613 = vpop.f32.mrf.mxu0
    %v2614 = vadd.f32 %v1782, %v2613
    %v2615 = vpop.f32.mrf.mxu0
    %2616 = vmatprep.mubr.bf16.mxu0 0
    %2617 = vmatmul.mubr.bf16.gmra.mxu0 %v2527
    %v2618 = vpop.f32.mrf.mxu0
    %v2619 = vadd.f32 %v1783, %v2618
    %v2620 = vpop.f32.mrf.mxu0
    %v2621 = vpop.f32.mrf.mxu0
    %v2622 = vadd.f32 %v1784, %v2621
    %v2623 = vpop.f32.mrf.mxu0
    %2624 = vdwg.mxu0
    %v2625 = vpack.c.bf16 %v2566, %v2563
    %v2626 = vpack.c.bf16 %v2574, %v2571
    %v2627 = vpack.c.bf16 %v2582, %v2579
    %v2628 = vpack.c.bf16 %v2590, %v2587
    %v2629 = vpack.c.bf16 %v2598, %v2595
    %v2630 = vpack.c.bf16 %v2606, %v2603
    %v2631 = vpack.c.bf16 %v2614, %v2611
    %v2632 = vpack.c.bf16 %v2622, %v2619
    %2633 = vmatprep.subr.bf16.mxu0 0
    %2634 = vmatpush1.bf16.msra.mxu0 %v437
    %2635 = vmatprep.subr.bf16.mxu0 0
    %2636 = vmatpush1.bf16.msra.mxu0 %v436
    %2637 = vmatprep.subr.bf16.mxu0 0
    %2638 = vmatpush1.bf16.msra.mxu0 %v435
    %2639 = vmatprep.subr.bf16.mxu0 0
    %2640 = vmatpush1.bf16.msra.mxu0 %v434
    %2641 = vmatprep.subr.bf16.mxu0 0
    %2642 = vmatpush1.bf16.msra.mxu0 %v433
    %2643 = vmatprep.subr.bf16.mxu0 0
    %2644 = vmatpush1.bf16.msra.mxu0 %v432
    %2645 = vmatprep.subr.bf16.mxu0 0
    %2646 = vmatpush1.bf16.msra.mxu0 %v431
    %2647 = vmatprep.subr.bf16.mxu0 0
    %2648 = vmatpush1.bf16.msra.mxu0 %v430
    %2649 = vmatprep.subr.bf16.mxu0 0
    %2650 = vmatpush2.bf16.msra.mxu0 0
    %2651 = vmatprep.subr.bf16.mxu0 0
    %2652 = vmatpush2.bf16.msra.mxu0 0
    %2653 = vmatprep.subr.bf16.mxu0 0
    %2654 = vmatpush2.bf16.msra.mxu0 0
    %2655 = vmatprep.subr.bf16.mxu0 0
    %2656 = vmatpush2.bf16.msra.mxu0 0
    %2657 = vmatprep.subr.bf16.mxu0 0
    %2658 = vmatpush2.bf16.msra.mxu0 0
    %2659 = vmatprep.subr.bf16.mxu0 0
    %2660 = vmatpush2.bf16.msra.mxu0 0
    %2661 = vmatprep.subr.bf16.mxu0 0
    %2662 = vmatpush2.bf16.msra.mxu0 0
    %2663 = vmatprep.subr.bf16.mxu0 0
    %2664 = vmatpush2.bf16.msra.mxu0 0
    %2665 = vmatprep.mubr.bf16.mxu0 0
    %2666 = vmatmul.mubr.bf16.gmra.mxu0 %v2625
    %v2667 = vpop.f32.mrf.mxu0
    %v2668 = vadd.f32 %v1769, %v2667
    %v2669 = vpop.f32.mrf.mxu0
    %v2670 = vpop.f32.mrf.mxu0
    %v2671 = vadd.f32 %v1770, %v2670
    %v2672 = vpop.f32.mrf.mxu0
    %2673 = vmatprep.mubr.bf16.mxu0 0
    %2674 = vmatmul.mubr.bf16.gmra.mxu0 %v2626
    %v2675 = vpop.f32.mrf.mxu0
    %v2676 = vadd.f32 %v1771, %v2675
    %v2677 = vpop.f32.mrf.mxu0
    %v2678 = vpop.f32.mrf.mxu0
    %v2679 = vadd.f32 %v1772, %v2678
    %v2680 = vpop.f32.mrf.mxu0
    %2681 = vmatprep.mubr.bf16.mxu0 0
    %2682 = vmatmul.mubr.bf16.gmra.mxu0 %v2627
    %v2683 = vpop.f32.mrf.mxu0
    %v2684 = vadd.f32 %v1773, %v2683
    %v2685 = vpop.f32.mrf.mxu0
    %v2686 = vpop.f32.mrf.mxu0
    %v2687 = vadd.f32 %v1774, %v2686
    %v2688 = vpop.f32.mrf.mxu0
    %2689 = vmatprep.mubr.bf16.mxu0 0
    %2690 = vmatmul.mubr.bf16.gmra.mxu0 %v2628
    %v2691 = vpop.f32.mrf.mxu0
    %v2692 = vadd.f32 %v1775, %v2691
    %v2693 = vpop.f32.mrf.mxu0
    %v2694 = vpop.f32.mrf.mxu0
    %v2695 = vadd.f32 %v1776, %v2694
    %v2696 = vpop.f32.mrf.mxu0
    %2697 = vmatprep.mubr.bf16.mxu0 0
    %2698 = vmatmul.mubr.bf16.gmra.mxu0 %v2629
    %v2699 = vpop.f32.mrf.mxu0
    %v2700 = vadd.f32 %v1777, %v2699
    %v2701 = vpop.f32.mrf.mxu0
    %v2702 = vpop.f32.mrf.mxu0
    %v2703 = vadd.f32 %v1778, %v2702
    %v2704 = vpop.f32.mrf.mxu0
    %2705 = vmatprep.mubr.bf16.mxu0 0
    %2706 = vmatmul.mubr.bf16.gmra.mxu0 %v2630
    %v2707 = vpop.f32.mrf.mxu0
    %v2708 = vadd.f32 %v1779, %v2707
    %v2709 = vpop.f32.mrf.mxu0
    %v2710 = vpop.f32.mrf.mxu0
    %v2711 = vadd.f32 %v1780, %v2710
    %v2712 = vpop.f32.mrf.mxu0
    %2713 = vmatprep.mubr.bf16.mxu0 0
    %2714 = vmatmul.mubr.bf16.gmra.mxu0 %v2631
    %v2715 = vpop.f32.mrf.mxu0
    %v2716 = vadd.f32 %v1781, %v2715
    %v2717 = vpop.f32.mrf.mxu0
    %v2718 = vpop.f32.mrf.mxu0
    %v2719 = vadd.f32 %v1782, %v2718
    %v2720 = vpop.f32.mrf.mxu0
    %2721 = vmatprep.mubr.bf16.mxu0 0
    %2722 = vmatmul.mubr.bf16.gmra.mxu0 %v2632
    %v2723 = vpop.f32.mrf.mxu0
    %v2724 = vadd.f32 %v1783, %v2723
    %v2725 = vpop.f32.mrf.mxu0
    %v2726 = vpop.f32.mrf.mxu0
    %v2727 = vadd.f32 %v1784, %v2726
    %v2728 = vpop.f32.mrf.mxu0
    %2729 = vdwg.mxu0
    %v2730 = vpack.c.bf16 %v2671, %v2668
    %v2731 = vpack.c.bf16 %v2679, %v2676
    %v2732 = vpack.c.bf16 %v2687, %v2684
    %v2733 = vpack.c.bf16 %v2695, %v2692
    %v2734 = vpack.c.bf16 %v2703, %v2700
    %v2735 = vpack.c.bf16 %v2711, %v2708
    %v2736 = vpack.c.bf16 %v2719, %v2716
    %v2737 = vpack.c.bf16 %v2727, %v2724
    %2738 = vmatprep.subr.bf16.mxu0 0
    %2739 = vmatpush1.bf16.msra.mxu0 %v437
    %2740 = vmatprep.subr.bf16.mxu0 0
    %2741 = vmatpush1.bf16.msra.mxu0 %v436
    %2742 = vmatprep.subr.bf16.mxu0 0
    %2743 = vmatpush1.bf16.msra.mxu0 %v435
    %2744 = vmatprep.subr.bf16.mxu0 0
    %2745 = vmatpush1.bf16.msra.mxu0 %v434
    %2746 = vmatprep.subr.bf16.mxu0 0
    %2747 = vmatpush1.bf16.msra.mxu0 %v433
    %2748 = vmatprep.subr.bf16.mxu0 0
    %2749 = vmatpush1.bf16.msra.mxu0 %v432
    %2750 = vmatprep.subr.bf16.mxu0 0
    %2751 = vmatpush1.bf16.msra.mxu0 %v431
    %2752 = vmatprep.subr.bf16.mxu0 0
    %2753 = vmatpush1.bf16.msra.mxu0 %v430
    %2754 = vmatprep.subr.bf16.mxu0 0
    %2755 = vmatpush2.bf16.msra.mxu0 0
    %2756 = vmatprep.subr.bf16.mxu0 0
    %2757 = vmatpush2.bf16.msra.mxu0 0
    %2758 = vmatprep.subr.bf16.mxu0 0
    %2759 = vmatpush2.bf16.msra.mxu0 0
    %2760 = vmatprep.subr.bf16.mxu0 0
    %2761 = vmatpush2.bf16.msra.mxu0 0
    %2762 = vmatprep.subr.bf16.mxu0 0
    %2763 = vmatpush2.bf16.msra.mxu0 0
    %2764 = vmatprep.subr.bf16.mxu0 0
    %2765 = vmatpush2.bf16.msra.mxu0 0
    %2766 = vmatprep.subr.bf16.mxu0 0
    %2767 = vmatpush2.bf16.msra.mxu0 0
    %2768 = vmatprep.subr.bf16.mxu0 0
    %2769 = vmatpush2.bf16.msra.mxu0 0
    %2770 = vmatprep.mubr.bf16.mxu0 0
    %2771 = vmatmul.mubr.bf16.gmra.mxu0 %v2730
    %v2772 = vpop.f32.mrf.mxu0
    %v2773 = vadd.f32 %v1769, %v2772
    %v2774 = vpop.f32.mrf.mxu0
    %v2775 = vpop.f32.mrf.mxu0
    %v2776 = vadd.f32 %v1770, %v2775
    %v2777 = vpop.f32.mrf.mxu0
    %2778 = vmatprep.mubr.bf16.mxu0 0
    %2779 = vmatmul.mubr.bf16.gmra.mxu0 %v2731
    %v2780 = vpop.f32.mrf.mxu0
    %v2781 = vadd.f32 %v1771, %v2780
    %v2782 = vpop.f32.mrf.mxu0
    %v2783 = vpop.f32.mrf.mxu0
    %v2784 = vadd.f32 %v1772, %v2783
    %v2785 = vpop.f32.mrf.mxu0
    %2786 = vmatprep.mubr.bf16.mxu0 0
    %2787 = vmatmul.mubr.bf16.gmra.mxu0 %v2732
    %v2788 = vpop.f32.mrf.mxu0
    %v2789 = vadd.f32 %v1773, %v2788
    %v2790 = vpop.f32.mrf.mxu0
    %v2791 = vpop.f32.mrf.mxu0
    %v2792 = vadd.f32 %v1774, %v2791
    %v2793 = vpop.f32.mrf.mxu0
    %2794 = vmatprep.mubr.bf16.mxu0 0
    %2795 = vmatmul.mubr.bf16.gmra.mxu0 %v2733
    %v2796 = vpop.f32.mrf.mxu0
    %v2797 = vadd.f32 %v1775, %v2796
    %v2798 = vpop.f32.mrf.mxu0
    %v2799 = vpop.f32.mrf.mxu0
    %v2800 = vadd.f32 %v1776, %v2799
    %v2801 = vpop.f32.mrf.mxu0
    %2802 = vmatprep.mubr.bf16.mxu0 0
    %2803 = vmatmul.mubr.bf16.gmra.mxu0 %v2734
    %v2804 = vpop.f32.mrf.mxu0
    %v2805 = vadd.f32 %v1777, %v2804
    %v2806 = vpop.f32.mrf.mxu0
    %v2807 = vpop.f32.mrf.mxu0
    %v2808 = vadd.f32 %v1778, %v2807
    %v2809 = vpop.f32.mrf.mxu0
    %2810 = vmatprep.mubr.bf16.mxu0 0
    %2811 = vmatmul.mubr.bf16.gmra.mxu0 %v2735
    %v2812 = vpop.f32.mrf.mxu0
    %v2813 = vadd.f32 %v1779, %v2812
    %v2814 = vpop.f32.mrf.mxu0
    %v2815 = vpop.f32.mrf.mxu0
    %v2816 = vadd.f32 %v1780, %v2815
    %v2817 = vpop.f32.mrf.mxu0
    %2818 = vmatprep.mubr.bf16.mxu0 0
    %2819 = vmatmul.mubr.bf16.gmra.mxu0 %v2736
    %v2820 = vpop.f32.mrf.mxu0
    %v2821 = vadd.f32 %v1781, %v2820
    %v2822 = vpop.f32.mrf.mxu0
    %v2823 = vpop.f32.mrf.mxu0
    %v2824 = vadd.f32 %v1782, %v2823
    %v2825 = vpop.f32.mrf.mxu0
    %2826 = vmatprep.mubr.bf16.mxu0 0
    %2827 = vmatmul.mubr.bf16.gmra.mxu0 %v2737
    %v2828 = vpop.f32.mrf.mxu0
    %v2829 = vadd.f32 %v1783, %v2828
    %v2830 = vpop.f32.mrf.mxu0
    %v2831 = vpop.f32.mrf.mxu0
    %v2832 = vadd.f32 %v1784, %v2831
    %v2833 = vpop.f32.mrf.mxu0
    %2834 = vdwg.mxu0
    %v2835 = vmax.f32 %v2773, 0.0
    %v2836 = vmax.f32 %v2776, 0.0
    %v2837 = vmax.f32 %v2781, 0.0
    %v2838 = vmax.f32 %v2784, 0.0
    %v2839 = vmax.f32 %v2789, 0.0
    %v2840 = vmax.f32 %v2792, 0.0
    %v2841 = vmax.f32 %v2797, 0.0
    %v2842 = vmax.f32 %v2800, 0.0
    %v2843 = vmax.f32 %v2805, 0.0
    %v2844 = vmax.f32 %v2808, 0.0
    %v2845 = vmax.f32 %v2813, 0.0
    %v2846 = vmax.f32 %v2816, 0.0
    %v2847 = vmax.f32 %v2821, 0.0
    %v2848 = vmax.f32 %v2824, 0.0
    %v2849 = vmax.f32 %v2829, 0.0
    %v2850 = vmax.f32 %v2832, 0.0
    %v2851 = vpack.c.bf16 %v2836, %v2835
    %v2852 = vpack.c.bf16 %v2838, %v2837
    %v2853 = vpack.c.bf16 %v2840, %v2839
    %v2854 = vpack.c.bf16 %v2842, %v2841
    %v2855 = vpack.c.bf16 %v2844, %v2843
    %v2856 = vpack.c.bf16 %v2846, %v2845
    %v2857 = vpack.c.bf16 %v2848, %v2847
    %v2858 = vpack.c.bf16 %v2850, %v2849
    %v2859 = vld [vmem:[%s6] sm:$0xf]
    %v2860 = vld [vmem:[%s6 + $0x4] sm:$0xf]
    %v2861 = vld [vmem:[%s6 + $0x8] sm:$0xf]
    %v2862 = vld [vmem:[%s6 + $0xc] sm:$0xf]
    %v2863 = vld [vmem:[%s6 + $0x10] sm:$0xf]
    %v2864 = vld [vmem:[%s6 + $0x14] sm:$0xf]
    %v2865 = vld [vmem:[%s6 + $0x18] sm:$0xf]
    %v2866 = vld [vmem:[%s6 + $0x1c] sm:$0xf]
    %v2867 = vld [vmem:[%s6 + $0x20] sm:$0xf]
    %v2868 = vld [vmem:[%s6 + $0x24] sm:$0xf]
    %v2869 = vld [vmem:[%s6 + $0x28] sm:$0xf]
    %v2870 = vld [vmem:[%s6 + $0x2c] sm:$0xf]
    %v2871 = vld [vmem:[%s6 + $0x30] sm:$0xf]
    %v2872 = vld [vmem:[%s6 + $0x34] sm:$0xf]
    %v2873 = vld [vmem:[%s6 + $0x38] sm:$0xf]
    %v2874 = vld [vmem:[%s6 + $0x3c] sm:$0xf]
    %v2875 = vld [vmem:[%s7] sm:$0xff]
    %v2876 = vld [vmem:[%s7 + $0x8] sm:$0xff]
    %v2877 = vld [vmem:[%s7 + $0x10] sm:$0xff]
    %v2878 = vld [vmem:[%s7 + $0x18] sm:$0xff]
    %v2879 = vld [vmem:[%s7 + $0x20] sm:$0xff]
    %v2880 = vld [vmem:[%s7 + $0x28] sm:$0xff]
    %v2881 = vld [vmem:[%s7 + $0x30] sm:$0xff]
    %v2882 = vld [vmem:[%s7 + $0x38] sm:$0xff]
    %v2883 = vld [vmem:[%s7 + $0x40] sm:$0xff]
    %v2884 = vld [vmem:[%s7 + $0x48] sm:$0xff]
    %v2885 = vld [vmem:[%s7 + $0x50] sm:$0xff]
    %v2886 = vld [vmem:[%s7 + $0x58] sm:$0xff]
    %v2887 = vld [vmem:[%s7 + $0x60] sm:$0xff]
    %v2888 = vld [vmem:[%s7 + $0x68] sm:$0xff]
    %v2889 = vld [vmem:[%s7 + $0x70] sm:$0xff]
    %v2890 = vld [vmem:[%s7 + $0x78] sm:$0xff]
    %2892 = vset.pattern.permute.xlu0 0
    %2893 = vperm.xlu0 %2892, %v2875
    %v2894 = vpop.permute.xlu0 %2893
    %2897 = vset.pattern.permute.xlu0 0
    %2898 = vperm.xlu0 %2897, %v2876
    %v2899 = vpop.permute.xlu0 %2898
    %2902 = vset.pattern.permute.xlu0 0
    %2903 = vperm.xlu0 %2902, %v2877
    %v2904 = vpop.permute.xlu0 %2903
    %2907 = vset.pattern.permute.xlu0 0
    %2908 = vperm.xlu0 %2907, %v2878
    %v2909 = vpop.permute.xlu0 %2908
    %2912 = vset.pattern.permute.xlu0 0
    %2913 = vperm.xlu0 %2912, %v2879
    %v2914 = vpop.permute.xlu0 %2913
    %2917 = vset.pattern.permute.xlu0 0
    %2918 = vperm.xlu0 %2917, %v2880
    %v2919 = vpop.permute.xlu0 %2918
    %2922 = vset.pattern.permute.xlu0 0
    %2923 = vperm.xlu0 %2922, %v2881
    %v2924 = vpop.permute.xlu0 %2923
    %2927 = vset.pattern.permute.xlu0 0
    %2928 = vperm.xlu0 %2927, %v2882
    %v2929 = vpop.permute.xlu0 %2928
    %2932 = vset.pattern.permute.xlu0 0
    %2933 = vperm.xlu0 %2932, %v2883
    %v2934 = vpop.permute.xlu0 %2933
    %2937 = vset.pattern.permute.xlu0 0
    %2938 = vperm.xlu0 %2937, %v2884
    %v2939 = vpop.permute.xlu0 %2938
    %2942 = vset.pattern.permute.xlu0 0
    %2943 = vperm.xlu0 %2942, %v2885
    %v2944 = vpop.permute.xlu0 %2943
    %2947 = vset.pattern.permute.xlu0 0
    %2948 = vperm.xlu0 %2947, %v2886
    %v2949 = vpop.permute.xlu0 %2948
    %2952 = vset.pattern.permute.xlu0 0
    %2953 = vperm.xlu0 %2952, %v2887
    %v2954 = vpop.permute.xlu0 %2953
    %2957 = vset.pattern.permute.xlu0 0
    %2958 = vperm.xlu0 %2957, %v2888
    %v2959 = vpop.permute.xlu0 %2958
    %2962 = vset.pattern.permute.xlu0 0
    %2963 = vperm.xlu0 %2962, %v2889
    %v2964 = vpop.permute.xlu0 %2963
    %2967 = vset.pattern.permute.xlu0 0
    %2968 = vperm.xlu0 %2967, %v2890
    %v2969 = vpop.permute.xlu0 %2968
    %v2987 = vunpack.c.l.b16 %v2859
    %v2988 = vunpack.c.l.b16 %v2860
    %v2989 = vunpack.c.l.b16 %v2861
    %v2990 = vunpack.c.l.b16 %v2862
    %v2991 = vunpack.c.l.b16 %v2863
    %v2992 = vunpack.c.l.b16 %v2864
    %v2993 = vunpack.c.l.b16 %v2865
    %v2994 = vunpack.c.l.b16 %v2866
    %v2995 = vunpack.c.l.b16 %v2867
    %v2996 = vunpack.c.l.b16 %v2868
    %v2997 = vunpack.c.l.b16 %v2869
    %v2998 = vunpack.c.l.b16 %v2870
    %v2999 = vunpack.c.l.b16 %v2871
    %v3000 = vunpack.c.l.b16 %v2872
    %v3001 = vunpack.c.l.b16 %v2873
    %v3002 = vunpack.c.l.b16 %v2874
    %v3003 = vpack.c.b16 %v2988, %v2987
    %v3004 = vpack.c.b16 %v2990, %v2989
    %v3005 = vpack.c.b16 %v2992, %v2991
    %v3006 = vpack.c.b16 %v2994, %v2993
    %v3007 = vpack.c.b16 %v2996, %v2995
    %v3008 = vpack.c.b16 %v2998, %v2997
    %v3009 = vpack.c.b16 %v3000, %v2999
    %v3010 = vpack.c.b16 %v3002, %v3001
    %3019 = vmatprep.subr.bf16.mxu0 0
    %3020 = vmatpush1.bf16.msra.mxu0 %v2858
    %3021 = vmatprep.subr.bf16.mxu0 0
    %3022 = vmatpush1.bf16.msra.mxu0 %v2857
    %3023 = vmatprep.subr.bf16.mxu0 0
    %3024 = vmatpush1.bf16.msra.mxu0 %v2856
    %3025 = vmatprep.subr.bf16.mxu0 0
    %3026 = vmatpush1.bf16.msra.mxu0 %v2855
    %3027 = vmatprep.subr.bf16.mxu0 0
    %3028 = vmatpush1.bf16.msra.mxu0 %v2854
    %3029 = vmatprep.subr.bf16.mxu0 0
    %3030 = vmatpush1.bf16.msra.mxu0 %v2853
    %3031 = vmatprep.subr.bf16.mxu0 0
    %3032 = vmatpush1.bf16.msra.mxu0 %v2852
    %3033 = vmatprep.subr.bf16.mxu0 0
    %3034 = vmatpush1.bf16.msra.mxu0 %v2851
    %3035 = vmatprep.subr.bf16.mxu0 0
    %3036 = vmatpush2.bf16.msra.mxu0 0
    %3037 = vmatprep.subr.bf16.mxu0 0
    %3038 = vmatpush2.bf16.msra.mxu0 0
    %3039 = vmatprep.subr.bf16.mxu0 0
    %3040 = vmatpush2.bf16.msra.mxu0 0
    %3041 = vmatprep.subr.bf16.mxu0 0
    %3042 = vmatpush2.bf16.msra.mxu0 0
    %3043 = vmatprep.subr.bf16.mxu0 0
    %3044 = vmatpush2.bf16.msra.mxu0 0
    %3045 = vmatprep.subr.bf16.mxu0 0
    %3046 = vmatpush2.bf16.msra.mxu0 0
    %3047 = vmatprep.subr.bf16.mxu0 0
    %3048 = vmatpush2.bf16.msra.mxu0 0
    %3049 = vmatprep.subr.bf16.mxu0 0
    %3050 = vmatpush2.bf16.msra.mxu0 0
    %3051 = vmatprep.mubr.bf16.mxu0 0
    %3052 = vmatmul.mubr.bf16.gmra.mxu0 %v3003
    %v3053 = vpop.f32.mrf.mxu0
    %v3054 = vadd.f32 %v2894, %v3053
    %v3055 = vpop.f32.mrf.mxu0
    %v3056 = vpop.f32.mrf.mxu0
    %v3057 = vadd.f32 %v2899, %v3056
    %v3058 = vpop.f32.mrf.mxu0
    %3059 = vmatprep.mubr.bf16.mxu0 0
    %3060 = vmatmul.mubr.bf16.gmra.mxu0 %v3004
    %v3061 = vpop.f32.mrf.mxu0
    %v3062 = vadd.f32 %v2904, %v3061
    %v3063 = vpop.f32.mrf.mxu0
    %v3064 = vpop.f32.mrf.mxu0
    %v3065 = vadd.f32 %v2909, %v3064
    %v3066 = vpop.f32.mrf.mxu0
    %3067 = vmatprep.mubr.bf16.mxu0 0
    %3068 = vmatmul.mubr.bf16.gmra.mxu0 %v3005
    %v3069 = vpop.f32.mrf.mxu0
    %v3070 = vadd.f32 %v2914, %v3069
    %v3071 = vpop.f32.mrf.mxu0
    %v3072 = vpop.f32.mrf.mxu0
    %v3073 = vadd.f32 %v2919, %v3072
    %v3074 = vpop.f32.mrf.mxu0
    %3075 = vmatprep.mubr.bf16.mxu0 0
    %3076 = vmatmul.mubr.bf16.gmra.mxu0 %v3006
    %v3077 = vpop.f32.mrf.mxu0
    %v3078 = vadd.f32 %v2924, %v3077
    %v3079 = vpop.f32.mrf.mxu0
    %v3080 = vpop.f32.mrf.mxu0
    %v3081 = vadd.f32 %v2929, %v3080
    %v3082 = vpop.f32.mrf.mxu0
    %3083 = vmatprep.mubr.bf16.mxu0 0
    %3084 = vmatmul.mubr.bf16.gmra.mxu0 %v3007
    %v3085 = vpop.f32.mrf.mxu0
    %v3086 = vadd.f32 %v2934, %v3085
    %v3087 = vpop.f32.mrf.mxu0
    %v3088 = vpop.f32.mrf.mxu0
    %v3089 = vadd.f32 %v2939, %v3088
    %v3090 = vpop.f32.mrf.mxu0
    %3091 = vmatprep.mubr.bf16.mxu0 0
    %3092 = vmatmul.mubr.bf16.gmra.mxu0 %v3008
    %v3093 = vpop.f32.mrf.mxu0
    %v3094 = vadd.f32 %v2944, %v3093
    %v3095 = vpop.f32.mrf.mxu0
    %v3096 = vpop.f32.mrf.mxu0
    %v3097 = vadd.f32 %v2949, %v3096
    %v3098 = vpop.f32.mrf.mxu0
    %3099 = vmatprep.mubr.bf16.mxu0 0
    %3100 = vmatmul.mubr.bf16.gmra.mxu0 %v3009
    %v3101 = vpop.f32.mrf.mxu0
    %v3102 = vadd.f32 %v2954, %v3101
    %v3103 = vpop.f32.mrf.mxu0
    %v3104 = vpop.f32.mrf.mxu0
    %v3105 = vadd.f32 %v2959, %v3104
    %v3106 = vpop.f32.mrf.mxu0
    %3107 = vmatprep.mubr.bf16.mxu0 0
    %3108 = vmatmul.mubr.bf16.gmra.mxu0 %v3010
    %v3109 = vpop.f32.mrf.mxu0
    %v3110 = vadd.f32 %v2964, %v3109
    %v3111 = vpop.f32.mrf.mxu0
    %v3112 = vpop.f32.mrf.mxu0
    %v3113 = vadd.f32 %v2969, %v3112
    %v3114 = vpop.f32.mrf.mxu0
    %3115 = vdwg.mxu0
    %v3116 = vmul.f32 %v3054, 0.1
    %v3117 = vmul.f32 %v3057, 0.1
    %v3118 = vmul.f32 %v3062, 0.1
    %v3119 = vmul.f32 %v3065, 0.1
    %v3120 = vmul.f32 %v3070, 0.1
    %v3121 = vmul.f32 %v3073, 0.1
    %v3122 = vmul.f32 %v3078, 0.1
    %v3123 = vmul.f32 %v3081, 0.1
    %v3124 = vmul.f32 %v3086, 0.1
    %v3125 = vmul.f32 %v3089, 0.1
    %v3126 = vmul.f32 %v3094, 0.1
    %v3127 = vmul.f32 %v3097, 0.1
    %v3128 = vmul.f32 %v3102, 0.1
    %v3129 = vmul.f32 %v3105, 0.1
    %v3130 = vmul.f32 %v3110, 0.1
    %v3131 = vmul.f32 %v3113, 0.1
    %v3132 = vpack.c.bf16 %v3057, %v3054
    %v3133 = vpack.c.bf16 %v3065, %v3062
    %v3134 = vpack.c.bf16 %v3073, %v3070
    %v3135 = vpack.c.bf16 %v3081, %v3078
    %v3136 = vpack.c.bf16 %v3089, %v3086
    %v3137 = vpack.c.bf16 %v3097, %v3094
    %v3138 = vpack.c.bf16 %v3105, %v3102
    %v3139 = vpack.c.bf16 %v3113, %v3110
    %3140 = vmatprep.subr.bf16.mxu0 0
    %3141 = vmatpush1.bf16.msra.mxu0 %v437
    %3142 = vmatprep.subr.bf16.mxu0 0
    %3143 = vmatpush1.bf16.msra.mxu0 %v436
    %3144 = vmatprep.subr.bf16.mxu0 0
    %3145 = vmatpush1.bf16.msra.mxu0 %v435
    %3146 = vmatprep.subr.bf16.mxu0 0
    %3147 = vmatpush1.bf16.msra.mxu0 %v434
    %3148 = vmatprep.subr.bf16.mxu0 0
    %3149 = vmatpush1.bf16.msra.mxu0 %v433
    %3150 = vmatprep.subr.bf16.mxu0 0
    %3151 = vmatpush1.bf16.msra.mxu0 %v432
    %3152 = vmatprep.subr.bf16.mxu0 0
    %3153 = vmatpush1.bf16.msra.mxu0 %v431
    %3154 = vmatprep.subr.bf16.mxu0 0
    %3155 = vmatpush1.bf16.msra.mxu0 %v430
    %3156 = vmatprep.subr.bf16.mxu0 0
    %3157 = vmatpush2.bf16.msra.mxu0 0
    %3158 = vmatprep.subr.bf16.mxu0 0
    %3159 = vmatpush2.bf16.msra.mxu0 0
    %3160 = vmatprep.subr.bf16.mxu0 0
    %3161 = vmatpush2.bf16.msra.mxu0 0
    %3162 = vmatprep.subr.bf16.mxu0 0
    %3163 = vmatpush2.bf16.msra.mxu0 0
    %3164 = vmatprep.subr.bf16.mxu0 0
    %3165 = vmatpush2.bf16.msra.mxu0 0
    %3166 = vmatprep.subr.bf16.mxu0 0
    %3167 = vmatpush2.bf16.msra.mxu0 0
    %3168 = vmatprep.subr.bf16.mxu0 0
    %3169 = vmatpush2.bf16.msra.mxu0 0
    %3170 = vmatprep.subr.bf16.mxu0 0
    %3171 = vmatpush2.bf16.msra.mxu0 0
    %3172 = vmatprep.mubr.bf16.mxu0 0
    %3173 = vmatmul.mubr.bf16.gmra.mxu0 %v3132
    %v3174 = vpop.f32.mrf.mxu0
    %v3175 = vadd.f32 %v3116, %v3174
    %v3176 = vpop.f32.mrf.mxu0
    %v3177 = vpop.f32.mrf.mxu0
    %v3178 = vadd.f32 %v3117, %v3177
    %v3179 = vpop.f32.mrf.mxu0
    %3180 = vmatprep.mubr.bf16.mxu0 0
    %3181 = vmatmul.mubr.bf16.gmra.mxu0 %v3133
    %v3182 = vpop.f32.mrf.mxu0
    %v3183 = vadd.f32 %v3118, %v3182
    %v3184 = vpop.f32.mrf.mxu0
    %v3185 = vpop.f32.mrf.mxu0
    %v3186 = vadd.f32 %v3119, %v3185
    %v3187 = vpop.f32.mrf.mxu0
    %3188 = vmatprep.mubr.bf16.mxu0 0
    %3189 = vmatmul.mubr.bf16.gmra.mxu0 %v3134
    %v3190 = vpop.f32.mrf.mxu0
    %v3191 = vadd.f32 %v3120, %v3190
    %v3192 = vpop.f32.mrf.mxu0
    %v3193 = vpop.f32.mrf.mxu0
    %v3194 = vadd.f32 %v3121, %v3193
    %v3195 = vpop.f32.mrf.mxu0
    %3196 = vmatprep.mubr.bf16.mxu0 0
    %3197 = vmatmul.mubr.bf16.gmra.mxu0 %v3135
    %v3198 = vpop.f32.mrf.mxu0
    %v3199 = vadd.f32 %v3122, %v3198
    %v3200 = vpop.f32.mrf.mxu0
    %v3201 = vpop.f32.mrf.mxu0
    %v3202 = vadd.f32 %v3123, %v3201
    %v3203 = vpop.f32.mrf.mxu0
    %3204 = vmatprep.mubr.bf16.mxu0 0
    %3205 = vmatmul.mubr.bf16.gmra.mxu0 %v3136
    %v3206 = vpop.f32.mrf.mxu0
    %v3207 = vadd.f32 %v3124, %v3206
    %v3208 = vpop.f32.mrf.mxu0
    %v3209 = vpop.f32.mrf.mxu0
    %v3210 = vadd.f32 %v3125, %v3209
    %v3211 = vpop.f32.mrf.mxu0
    %3212 = vmatprep.mubr.bf16.mxu0 0
    %3213 = vmatmul.mubr.bf16.gmra.mxu0 %v3137
    %v3214 = vpop.f32.mrf.mxu0
    %v3215 = vadd.f32 %v3126, %v3214
    %v3216 = vpop.f32.mrf.mxu0
    %v3217 = vpop.f32.mrf.mxu0
    %v3218 = vadd.f32 %v3127, %v3217
    %v3219 = vpop.f32.mrf.mxu0
    %3220 = vmatprep.mubr.bf16.mxu0 0
    %3221 = vmatmul.mubr.bf16.gmra.mxu0 %v3138
    %v3222 = vpop.f32.mrf.mxu0
    %v3223 = vadd.f32 %v3128, %v3222
    %v3224 = vpop.f32.mrf.mxu0
    %v3225 = vpop.f32.mrf.mxu0
    %v3226 = vadd.f32 %v3129, %v3225
    %v3227 = vpop.f32.mrf.mxu0
    %3228 = vmatprep.mubr.bf16.mxu0 0
    %3229 = vmatmul.mubr.bf16.gmra.mxu0 %v3139
    %v3230 = vpop.f32.mrf.mxu0
    %v3231 = vadd.f32 %v3130, %v3230
    %v3232 = vpop.f32.mrf.mxu0
    %v3233 = vpop.f32.mrf.mxu0
    %v3234 = vadd.f32 %v3131, %v3233
    %v3235 = vpop.f32.mrf.mxu0
    %3236 = vdwg.mxu0
    %v3237 = vpack.c.bf16 %v3178, %v3175
    %v3238 = vpack.c.bf16 %v3186, %v3183
    %v3239 = vpack.c.bf16 %v3194, %v3191
    %v3240 = vpack.c.bf16 %v3202, %v3199
    %v3241 = vpack.c.bf16 %v3210, %v3207
    %v3242 = vpack.c.bf16 %v3218, %v3215
    %v3243 = vpack.c.bf16 %v3226, %v3223
    %v3244 = vpack.c.bf16 %v3234, %v3231
    %3245 = vmatprep.subr.bf16.mxu0 0
    %3246 = vmatpush1.bf16.msra.mxu0 %v437
    %3247 = vmatprep.subr.bf16.mxu0 0
    %3248 = vmatpush1.bf16.msra.mxu0 %v436
    %3249 = vmatprep.subr.bf16.mxu0 0
    %3250 = vmatpush1.bf16.msra.mxu0 %v435
    %3251 = vmatprep.subr.bf16.mxu0 0
    %3252 = vmatpush1.bf16.msra.mxu0 %v434
    %3253 = vmatprep.subr.bf16.mxu0 0
    %3254 = vmatpush1.bf16.msra.mxu0 %v433
    %3255 = vmatprep.subr.bf16.mxu0 0
    %3256 = vmatpush1.bf16.msra.mxu0 %v432
    %3257 = vmatprep.subr.bf16.mxu0 0
    %3258 = vmatpush1.bf16.msra.mxu0 %v431
    %3259 = vmatprep.subr.bf16.mxu0 0
    %3260 = vmatpush1.bf16.msra.mxu0 %v430
    %3261 = vmatprep.subr.bf16.mxu0 0
    %3262 = vmatpush2.bf16.msra.mxu0 0
    %3263 = vmatprep.subr.bf16.mxu0 0
    %3264 = vmatpush2.bf16.msra.mxu0 0
    %3265 = vmatprep.subr.bf16.mxu0 0
    %3266 = vmatpush2.bf16.msra.mxu0 0
    %3267 = vmatprep.subr.bf16.mxu0 0
    %3268 = vmatpush2.bf16.msra.mxu0 0
    %3269 = vmatprep.subr.bf16.mxu0 0
    %3270 = vmatpush2.bf16.msra.mxu0 0
    %3271 = vmatprep.subr.bf16.mxu0 0
    %3272 = vmatpush2.bf16.msra.mxu0 0
    %3273 = vmatprep.subr.bf16.mxu0 0
    %3274 = vmatpush2.bf16.msra.mxu0 0
    %3275 = vmatprep.subr.bf16.mxu0 0
    %3276 = vmatpush2.bf16.msra.mxu0 0
    %3277 = vmatprep.mubr.bf16.mxu0 0
    %3278 = vmatmul.mubr.bf16.gmra.mxu0 %v3237
    %v3279 = vpop.f32.mrf.mxu0
    %v3280 = vadd.f32 %v3116, %v3279
    %v3281 = vpop.f32.mrf.mxu0
    %v3282 = vpop.f32.mrf.mxu0
    %v3283 = vadd.f32 %v3117, %v3282
    %v3284 = vpop.f32.mrf.mxu0
    %3285 = vmatprep.mubr.bf16.mxu0 0
    %3286 = vmatmul.mubr.bf16.gmra.mxu0 %v3238
    %v3287 = vpop.f32.mrf.mxu0
    %v3288 = vadd.f32 %v3118, %v3287
    %v3289 = vpop.f32.mrf.mxu0
    %v3290 = vpop.f32.mrf.mxu0
    %v3291 = vadd.f32 %v3119, %v3290
    %v3292 = vpop.f32.mrf.mxu0
    %3293 = vmatprep.mubr.bf16.mxu0 0
    %3294 = vmatmul.mubr.bf16.gmra.mxu0 %v3239
    %v3295 = vpop.f32.mrf.mxu0
    %v3296 = vadd.f32 %v3120, %v3295
    %v3297 = vpop.f32.mrf.mxu0
    %v3298 = vpop.f32.mrf.mxu0
    %v3299 = vadd.f32 %v3121, %v3298
    %v3300 = vpop.f32.mrf.mxu0
    %3301 = vmatprep.mubr.bf16.mxu0 0
    %3302 = vmatmul.mubr.bf16.gmra.mxu0 %v3240
    %v3303 = vpop.f32.mrf.mxu0
    %v3304 = vadd.f32 %v3122, %v3303
    %v3305 = vpop.f32.mrf.mxu0
    %v3306 = vpop.f32.mrf.mxu0
    %v3307 = vadd.f32 %v3123, %v3306
    %v3308 = vpop.f32.mrf.mxu0
    %3309 = vmatprep.mubr.bf16.mxu0 0
    %3310 = vmatmul.mubr.bf16.gmra.mxu0 %v3241
    %v3311 = vpop.f32.mrf.mxu0
    %v3312 = vadd.f32 %v3124, %v3311
    %v3313 = vpop.f32.mrf.mxu0
    %v3314 = vpop.f32.mrf.mxu0
    %v3315 = vadd.f32 %v3125, %v3314
    %v3316 = vpop.f32.mrf.mxu0
    %3317 = vmatprep.mubr.bf16.mxu0 0
    %3318 = vmatmul.mubr.bf16.gmra.mxu0 %v3242
    %v3319 = vpop.f32.mrf.mxu0
    %v3320 = vadd.f32 %v3126, %v3319
    %v3321 = vpop.f32.mrf.mxu0
    %v3322 = vpop.f32.mrf.mxu0
    %v3323 = vadd.f32 %v3127, %v3322
    %v3324 = vpop.f32.mrf.mxu0
    %3325 = vmatprep.mubr.bf16.mxu0 0
    %3326 = vmatmul.mubr.bf16.gmra.mxu0 %v3243
    %v3327 = vpop.f32.mrf.mxu0
    %v3328 = vadd.f32 %v3128, %v3327
    %v3329 = vpop.f32.mrf.mxu0
    %v3330 = vpop.f32.mrf.mxu0
    %v3331 = vadd.f32 %v3129, %v3330
    %v3332 = vpop.f32.mrf.mxu0
    %3333 = vmatprep.mubr.bf16.mxu0 0
    %3334 = vmatmul.mubr.bf16.gmra.mxu0 %v3244
    %v3335 = vpop.f32.mrf.mxu0
    %v3336 = vadd.f32 %v3130, %v3335
    %v3337 = vpop.f32.mrf.mxu0
    %v3338 = vpop.f32.mrf.mxu0
    %v3339 = vadd.f32 %v3131, %v3338
    %v3340 = vpop.f32.mrf.mxu0
    %3341 = vdwg.mxu0
    %v3342 = vpack.c.bf16 %v3283, %v3280
    %v3343 = vpack.c.bf16 %v3291, %v3288
    %v3344 = vpack.c.bf16 %v3299, %v3296
    %v3345 = vpack.c.bf16 %v3307, %v3304
    %v3346 = vpack.c.bf16 %v3315, %v3312
    %v3347 = vpack.c.bf16 %v3323, %v3320
    %v3348 = vpack.c.bf16 %v3331, %v3328
    %v3349 = vpack.c.bf16 %v3339, %v3336
    %3350 = vmatprep.subr.bf16.mxu0 0
    %3351 = vmatpush1.bf16.msra.mxu0 %v437
    %3352 = vmatprep.subr.bf16.mxu0 0
    %3353 = vmatpush1.bf16.msra.mxu0 %v436
    %3354 = vmatprep.subr.bf16.mxu0 0
    %3355 = vmatpush1.bf16.msra.mxu0 %v435
    %3356 = vmatprep.subr.bf16.mxu0 0
    %3357 = vmatpush1.bf16.msra.mxu0 %v434
    %3358 = vmatprep.subr.bf16.mxu0 0
    %3359 = vmatpush1.bf16.msra.mxu0 %v433
    %3360 = vmatprep.subr.bf16.mxu0 0
    %3361 = vmatpush1.bf16.msra.mxu0 %v432
    %3362 = vmatprep.subr.bf16.mxu0 0
    %3363 = vmatpush1.bf16.msra.mxu0 %v431
    %3364 = vmatprep.subr.bf16.mxu0 0
    %3365 = vmatpush1.bf16.msra.mxu0 %v430
    %3366 = vmatprep.subr.bf16.mxu0 0
    %3367 = vmatpush2.bf16.msra.mxu0 0
    %3368 = vmatprep.subr.bf16.mxu0 0
    %3369 = vmatpush2.bf16.msra.mxu0 0
    %3370 = vmatprep.subr.bf16.mxu0 0
    %3371 = vmatpush2.bf16.msra.mxu0 0
    %3372 = vmatprep.subr.bf16.mxu0 0
    %3373 = vmatpush2.bf16.msra.mxu0 0
    %3374 = vmatprep.subr.bf16.mxu0 0
    %3375 = vmatpush2.bf16.msra.mxu0 0
    %3376 = vmatprep.subr.bf16.mxu0 0
    %3377 = vmatpush2.bf16.msra.mxu0 0
    %3378 = vmatprep.subr.bf16.mxu0 0
    %3379 = vmatpush2.bf16.msra.mxu0 0
    %3380 = vmatprep.subr.bf16.mxu0 0
    %3381 = vmatpush2.bf16.msra.mxu0 0
    %3382 = vmatprep.mubr.bf16.mxu0 0
    %3383 = vmatmul.mubr.bf16.gmra.mxu0 %v3342
    %v3384 = vpop.f32.mrf.mxu0
    %v3385 = vadd.f32 %v3116, %v3384
    %v3386 = vpop.f32.mrf.mxu0
    %v3387 = vpop.f32.mrf.mxu0
    %v3388 = vadd.f32 %v3117, %v3387
    %v3389 = vpop.f32.mrf.mxu0
    %3390 = vmatprep.mubr.bf16.mxu0 0
    %3391 = vmatmul.mubr.bf16.gmra.mxu0 %v3343
    %v3392 = vpop.f32.mrf.mxu0
    %v3393 = vadd.f32 %v3118, %v3392
    %v3394 = vpop.f32.mrf.mxu0
    %v3395 = vpop.f32.mrf.mxu0
    %v3396 = vadd.f32 %v3119, %v3395
    %v3397 = vpop.f32.mrf.mxu0
    %3398 = vmatprep.mubr.bf16.mxu0 0
    %3399 = vmatmul.mubr.bf16.gmra.mxu0 %v3344
    %v3400 = vpop.f32.mrf.mxu0
    %v3401 = vadd.f32 %v3120, %v3400
    %v3402 = vpop.f32.mrf.mxu0
    %v3403 = vpop.f32.mrf.mxu0
    %v3404 = vadd.f32 %v3121, %v3403
    %v3405 = vpop.f32.mrf.mxu0
    %3406 = vmatprep.mubr.bf16.mxu0 0
    %3407 = vmatmul.mubr.bf16.gmra.mxu0 %v3345
    %v3408 = vpop.f32.mrf.mxu0
    %v3409 = vadd.f32 %v3122, %v3408
    %v3410 = vpop.f32.mrf.mxu0
    %v3411 = vpop.f32.mrf.mxu0
    %v3412 = vadd.f32 %v3123, %v3411
    %v3413 = vpop.f32.mrf.mxu0
    %3414 = vmatprep.mubr.bf16.mxu0 0
    %3415 = vmatmul.mubr.bf16.gmra.mxu0 %v3346
    %v3416 = vpop.f32.mrf.mxu0
    %v3417 = vadd.f32 %v3124, %v3416
    %v3418 = vpop.f32.mrf.mxu0
    %v3419 = vpop.f32.mrf.mxu0
    %v3420 = vadd.f32 %v3125, %v3419
    %v3421 = vpop.f32.mrf.mxu0
    %3422 = vmatprep.mubr.bf16.mxu0 0
    %3423 = vmatmul.mubr.bf16.gmra.mxu0 %v3347
    %v3424 = vpop.f32.mrf.mxu0
    %v3425 = vadd.f32 %v3126, %v3424
    %v3426 = vpop.f32.mrf.mxu0
    %v3427 = vpop.f32.mrf.mxu0
    %v3428 = vadd.f32 %v3127, %v3427
    %v3429 = vpop.f32.mrf.mxu0
    %3430 = vmatprep.mubr.bf16.mxu0 0
    %3431 = vmatmul.mubr.bf16.gmra.mxu0 %v3348
    %v3432 = vpop.f32.mrf.mxu0
    %v3433 = vadd.f32 %v3128, %v3432
    %v3434 = vpop.f32.mrf.mxu0
    %v3435 = vpop.f32.mrf.mxu0
    %v3436 = vadd.f32 %v3129, %v3435
    %v3437 = vpop.f32.mrf.mxu0
    %3438 = vmatprep.mubr.bf16.mxu0 0
    %3439 = vmatmul.mubr.bf16.gmra.mxu0 %v3349
    %v3440 = vpop.f32.mrf.mxu0
    %v3441 = vadd.f32 %v3130, %v3440
    %v3442 = vpop.f32.mrf.mxu0
    %v3443 = vpop.f32.mrf.mxu0
    %v3444 = vadd.f32 %v3131, %v3443
    %v3445 = vpop.f32.mrf.mxu0
    %3446 = vdwg.mxu0
    %v3447 = vpack.c.bf16 %v3388, %v3385
    %v3448 = vpack.c.bf16 %v3396, %v3393
    %v3449 = vpack.c.bf16 %v3404, %v3401
    %v3450 = vpack.c.bf16 %v3412, %v3409
    %v3451 = vpack.c.bf16 %v3420, %v3417
    %v3452 = vpack.c.bf16 %v3428, %v3425
    %v3453 = vpack.c.bf16 %v3436, %v3433
    %v3454 = vpack.c.bf16 %v3444, %v3441
    %3455 = vmatprep.subr.bf16.mxu0 0
    %3456 = vmatpush1.bf16.msra.mxu0 %v437
    %3457 = vmatprep.subr.bf16.mxu0 0
    %3458 = vmatpush1.bf16.msra.mxu0 %v436
    %3459 = vmatprep.subr.bf16.mxu0 0
    %3460 = vmatpush1.bf16.msra.mxu0 %v435
    %3461 = vmatprep.subr.bf16.mxu0 0
    %3462 = vmatpush1.bf16.msra.mxu0 %v434
    %3463 = vmatprep.subr.bf16.mxu0 0
    %3464 = vmatpush1.bf16.msra.mxu0 %v433
    %3465 = vmatprep.subr.bf16.mxu0 0
    %3466 = vmatpush1.bf16.msra.mxu0 %v432
    %3467 = vmatprep.subr.bf16.mxu0 0
    %3468 = vmatpush1.bf16.msra.mxu0 %v431
    %3469 = vmatprep.subr.bf16.mxu0 0
    %3470 = vmatpush1.bf16.msra.mxu0 %v430
    %3471 = vmatprep.subr.bf16.mxu0 0
    %3472 = vmatpush2.bf16.msra.mxu0 0
    %3473 = vmatprep.subr.bf16.mxu0 0
    %3474 = vmatpush2.bf16.msra.mxu0 0
    %3475 = vmatprep.subr.bf16.mxu0 0
    %3476 = vmatpush2.bf16.msra.mxu0 0
    %3477 = vmatprep.subr.bf16.mxu0 0
    %3478 = vmatpush2.bf16.msra.mxu0 0
    %3479 = vmatprep.subr.bf16.mxu0 0
    %3480 = vmatpush2.bf16.msra.mxu0 0
    %3481 = vmatprep.subr.bf16.mxu0 0
    %3482 = vmatpush2.bf16.msra.mxu0 0
    %3483 = vmatprep.subr.bf16.mxu0 0
    %3484 = vmatpush2.bf16.msra.mxu0 0
    %3485 = vmatprep.subr.bf16.mxu0 0
    %3486 = vmatpush2.bf16.msra.mxu0 0
    %3487 = vmatprep.mubr.bf16.mxu0 0
    %3488 = vmatmul.mubr.bf16.gmra.mxu0 %v3447
    %v3489 = vpop.f32.mrf.mxu0
    %v3490 = vadd.f32 %v3116, %v3489
    %v3491 = vpop.f32.mrf.mxu0
    %v3492 = vpop.f32.mrf.mxu0
    %v3493 = vadd.f32 %v3117, %v3492
    %v3494 = vpop.f32.mrf.mxu0
    %3495 = vmatprep.mubr.bf16.mxu0 0
    %3496 = vmatmul.mubr.bf16.gmra.mxu0 %v3448
    %v3497 = vpop.f32.mrf.mxu0
    %v3498 = vadd.f32 %v3118, %v3497
    %v3499 = vpop.f32.mrf.mxu0
    %v3500 = vpop.f32.mrf.mxu0
    %v3501 = vadd.f32 %v3119, %v3500
    %v3502 = vpop.f32.mrf.mxu0
    %3503 = vmatprep.mubr.bf16.mxu0 0
    %3504 = vmatmul.mubr.bf16.gmra.mxu0 %v3449
    %v3505 = vpop.f32.mrf.mxu0
    %v3506 = vadd.f32 %v3120, %v3505
    %v3507 = vpop.f32.mrf.mxu0
    %v3508 = vpop.f32.mrf.mxu0
    %v3509 = vadd.f32 %v3121, %v3508
    %v3510 = vpop.f32.mrf.mxu0
    %3511 = vmatprep.mubr.bf16.mxu0 0
    %3512 = vmatmul.mubr.bf16.gmra.mxu0 %v3450
    %v3513 = vpop.f32.mrf.mxu0
    %v3514 = vadd.f32 %v3122, %v3513
    %v3515 = vpop.f32.mrf.mxu0
    %v3516 = vpop.f32.mrf.mxu0
    %v3517 = vadd.f32 %v3123, %v3516
    %v3518 = vpop.f32.mrf.mxu0
    %3519 = vmatprep.mubr.bf16.mxu0 0
    %3520 = vmatmul.mubr.bf16.gmra.mxu0 %v3451
    %v3521 = vpop.f32.mrf.mxu0
    %v3522 = vadd.f32 %v3124, %v3521
    %v3523 = vpop.f32.mrf.mxu0
    %v3524 = vpop.f32.mrf.mxu0
    %v3525 = vadd.f32 %v3125, %v3524
    %v3526 = vpop.f32.mrf.mxu0
    %3527 = vmatprep.mubr.bf16.mxu0 0
    %3528 = vmatmul.mubr.bf16.gmra.mxu0 %v3452
    %v3529 = vpop.f32.mrf.mxu0
    %v3530 = vadd.f32 %v3126, %v3529
    %v3531 = vpop.f32.mrf.mxu0
    %v3532 = vpop.f32.mrf.mxu0
    %v3533 = vadd.f32 %v3127, %v3532
    %v3534 = vpop.f32.mrf.mxu0
    %3535 = vmatprep.mubr.bf16.mxu0 0
    %3536 = vmatmul.mubr.bf16.gmra.mxu0 %v3453
    %v3537 = vpop.f32.mrf.mxu0
    %v3538 = vadd.f32 %v3128, %v3537
    %v3539 = vpop.f32.mrf.mxu0
    %v3540 = vpop.f32.mrf.mxu0
    %v3541 = vadd.f32 %v3129, %v3540
    %v3542 = vpop.f32.mrf.mxu0
    %3543 = vmatprep.mubr.bf16.mxu0 0
    %3544 = vmatmul.mubr.bf16.gmra.mxu0 %v3454
    %v3545 = vpop.f32.mrf.mxu0
    %v3546 = vadd.f32 %v3130, %v3545
    %v3547 = vpop.f32.mrf.mxu0
    %v3548 = vpop.f32.mrf.mxu0
    %v3549 = vadd.f32 %v3131, %v3548
    %v3550 = vpop.f32.mrf.mxu0
    %3551 = vdwg.mxu0
    %v3552 = vpack.c.bf16 %v3493, %v3490
    %v3553 = vpack.c.bf16 %v3501, %v3498
    %v3554 = vpack.c.bf16 %v3509, %v3506
    %v3555 = vpack.c.bf16 %v3517, %v3514
    %v3556 = vpack.c.bf16 %v3525, %v3522
    %v3557 = vpack.c.bf16 %v3533, %v3530
    %v3558 = vpack.c.bf16 %v3541, %v3538
    %v3559 = vpack.c.bf16 %v3549, %v3546
    %3560 = vmatprep.subr.bf16.mxu0 0
    %3561 = vmatpush1.bf16.msra.mxu0 %v437
    %3562 = vmatprep.subr.bf16.mxu0 0
    %3563 = vmatpush1.bf16.msra.mxu0 %v436
    %3564 = vmatprep.subr.bf16.mxu0 0
    %3565 = vmatpush1.bf16.msra.mxu0 %v435
    %3566 = vmatprep.subr.bf16.mxu0 0
    %3567 = vmatpush1.bf16.msra.mxu0 %v434
    %3568 = vmatprep.subr.bf16.mxu0 0
    %3569 = vmatpush1.bf16.msra.mxu0 %v433
    %3570 = vmatprep.subr.bf16.mxu0 0
    %3571 = vmatpush1.bf16.msra.mxu0 %v432
    %3572 = vmatprep.subr.bf16.mxu0 0
    %3573 = vmatpush1.bf16.msra.mxu0 %v431
    %3574 = vmatprep.subr.bf16.mxu0 0
    %3575 = vmatpush1.bf16.msra.mxu0 %v430
    %3576 = vmatprep.subr.bf16.mxu0 0
    %3577 = vmatpush2.bf16.msra.mxu0 0
    %3578 = vmatprep.subr.bf16.mxu0 0
    %3579 = vmatpush2.bf16.msra.mxu0 0
    %3580 = vmatprep.subr.bf16.mxu0 0
    %3581 = vmatpush2.bf16.msra.mxu0 0
    %3582 = vmatprep.subr.bf16.mxu0 0
    %3583 = vmatpush2.bf16.msra.mxu0 0
    %3584 = vmatprep.subr.bf16.mxu0 0
    %3585 = vmatpush2.bf16.msra.mxu0 0
    %3586 = vmatprep.subr.bf16.mxu0 0
    %3587 = vmatpush2.bf16.msra.mxu0 0
    %3588 = vmatprep.subr.bf16.mxu0 0
    %3589 = vmatpush2.bf16.msra.mxu0 0
    %3590 = vmatprep.subr.bf16.mxu0 0
    %3591 = vmatpush2.bf16.msra.mxu0 0
    %3592 = vmatprep.mubr.bf16.mxu0 0
    %3593 = vmatmul.mubr.bf16.gmra.mxu0 %v3552
    %v3594 = vpop.f32.mrf.mxu0
    %v3595 = vadd.f32 %v3116, %v3594
    %v3596 = vpop.f32.mrf.mxu0
    %v3597 = vpop.f32.mrf.mxu0
    %v3598 = vadd.f32 %v3117, %v3597
    %v3599 = vpop.f32.mrf.mxu0
    %3600 = vmatprep.mubr.bf16.mxu0 0
    %3601 = vmatmul.mubr.bf16.gmra.mxu0 %v3553
    %v3602 = vpop.f32.mrf.mxu0
    %v3603 = vadd.f32 %v3118, %v3602
    %v3604 = vpop.f32.mrf.mxu0
    %v3605 = vpop.f32.mrf.mxu0
    %v3606 = vadd.f32 %v3119, %v3605
    %v3607 = vpop.f32.mrf.mxu0
    %3608 = vmatprep.mubr.bf16.mxu0 0
    %3609 = vmatmul.mubr.bf16.gmra.mxu0 %v3554
    %v3610 = vpop.f32.mrf.mxu0
    %v3611 = vadd.f32 %v3120, %v3610
    %v3612 = vpop.f32.mrf.mxu0
    %v3613 = vpop.f32.mrf.mxu0
    %v3614 = vadd.f32 %v3121, %v3613
    %v3615 = vpop.f32.mrf.mxu0
    %3616 = vmatprep.mubr.bf16.mxu0 0
    %3617 = vmatmul.mubr.bf16.gmra.mxu0 %v3555
    %v3618 = vpop.f32.mrf.mxu0
    %v3619 = vadd.f32 %v3122, %v3618
    %v3620 = vpop.f32.mrf.mxu0
    %v3621 = vpop.f32.mrf.mxu0
    %v3622 = vadd.f32 %v3123, %v3621
    %v3623 = vpop.f32.mrf.mxu0
    %3624 = vmatprep.mubr.bf16.mxu0 0
    %3625 = vmatmul.mubr.bf16.gmra.mxu0 %v3556
    %v3626 = vpop.f32.mrf.mxu0
    %v3627 = vadd.f32 %v3124, %v3626
    %v3628 = vpop.f32.mrf.mxu0
    %v3629 = vpop.f32.mrf.mxu0
    %v3630 = vadd.f32 %v3125, %v3629
    %v3631 = vpop.f32.mrf.mxu0
    %3632 = vmatprep.mubr.bf16.mxu0 0
    %3633 = vmatmul.mubr.bf16.gmra.mxu0 %v3557
    %v3634 = vpop.f32.mrf.mxu0
    %v3635 = vadd.f32 %v3126, %v3634
    %v3636 = vpop.f32.mrf.mxu0
    %v3637 = vpop.f32.mrf.mxu0
    %v3638 = vadd.f32 %v3127, %v3637
    %v3639 = vpop.f32.mrf.mxu0
    %3640 = vmatprep.mubr.bf16.mxu0 0
    %3641 = vmatmul.mubr.bf16.gmra.mxu0 %v3558
    %v3642 = vpop.f32.mrf.mxu0
    %v3643 = vadd.f32 %v3128, %v3642
    %v3644 = vpop.f32.mrf.mxu0
    %v3645 = vpop.f32.mrf.mxu0
    %v3646 = vadd.f32 %v3129, %v3645
    %v3647 = vpop.f32.mrf.mxu0
    %3648 = vmatprep.mubr.bf16.mxu0 0
    %3649 = vmatmul.mubr.bf16.gmra.mxu0 %v3559
    %v3650 = vpop.f32.mrf.mxu0
    %v3651 = vadd.f32 %v3130, %v3650
    %v3652 = vpop.f32.mrf.mxu0
    %v3653 = vpop.f32.mrf.mxu0
    %v3654 = vadd.f32 %v3131, %v3653
    %v3655 = vpop.f32.mrf.mxu0
    %3656 = vdwg.mxu0
    %v3657 = vpack.c.bf16 %v3598, %v3595
    %v3658 = vpack.c.bf16 %v3606, %v3603
    %v3659 = vpack.c.bf16 %v3614, %v3611
    %v3660 = vpack.c.bf16 %v3622, %v3619
    %v3661 = vpack.c.bf16 %v3630, %v3627
    %v3662 = vpack.c.bf16 %v3638, %v3635
    %v3663 = vpack.c.bf16 %v3646, %v3643
    %v3664 = vpack.c.bf16 %v3654, %v3651
    %3665 = vmatprep.subr.bf16.mxu0 0
    %3666 = vmatpush1.bf16.msra.mxu0 %v437
    %3667 = vmatprep.subr.bf16.mxu0 0
    %3668 = vmatpush1.bf16.msra.mxu0 %v436
    %3669 = vmatprep.subr.bf16.mxu0 0
    %3670 = vmatpush1.bf16.msra.mxu0 %v435
    %3671 = vmatprep.subr.bf16.mxu0 0
    %3672 = vmatpush1.bf16.msra.mxu0 %v434
    %3673 = vmatprep.subr.bf16.mxu0 0
    %3674 = vmatpush1.bf16.msra.mxu0 %v433
    %3675 = vmatprep.subr.bf16.mxu0 0
    %3676 = vmatpush1.bf16.msra.mxu0 %v432
    %3677 = vmatprep.subr.bf16.mxu0 0
    %3678 = vmatpush1.bf16.msra.mxu0 %v431
    %3679 = vmatprep.subr.bf16.mxu0 0
    %3680 = vmatpush1.bf16.msra.mxu0 %v430
    %3681 = vmatprep.subr.bf16.mxu0 0
    %3682 = vmatpush2.bf16.msra.mxu0 0
    %3683 = vmatprep.subr.bf16.mxu0 0
    %3684 = vmatpush2.bf16.msra.mxu0 0
    %3685 = vmatprep.subr.bf16.mxu0 0
    %3686 = vmatpush2.bf16.msra.mxu0 0
    %3687 = vmatprep.subr.bf16.mxu0 0
    %3688 = vmatpush2.bf16.msra.mxu0 0
    %3689 = vmatprep.subr.bf16.mxu0 0
    %3690 = vmatpush2.bf16.msra.mxu0 0
    %3691 = vmatprep.subr.bf16.mxu0 0
    %3692 = vmatpush2.bf16.msra.mxu0 0
    %3693 = vmatprep.subr.bf16.mxu0 0
    %3694 = vmatpush2.bf16.msra.mxu0 0
    %3695 = vmatprep.subr.bf16.mxu0 0
    %3696 = vmatpush2.bf16.msra.mxu0 0
    %3697 = vmatprep.mubr.bf16.mxu0 0
    %3698 = vmatmul.mubr.bf16.gmra.mxu0 %v3657
    %v3699 = vpop.f32.mrf.mxu0
    %v3700 = vadd.f32 %v3116, %v3699
    %v3701 = vpop.f32.mrf.mxu0
    %v3702 = vpop.f32.mrf.mxu0
    %v3703 = vadd.f32 %v3117, %v3702
    %v3704 = vpop.f32.mrf.mxu0
    %3705 = vmatprep.mubr.bf16.mxu0 0
    %3706 = vmatmul.mubr.bf16.gmra.mxu0 %v3658
    %v3707 = vpop.f32.mrf.mxu0
    %v3708 = vadd.f32 %v3118, %v3707
    %v3709 = vpop.f32.mrf.mxu0
    %v3710 = vpop.f32.mrf.mxu0
    %v3711 = vadd.f32 %v3119, %v3710
    %v3712 = vpop.f32.mrf.mxu0
    %3713 = vmatprep.mubr.bf16.mxu0 0
    %3714 = vmatmul.mubr.bf16.gmra.mxu0 %v3659
    %v3715 = vpop.f32.mrf.mxu0
    %v3716 = vadd.f32 %v3120, %v3715
    %v3717 = vpop.f32.mrf.mxu0
    %v3718 = vpop.f32.mrf.mxu0
    %v3719 = vadd.f32 %v3121, %v3718
    %v3720 = vpop.f32.mrf.mxu0
    %3721 = vmatprep.mubr.bf16.mxu0 0
    %3722 = vmatmul.mubr.bf16.gmra.mxu0 %v3660
    %v3723 = vpop.f32.mrf.mxu0
    %v3724 = vadd.f32 %v3122, %v3723
    %v3725 = vpop.f32.mrf.mxu0
    %v3726 = vpop.f32.mrf.mxu0
    %v3727 = vadd.f32 %v3123, %v3726
    %v3728 = vpop.f32.mrf.mxu0
    %3729 = vmatprep.mubr.bf16.mxu0 0
    %3730 = vmatmul.mubr.bf16.gmra.mxu0 %v3661
    %v3731 = vpop.f32.mrf.mxu0
    %v3732 = vadd.f32 %v3124, %v3731
    %v3733 = vpop.f32.mrf.mxu0
    %v3734 = vpop.f32.mrf.mxu0
    %v3735 = vadd.f32 %v3125, %v3734
    %v3736 = vpop.f32.mrf.mxu0
    %3737 = vmatprep.mubr.bf16.mxu0 0
    %3738 = vmatmul.mubr.bf16.gmra.mxu0 %v3662
    %v3739 = vpop.f32.mrf.mxu0
    %v3740 = vadd.f32 %v3126, %v3739
    %v3741 = vpop.f32.mrf.mxu0
    %v3742 = vpop.f32.mrf.mxu0
    %v3743 = vadd.f32 %v3127, %v3742
    %v3744 = vpop.f32.mrf.mxu0
    %3745 = vmatprep.mubr.bf16.mxu0 0
    %3746 = vmatmul.mubr.bf16.gmra.mxu0 %v3663
    %v3747 = vpop.f32.mrf.mxu0
    %v3748 = vadd.f32 %v3128, %v3747
    %v3749 = vpop.f32.mrf.mxu0
    %v3750 = vpop.f32.mrf.mxu0
    %v3751 = vadd.f32 %v3129, %v3750
    %v3752 = vpop.f32.mrf.mxu0
    %3753 = vmatprep.mubr.bf16.mxu0 0
    %3754 = vmatmul.mubr.bf16.gmra.mxu0 %v3664
    %v3755 = vpop.f32.mrf.mxu0
    %v3756 = vadd.f32 %v3130, %v3755
    %v3757 = vpop.f32.mrf.mxu0
    %v3758 = vpop.f32.mrf.mxu0
    %v3759 = vadd.f32 %v3131, %v3758
    %v3760 = vpop.f32.mrf.mxu0
    %3761 = vdwg.mxu0
    %v3762 = vpack.c.bf16 %v3703, %v3700
    %v3763 = vpack.c.bf16 %v3711, %v3708
    %v3764 = vpack.c.bf16 %v3719, %v3716
    %v3765 = vpack.c.bf16 %v3727, %v3724
    %v3766 = vpack.c.bf16 %v3735, %v3732
    %v3767 = vpack.c.bf16 %v3743, %v3740
    %v3768 = vpack.c.bf16 %v3751, %v3748
    %v3769 = vpack.c.bf16 %v3759, %v3756
    %3770 = vmatprep.subr.bf16.mxu0 0
    %3771 = vmatpush1.bf16.msra.mxu0 %v437
    %3772 = vmatprep.subr.bf16.mxu0 0
    %3773 = vmatpush1.bf16.msra.mxu0 %v436
    %3774 = vmatprep.subr.bf16.mxu0 0
    %3775 = vmatpush1.bf16.msra.mxu0 %v435
    %3776 = vmatprep.subr.bf16.mxu0 0
    %3777 = vmatpush1.bf16.msra.mxu0 %v434
    %3778 = vmatprep.subr.bf16.mxu0 0
    %3779 = vmatpush1.bf16.msra.mxu0 %v433
    %3780 = vmatprep.subr.bf16.mxu0 0
    %3781 = vmatpush1.bf16.msra.mxu0 %v432
    %3782 = vmatprep.subr.bf16.mxu0 0
    %3783 = vmatpush1.bf16.msra.mxu0 %v431
    %3784 = vmatprep.subr.bf16.mxu0 0
    %3785 = vmatpush1.bf16.msra.mxu0 %v430
    %3786 = vmatprep.subr.bf16.mxu0 0
    %3787 = vmatpush2.bf16.msra.mxu0 0
    %3788 = vmatprep.subr.bf16.mxu0 0
    %3789 = vmatpush2.bf16.msra.mxu0 0
    %3790 = vmatprep.subr.bf16.mxu0 0
    %3791 = vmatpush2.bf16.msra.mxu0 0
    %3792 = vmatprep.subr.bf16.mxu0 0
    %3793 = vmatpush2.bf16.msra.mxu0 0
    %3794 = vmatprep.subr.bf16.mxu0 0
    %3795 = vmatpush2.bf16.msra.mxu0 0
    %3796 = vmatprep.subr.bf16.mxu0 0
    %3797 = vmatpush2.bf16.msra.mxu0 0
    %3798 = vmatprep.subr.bf16.mxu0 0
    %3799 = vmatpush2.bf16.msra.mxu0 0
    %3800 = vmatprep.subr.bf16.mxu0 0
    %3801 = vmatpush2.bf16.msra.mxu0 0
    %3802 = vmatprep.mubr.bf16.mxu0 0
    %3803 = vmatmul.mubr.bf16.gmra.mxu0 %v3762
    %v3804 = vpop.f32.mrf.mxu0
    %v3805 = vadd.f32 %v3116, %v3804
    %v3806 = vpop.f32.mrf.mxu0
    %v3807 = vpop.f32.mrf.mxu0
    %v3808 = vadd.f32 %v3117, %v3807
    %v3809 = vpop.f32.mrf.mxu0
    %3810 = vmatprep.mubr.bf16.mxu0 0
    %3811 = vmatmul.mubr.bf16.gmra.mxu0 %v3763
    %v3812 = vpop.f32.mrf.mxu0
    %v3813 = vadd.f32 %v3118, %v3812
    %v3814 = vpop.f32.mrf.mxu0
    %v3815 = vpop.f32.mrf.mxu0
    %v3816 = vadd.f32 %v3119, %v3815
    %v3817 = vpop.f32.mrf.mxu0
    %3818 = vmatprep.mubr.bf16.mxu0 0
    %3819 = vmatmul.mubr.bf16.gmra.mxu0 %v3764
    %v3820 = vpop.f32.mrf.mxu0
    %v3821 = vadd.f32 %v3120, %v3820
    %v3822 = vpop.f32.mrf.mxu0
    %v3823 = vpop.f32.mrf.mxu0
    %v3824 = vadd.f32 %v3121, %v3823
    %v3825 = vpop.f32.mrf.mxu0
    %3826 = vmatprep.mubr.bf16.mxu0 0
    %3827 = vmatmul.mubr.bf16.gmra.mxu0 %v3765
    %v3828 = vpop.f32.mrf.mxu0
    %v3829 = vadd.f32 %v3122, %v3828
    %v3830 = vpop.f32.mrf.mxu0
    %v3831 = vpop.f32.mrf.mxu0
    %v3832 = vadd.f32 %v3123, %v3831
    %v3833 = vpop.f32.mrf.mxu0
    %3834 = vmatprep.mubr.bf16.mxu0 0
    %3835 = vmatmul.mubr.bf16.gmra.mxu0 %v3766
    %v3836 = vpop.f32.mrf.mxu0
    %v3837 = vadd.f32 %v3124, %v3836
    %v3838 = vpop.f32.mrf.mxu0
    %v3839 = vpop.f32.mrf.mxu0
    %v3840 = vadd.f32 %v3125, %v3839
    %v3841 = vpop.f32.mrf.mxu0
    %3842 = vmatprep.mubr.bf16.mxu0 0
    %3843 = vmatmul.mubr.bf16.gmra.mxu0 %v3767
    %v3844 = vpop.f32.mrf.mxu0
    %v3845 = vadd.f32 %v3126, %v3844
    %v3846 = vpop.f32.mrf.mxu0
    %v3847 = vpop.f32.mrf.mxu0
    %v3848 = vadd.f32 %v3127, %v3847
    %v3849 = vpop.f32.mrf.mxu0
    %3850 = vmatprep.mubr.bf16.mxu0 0
    %3851 = vmatmul.mubr.bf16.gmra.mxu0 %v3768
    %v3852 = vpop.f32.mrf.mxu0
    %v3853 = vadd.f32 %v3128, %v3852
    %v3854 = vpop.f32.mrf.mxu0
    %v3855 = vpop.f32.mrf.mxu0
    %v3856 = vadd.f32 %v3129, %v3855
    %v3857 = vpop.f32.mrf.mxu0
    %3858 = vmatprep.mubr.bf16.mxu0 0
    %3859 = vmatmul.mubr.bf16.gmra.mxu0 %v3769
    %v3860 = vpop.f32.mrf.mxu0
    %v3861 = vadd.f32 %v3130, %v3860
    %v3862 = vpop.f32.mrf.mxu0
    %v3863 = vpop.f32.mrf.mxu0
    %v3864 = vadd.f32 %v3131, %v3863
    %v3865 = vpop.f32.mrf.mxu0
    %3866 = vdwg.mxu0
    %v3867 = vpack.c.bf16 %v3808, %v3805
    %v3868 = vpack.c.bf16 %v3816, %v3813
    %v3869 = vpack.c.bf16 %v3824, %v3821
    %v3870 = vpack.c.bf16 %v3832, %v3829
    %v3871 = vpack.c.bf16 %v3840, %v3837
    %v3872 = vpack.c.bf16 %v3848, %v3845
    %v3873 = vpack.c.bf16 %v3856, %v3853
    %v3874 = vpack.c.bf16 %v3864, %v3861
    %3875 = vmatprep.subr.bf16.mxu0 0
    %3876 = vmatpush1.bf16.msra.mxu0 %v437
    %3877 = vmatprep.subr.bf16.mxu0 0
    %3878 = vmatpush1.bf16.msra.mxu0 %v436
    %3879 = vmatprep.subr.bf16.mxu0 0
    %3880 = vmatpush1.bf16.msra.mxu0 %v435
    %3881 = vmatprep.subr.bf16.mxu0 0
    %3882 = vmatpush1.bf16.msra.mxu0 %v434
    %3883 = vmatprep.subr.bf16.mxu0 0
    %3884 = vmatpush1.bf16.msra.mxu0 %v433
    %3885 = vmatprep.subr.bf16.mxu0 0
    %3886 = vmatpush1.bf16.msra.mxu0 %v432
    %3887 = vmatprep.subr.bf16.mxu0 0
    %3888 = vmatpush1.bf16.msra.mxu0 %v431
    %3889 = vmatprep.subr.bf16.mxu0 0
    %3890 = vmatpush1.bf16.msra.mxu0 %v430
    %3891 = vmatprep.subr.bf16.mxu0 0
    %3892 = vmatpush2.bf16.msra.mxu0 0
    %3893 = vmatprep.subr.bf16.mxu0 0
    %3894 = vmatpush2.bf16.msra.mxu0 0
    %3895 = vmatprep.subr.bf16.mxu0 0
    %3896 = vmatpush2.bf16.msra.mxu0 0
    %3897 = vmatprep.subr.bf16.mxu0 0
    %3898 = vmatpush2.bf16.msra.mxu0 0
    %3899 = vmatprep.subr.bf16.mxu0 0
    %3900 = vmatpush2.bf16.msra.mxu0 0
    %3901 = vmatprep.subr.bf16.mxu0 0
    %3902 = vmatpush2.bf16.msra.mxu0 0
    %3903 = vmatprep.subr.bf16.mxu0 0
    %3904 = vmatpush2.bf16.msra.mxu0 0
    %3905 = vmatprep.subr.bf16.mxu0 0
    %3906 = vmatpush2.bf16.msra.mxu0 0
    %3907 = vmatprep.mubr.bf16.mxu0 0
    %3908 = vmatmul.mubr.bf16.gmra.mxu0 %v3867
    %v3909 = vpop.f32.mrf.mxu0
    %v3910 = vadd.f32 %v3116, %v3909
    %v3911 = vpop.f32.mrf.mxu0
    %v3912 = vpop.f32.mrf.mxu0
    %v3913 = vadd.f32 %v3117, %v3912
    %v3914 = vpop.f32.mrf.mxu0
    %3915 = vmatprep.mubr.bf16.mxu0 0
    %3916 = vmatmul.mubr.bf16.gmra.mxu0 %v3868
    %v3917 = vpop.f32.mrf.mxu0
    %v3918 = vadd.f32 %v3118, %v3917
    %v3919 = vpop.f32.mrf.mxu0
    %v3920 = vpop.f32.mrf.mxu0
    %v3921 = vadd.f32 %v3119, %v3920
    %v3922 = vpop.f32.mrf.mxu0
    %3923 = vmatprep.mubr.bf16.mxu0 0
    %3924 = vmatmul.mubr.bf16.gmra.mxu0 %v3869
    %v3925 = vpop.f32.mrf.mxu0
    %v3926 = vadd.f32 %v3120, %v3925
    %v3927 = vpop.f32.mrf.mxu0
    %v3928 = vpop.f32.mrf.mxu0
    %v3929 = vadd.f32 %v3121, %v3928
    %v3930 = vpop.f32.mrf.mxu0
    %3931 = vmatprep.mubr.bf16.mxu0 0
    %3932 = vmatmul.mubr.bf16.gmra.mxu0 %v3870
    %v3933 = vpop.f32.mrf.mxu0
    %v3934 = vadd.f32 %v3122, %v3933
    %v3935 = vpop.f32.mrf.mxu0
    %v3936 = vpop.f32.mrf.mxu0
    %v3937 = vadd.f32 %v3123, %v3936
    %v3938 = vpop.f32.mrf.mxu0
    %3939 = vmatprep.mubr.bf16.mxu0 0
    %3940 = vmatmul.mubr.bf16.gmra.mxu0 %v3871
    %v3941 = vpop.f32.mrf.mxu0
    %v3942 = vadd.f32 %v3124, %v3941
    %v3943 = vpop.f32.mrf.mxu0
    %v3944 = vpop.f32.mrf.mxu0
    %v3945 = vadd.f32 %v3125, %v3944
    %v3946 = vpop.f32.mrf.mxu0
    %3947 = vmatprep.mubr.bf16.mxu0 0
    %3948 = vmatmul.mubr.bf16.gmra.mxu0 %v3872
    %v3949 = vpop.f32.mrf.mxu0
    %v3950 = vadd.f32 %v3126, %v3949
    %v3951 = vpop.f32.mrf.mxu0
    %v3952 = vpop.f32.mrf.mxu0
    %v3953 = vadd.f32 %v3127, %v3952
    %v3954 = vpop.f32.mrf.mxu0
    %3955 = vmatprep.mubr.bf16.mxu0 0
    %3956 = vmatmul.mubr.bf16.gmra.mxu0 %v3873
    %v3957 = vpop.f32.mrf.mxu0
    %v3958 = vadd.f32 %v3128, %v3957
    %v3959 = vpop.f32.mrf.mxu0
    %v3960 = vpop.f32.mrf.mxu0
    %v3961 = vadd.f32 %v3129, %v3960
    %v3962 = vpop.f32.mrf.mxu0
    %3963 = vmatprep.mubr.bf16.mxu0 0
    %3964 = vmatmul.mubr.bf16.gmra.mxu0 %v3874
    %v3965 = vpop.f32.mrf.mxu0
    %v3966 = vadd.f32 %v3130, %v3965
    %v3967 = vpop.f32.mrf.mxu0
    %v3968 = vpop.f32.mrf.mxu0
    %v3969 = vadd.f32 %v3131, %v3968
    %v3970 = vpop.f32.mrf.mxu0
    %3971 = vdwg.mxu0
    %v3972 = vpack.c.bf16 %v3913, %v3910
    %v3973 = vpack.c.bf16 %v3921, %v3918
    %v3974 = vpack.c.bf16 %v3929, %v3926
    %v3975 = vpack.c.bf16 %v3937, %v3934
    %v3976 = vpack.c.bf16 %v3945, %v3942
    %v3977 = vpack.c.bf16 %v3953, %v3950
    %v3978 = vpack.c.bf16 %v3961, %v3958
    %v3979 = vpack.c.bf16 %v3969, %v3966
    %3980 = vmatprep.subr.bf16.mxu0 0
    %3981 = vmatpush1.bf16.msra.mxu0 %v437
    %3982 = vmatprep.subr.bf16.mxu0 0
    %3983 = vmatpush1.bf16.msra.mxu0 %v436
    %3984 = vmatprep.subr.bf16.mxu0 0
    %3985 = vmatpush1.bf16.msra.mxu0 %v435
    %3986 = vmatprep.subr.bf16.mxu0 0
    %3987 = vmatpush1.bf16.msra.mxu0 %v434
    %3988 = vmatprep.subr.bf16.mxu0 0
    %3989 = vmatpush1.bf16.msra.mxu0 %v433
    %3990 = vmatprep.subr.bf16.mxu0 0
    %3991 = vmatpush1.bf16.msra.mxu0 %v432
    %3992 = vmatprep.subr.bf16.mxu0 0
    %3993 = vmatpush1.bf16.msra.mxu0 %v431
    %3994 = vmatprep.subr.bf16.mxu0 0
    %3995 = vmatpush1.bf16.msra.mxu0 %v430
    %3996 = vmatprep.subr.bf16.mxu0 0
    %3997 = vmatpush2.bf16.msra.mxu0 0
    %3998 = vmatprep.subr.bf16.mxu0 0
    %3999 = vmatpush2.bf16.msra.mxu0 0
    %4000 = vmatprep.subr.bf16.mxu0 0
    %4001 = vmatpush2.bf16.msra.mxu0 0
    %4002 = vmatprep.subr.bf16.mxu0 0
    %4003 = vmatpush2.bf16.msra.mxu0 0
    %4004 = vmatprep.subr.bf16.mxu0 0
    %4005 = vmatpush2.bf16.msra.mxu0 0
    %4006 = vmatprep.subr.bf16.mxu0 0
    %4007 = vmatpush2.bf16.msra.mxu0 0
    %4008 = vmatprep.subr.bf16.mxu0 0
    %4009 = vmatpush2.bf16.msra.mxu0 0
    %4010 = vmatprep.subr.bf16.mxu0 0
    %4011 = vmatpush2.bf16.msra.mxu0 0
    %4012 = vmatprep.mubr.bf16.mxu0 0
    %4013 = vmatmul.mubr.bf16.gmra.mxu0 %v3972
    %v4014 = vpop.f32.mrf.mxu0
    %v4015 = vadd.f32 %v3116, %v4014
    %v4016 = vpop.f32.mrf.mxu0
    %v4017 = vpop.f32.mrf.mxu0
    %v4018 = vadd.f32 %v3117, %v4017
    %v4019 = vpop.f32.mrf.mxu0
    %4020 = vmatprep.mubr.bf16.mxu0 0
    %4021 = vmatmul.mubr.bf16.gmra.mxu0 %v3973
    %v4022 = vpop.f32.mrf.mxu0
    %v4023 = vadd.f32 %v3118, %v4022
    %v4024 = vpop.f32.mrf.mxu0
    %v4025 = vpop.f32.mrf.mxu0
    %v4026 = vadd.f32 %v3119, %v4025
    %v4027 = vpop.f32.mrf.mxu0
    %4028 = vmatprep.mubr.bf16.mxu0 0
    %4029 = vmatmul.mubr.bf16.gmra.mxu0 %v3974
    %v4030 = vpop.f32.mrf.mxu0
    %v4031 = vadd.f32 %v3120, %v4030
    %v4032 = vpop.f32.mrf.mxu0
    %v4033 = vpop.f32.mrf.mxu0
    %v4034 = vadd.f32 %v3121, %v4033
    %v4035 = vpop.f32.mrf.mxu0
    %4036 = vmatprep.mubr.bf16.mxu0 0
    %4037 = vmatmul.mubr.bf16.gmra.mxu0 %v3975
    %v4038 = vpop.f32.mrf.mxu0
    %v4039 = vadd.f32 %v3122, %v4038
    %v4040 = vpop.f32.mrf.mxu0
    %v4041 = vpop.f32.mrf.mxu0
    %v4042 = vadd.f32 %v3123, %v4041
    %v4043 = vpop.f32.mrf.mxu0
    %4044 = vmatprep.mubr.bf16.mxu0 0
    %4045 = vmatmul.mubr.bf16.gmra.mxu0 %v3976
    %v4046 = vpop.f32.mrf.mxu0
    %v4047 = vadd.f32 %v3124, %v4046
    %v4048 = vpop.f32.mrf.mxu0
    %v4049 = vpop.f32.mrf.mxu0
    %v4050 = vadd.f32 %v3125, %v4049
    %v4051 = vpop.f32.mrf.mxu0
    %4052 = vmatprep.mubr.bf16.mxu0 0
    %4053 = vmatmul.mubr.bf16.gmra.mxu0 %v3977
    %v4054 = vpop.f32.mrf.mxu0
    %v4055 = vadd.f32 %v3126, %v4054
    %v4056 = vpop.f32.mrf.mxu0
    %v4057 = vpop.f32.mrf.mxu0
    %v4058 = vadd.f32 %v3127, %v4057
    %v4059 = vpop.f32.mrf.mxu0
    %4060 = vmatprep.mubr.bf16.mxu0 0
    %4061 = vmatmul.mubr.bf16.gmra.mxu0 %v3978
    %v4062 = vpop.f32.mrf.mxu0
    %v4063 = vadd.f32 %v3128, %v4062
    %v4064 = vpop.f32.mrf.mxu0
    %v4065 = vpop.f32.mrf.mxu0
    %v4066 = vadd.f32 %v3129, %v4065
    %v4067 = vpop.f32.mrf.mxu0
    %4068 = vmatprep.mubr.bf16.mxu0 0
    %4069 = vmatmul.mubr.bf16.gmra.mxu0 %v3979
    %v4070 = vpop.f32.mrf.mxu0
    %v4071 = vadd.f32 %v3130, %v4070
    %v4072 = vpop.f32.mrf.mxu0
    %v4073 = vpop.f32.mrf.mxu0
    %v4074 = vadd.f32 %v3131, %v4073
    %v4075 = vpop.f32.mrf.mxu0
    %4076 = vdwg.mxu0
    %v4077 = vpack.c.bf16 %v4018, %v4015
    %v4078 = vpack.c.bf16 %v4026, %v4023
    %v4079 = vpack.c.bf16 %v4034, %v4031
    %v4080 = vpack.c.bf16 %v4042, %v4039
    %v4081 = vpack.c.bf16 %v4050, %v4047
    %v4082 = vpack.c.bf16 %v4058, %v4055
    %v4083 = vpack.c.bf16 %v4066, %v4063
    %v4084 = vpack.c.bf16 %v4074, %v4071
    %4085 = vmatprep.subr.bf16.mxu0 0
    %4086 = vmatpush1.bf16.msra.mxu0 %v437
    %4087 = vmatprep.subr.bf16.mxu0 0
    %4088 = vmatpush1.bf16.msra.mxu0 %v436
    %4089 = vmatprep.subr.bf16.mxu0 0
    %4090 = vmatpush1.bf16.msra.mxu0 %v435
    %4091 = vmatprep.subr.bf16.mxu0 0
    %4092 = vmatpush1.bf16.msra.mxu0 %v434
    %4093 = vmatprep.subr.bf16.mxu0 0
    %4094 = vmatpush1.bf16.msra.mxu0 %v433
    %4095 = vmatprep.subr.bf16.mxu0 0
    %4096 = vmatpush1.bf16.msra.mxu0 %v432
    %4097 = vmatprep.subr.bf16.mxu0 0
    %4098 = vmatpush1.bf16.msra.mxu0 %v431
    %4099 = vmatprep.subr.bf16.mxu0 0
    %4100 = vmatpush1.bf16.msra.mxu0 %v430
    %4101 = vmatprep.subr.bf16.mxu0 0
    %4102 = vmatpush2.bf16.msra.mxu0 0
    %4103 = vmatprep.subr.bf16.mxu0 0
    %4104 = vmatpush2.bf16.msra.mxu0 0
    %4105 = vmatprep.subr.bf16.mxu0 0
    %4106 = vmatpush2.bf16.msra.mxu0 0
    %4107 = vmatprep.subr.bf16.mxu0 0
    %4108 = vmatpush2.bf16.msra.mxu0 0
    %4109 = vmatprep.subr.bf16.mxu0 0
    %4110 = vmatpush2.bf16.msra.mxu0 0
    %4111 = vmatprep.subr.bf16.mxu0 0
    %4112 = vmatpush2.bf16.msra.mxu0 0
    %4113 = vmatprep.subr.bf16.mxu0 0
    %4114 = vmatpush2.bf16.msra.mxu0 0
    %4115 = vmatprep.subr.bf16.mxu0 0
    %4116 = vmatpush2.bf16.msra.mxu0 0
    %4117 = vmatprep.mubr.bf16.mxu0 0
    %4118 = vmatmul.mubr.bf16.gmra.mxu0 %v4077
    %v4119 = vpop.f32.mrf.mxu0
    %v4120 = vadd.f32 %v3116, %v4119
    %v4121 = vpop.f32.mrf.mxu0
    %v4122 = vpop.f32.mrf.mxu0
    %v4123 = vadd.f32 %v3117, %v4122
    %v4124 = vpop.f32.mrf.mxu0
    %4125 = vmatprep.mubr.bf16.mxu0 0
    %4126 = vmatmul.mubr.bf16.gmra.mxu0 %v4078
    %v4127 = vpop.f32.mrf.mxu0
    %v4128 = vadd.f32 %v3118, %v4127
    %v4129 = vpop.f32.mrf.mxu0
    %v4130 = vpop.f32.mrf.mxu0
    %v4131 = vadd.f32 %v3119, %v4130
    %v4132 = vpop.f32.mrf.mxu0
    %4133 = vmatprep.mubr.bf16.mxu0 0
    %4134 = vmatmul.mubr.bf16.gmra.mxu0 %v4079
    %v4135 = vpop.f32.mrf.mxu0
    %v4136 = vadd.f32 %v3120, %v4135
    %v4137 = vpop.f32.mrf.mxu0
    %v4138 = vpop.f32.mrf.mxu0
    %v4139 = vadd.f32 %v3121, %v4138
    %v4140 = vpop.f32.mrf.mxu0
    %4141 = vmatprep.mubr.bf16.mxu0 0
    %4142 = vmatmul.mubr.bf16.gmra.mxu0 %v4080
    %v4143 = vpop.f32.mrf.mxu0
    %v4144 = vadd.f32 %v3122, %v4143
    %v4145 = vpop.f32.mrf.mxu0
    %v4146 = vpop.f32.mrf.mxu0
    %v4147 = vadd.f32 %v3123, %v4146
    %v4148 = vpop.f32.mrf.mxu0
    %4149 = vmatprep.mubr.bf16.mxu0 0
    %4150 = vmatmul.mubr.bf16.gmra.mxu0 %v4081
    %v4151 = vpop.f32.mrf.mxu0
    %v4152 = vadd.f32 %v3124, %v4151
    %v4153 = vpop.f32.mrf.mxu0
    %v4154 = vpop.f32.mrf.mxu0
    %v4155 = vadd.f32 %v3125, %v4154
    %v4156 = vpop.f32.mrf.mxu0
    %4157 = vmatprep.mubr.bf16.mxu0 0
    %4158 = vmatmul.mubr.bf16.gmra.mxu0 %v4082
    %v4159 = vpop.f32.mrf.mxu0
    %v4160 = vadd.f32 %v3126, %v4159
    %v4161 = vpop.f32.mrf.mxu0
    %v4162 = vpop.f32.mrf.mxu0
    %v4163 = vadd.f32 %v3127, %v4162
    %v4164 = vpop.f32.mrf.mxu0
    %4165 = vmatprep.mubr.bf16.mxu0 0
    %4166 = vmatmul.mubr.bf16.gmra.mxu0 %v4083
    %v4167 = vpop.f32.mrf.mxu0
    %v4168 = vadd.f32 %v3128, %v4167
    %v4169 = vpop.f32.mrf.mxu0
    %v4170 = vpop.f32.mrf.mxu0
    %v4171 = vadd.f32 %v3129, %v4170
    %v4172 = vpop.f32.mrf.mxu0
    %4173 = vmatprep.mubr.bf16.mxu0 0
    %4174 = vmatmul.mubr.bf16.gmra.mxu0 %v4084
    %v4175 = vpop.f32.mrf.mxu0
    %v4176 = vadd.f32 %v3130, %v4175
    %v4177 = vpop.f32.mrf.mxu0
    %v4178 = vpop.f32.mrf.mxu0
    %v4179 = vadd.f32 %v3131, %v4178
    %v4180 = vpop.f32.mrf.mxu0
    %4181 = vdwg.mxu0
    %v4182 = vmax.f32 %v4120, 0.0
    %v4183 = vmax.f32 %v4123, 0.0
    %v4184 = vmax.f32 %v4128, 0.0
    %v4185 = vmax.f32 %v4131, 0.0
    %v4186 = vmax.f32 %v4136, 0.0
    %v4187 = vmax.f32 %v4139, 0.0
    %v4188 = vmax.f32 %v4144, 0.0
    %v4189 = vmax.f32 %v4147, 0.0
    %v4190 = vmax.f32 %v4152, 0.0
    %v4191 = vmax.f32 %v4155, 0.0
    %v4192 = vmax.f32 %v4160, 0.0
    %v4193 = vmax.f32 %v4163, 0.0
    %v4194 = vmax.f32 %v4168, 0.0
    %v4195 = vmax.f32 %v4171, 0.0
    %v4196 = vmax.f32 %v4176, 0.0
    %v4197 = vmax.f32 %v4179, 0.0
    %v4198 = vpack.c.bf16 %v4183, %v4182
    %v4199 = vpack.c.bf16 %v4185, %v4184
    %v4200 = vpack.c.bf16 %v4187, %v4186
    %v4201 = vpack.c.bf16 %v4189, %v4188
    %v4202 = vpack.c.bf16 %v4191, %v4190
    %v4203 = vpack.c.bf16 %v4193, %v4192
    %v4204 = vpack.c.bf16 %v4195, %v4194
    %v4205 = vpack.c.bf16 %v4197, %v4196
    %v4206 = vld [vmem:[%s8] sm:$0xf]
    %v4207 = vld [vmem:[%s8 + $0x4] sm:$0xf]
    %v4208 = vld [vmem:[%s8 + $0x8] sm:$0xf]
    %v4209 = vld [vmem:[%s8 + $0xc] sm:$0xf]
    %v4210 = vld [vmem:[%s8 + $0x10] sm:$0xf]
    %v4211 = vld [vmem:[%s8 + $0x14] sm:$0xf]
    %v4212 = vld [vmem:[%s8 + $0x18] sm:$0xf]
    %v4213 = vld [vmem:[%s8 + $0x1c] sm:$0xf]
    %v4214 = vld [vmem:[%s8 + $0x20] sm:$0xf]
    %v4215 = vld [vmem:[%s8 + $0x24] sm:$0xf]
    %v4216 = vld [vmem:[%s8 + $0x28] sm:$0xf]
    %v4217 = vld [vmem:[%s8 + $0x2c] sm:$0xf]
    %v4218 = vld [vmem:[%s8 + $0x30] sm:$0xf]
    %v4219 = vld [vmem:[%s8 + $0x34] sm:$0xf]
    %v4220 = vld [vmem:[%s8 + $0x38] sm:$0xf]
    %v4221 = vld [vmem:[%s8 + $0x3c] sm:$0xf]
    %v4222 = vld [vmem:[%s9] sm:$0xff]
    %v4223 = vld [vmem:[%s9 + $0x8] sm:$0xff]
    %v4224 = vld [vmem:[%s9 + $0x10] sm:$0xff]
    %v4225 = vld [vmem:[%s9 + $0x18] sm:$0xff]
    %v4226 = vld [vmem:[%s9 + $0x20] sm:$0xff]
    %v4227 = vld [vmem:[%s9 + $0x28] sm:$0xff]
    %v4228 = vld [vmem:[%s9 + $0x30] sm:$0xff]
    %v4229 = vld [vmem:[%s9 + $0x38] sm:$0xff]
    %v4230 = vld [vmem:[%s9 + $0x40] sm:$0xff]
    %v4231 = vld [vmem:[%s9 + $0x48] sm:$0xff]
    %v4232 = vld [vmem:[%s9 + $0x50] sm:$0xff]
    %v4233 = vld [vmem:[%s9 + $0x58] sm:$0xff]
    %v4234 = vld [vmem:[%s9 + $0x60] sm:$0xff]
    %v4235 = vld [vmem:[%s9 + $0x68] sm:$0xff]
    %v4236 = vld [vmem:[%s9 + $0x70] sm:$0xff]
    %v4237 = vld [vmem:[%s9 + $0x78] sm:$0xff]
    %4239 = vset.pattern.permute.xlu0 0
    %4240 = vperm.xlu0 %4239, %v4222
    %v4241 = vpop.permute.xlu0 %4240
    %4244 = vset.pattern.permute.xlu0 0
    %4245 = vperm.xlu0 %4244, %v4223
    %v4246 = vpop.permute.xlu0 %4245
    %4249 = vset.pattern.permute.xlu0 0
    %4250 = vperm.xlu0 %4249, %v4224
    %v4251 = vpop.permute.xlu0 %4250
    %4254 = vset.pattern.permute.xlu0 0
    %4255 = vperm.xlu0 %4254, %v4225
    %v4256 = vpop.permute.xlu0 %4255
    %4259 = vset.pattern.permute.xlu0 0
    %4260 = vperm.xlu0 %4259, %v4226
    %v4261 = vpop.permute.xlu0 %4260
    %4264 = vset.pattern.permute.xlu0 0
    %4265 = vperm.xlu0 %4264, %v4227
    %v4266 = vpop.permute.xlu0 %4265
    %4269 = vset.pattern.permute.xlu0 0
    %4270 = vperm.xlu0 %4269, %v4228
    %v4271 = vpop.permute.xlu0 %4270
    %4274 = vset.pattern.permute.xlu0 0
    %4275 = vperm.xlu0 %4274, %v4229
    %v4276 = vpop.permute.xlu0 %4275
    %4279 = vset.pattern.permute.xlu0 0
    %4280 = vperm.xlu0 %4279, %v4230
    %v4281 = vpop.permute.xlu0 %4280
    %4284 = vset.pattern.permute.xlu0 0
    %4285 = vperm.xlu0 %4284, %v4231
    %v4286 = vpop.permute.xlu0 %4285
    %4289 = vset.pattern.permute.xlu0 0
    %4290 = vperm.xlu0 %4289, %v4232
    %v4291 = vpop.permute.xlu0 %4290
    %4294 = vset.pattern.permute.xlu0 0
    %4295 = vperm.xlu0 %4294, %v4233
    %v4296 = vpop.permute.xlu0 %4295
    %4299 = vset.pattern.permute.xlu0 0
    %4300 = vperm.xlu0 %4299, %v4234
    %v4301 = vpop.permute.xlu0 %4300
    %4304 = vset.pattern.permute.xlu0 0
    %4305 = vperm.xlu0 %4304, %v4235
    %v4306 = vpop.permute.xlu0 %4305
    %4309 = vset.pattern.permute.xlu0 0
    %4310 = vperm.xlu0 %4309, %v4236
    %v4311 = vpop.permute.xlu0 %4310
    %4314 = vset.pattern.permute.xlu0 0
    %4315 = vperm.xlu0 %4314, %v4237
    %v4316 = vpop.permute.xlu0 %4315
    %v4334 = vunpack.c.l.b16 %v4206
    %v4335 = vunpack.c.l.b16 %v4207
    %v4336 = vunpack.c.l.b16 %v4208
    %v4337 = vunpack.c.l.b16 %v4209
    %v4338 = vunpack.c.l.b16 %v4210
    %v4339 = vunpack.c.l.b16 %v4211
    %v4340 = vunpack.c.l.b16 %v4212
    %v4341 = vunpack.c.l.b16 %v4213
    %v4342 = vunpack.c.l.b16 %v4214
    %v4343 = vunpack.c.l.b16 %v4215
    %v4344 = vunpack.c.l.b16 %v4216
    %v4345 = vunpack.c.l.b16 %v4217
    %v4346 = vunpack.c.l.b16 %v4218
    %v4347 = vunpack.c.l.b16 %v4219
    %v4348 = vunpack.c.l.b16 %v4220
    %v4349 = vunpack.c.l.b16 %v4221
    %v4350 = vpack.c.b16 %v4335, %v4334
    %v4351 = vpack.c.b16 %v4337, %v4336
    %v4352 = vpack.c.b16 %v4339, %v4338
    %v4353 = vpack.c.b16 %v4341, %v4340
    %v4354 = vpack.c.b16 %v4343, %v4342
    %v4355 = vpack.c.b16 %v4345, %v4344
    %v4356 = vpack.c.b16 %v4347, %v4346
    %v4357 = vpack.c.b16 %v4349, %v4348
    %4366 = vmatprep.subr.bf16.mxu0 0
    %4367 = vmatpush1.bf16.msra.mxu0 %v4205
    %4368 = vmatprep.subr.bf16.mxu0 0
    %4369 = vmatpush1.bf16.msra.mxu0 %v4204
    %4370 = vmatprep.subr.bf16.mxu0 0
    %4371 = vmatpush1.bf16.msra.mxu0 %v4203
    %4372 = vmatprep.subr.bf16.mxu0 0
    %4373 = vmatpush1.bf16.msra.mxu0 %v4202
    %4374 = vmatprep.subr.bf16.mxu0 0
    %4375 = vmatpush1.bf16.msra.mxu0 %v4201
    %4376 = vmatprep.subr.bf16.mxu0 0
    %4377 = vmatpush1.bf16.msra.mxu0 %v4200
    %4378 = vmatprep.subr.bf16.mxu0 0
    %4379 = vmatpush1.bf16.msra.mxu0 %v4199
    %4380 = vmatprep.subr.bf16.mxu0 0
    %4381 = vmatpush1.bf16.msra.mxu0 %v4198
    %4382 = vmatprep.subr.bf16.mxu0 0
    %4383 = vmatpush2.bf16.msra.mxu0 0
    %4384 = vmatprep.subr.bf16.mxu0 0
    %4385 = vmatpush2.bf16.msra.mxu0 0
    %4386 = vmatprep.subr.bf16.mxu0 0
    %4387 = vmatpush2.bf16.msra.mxu0 0
    %4388 = vmatprep.subr.bf16.mxu0 0
    %4389 = vmatpush2.bf16.msra.mxu0 0
    %4390 = vmatprep.subr.bf16.mxu0 0
    %4391 = vmatpush2.bf16.msra.mxu0 0
    %4392 = vmatprep.subr.bf16.mxu0 0
    %4393 = vmatpush2.bf16.msra.mxu0 0
    %4394 = vmatprep.subr.bf16.mxu0 0
    %4395 = vmatpush2.bf16.msra.mxu0 0
    %4396 = vmatprep.subr.bf16.mxu0 0
    %4397 = vmatpush2.bf16.msra.mxu0 0
    %4398 = vmatprep.mubr.bf16.mxu0 0
    %4399 = vmatmul.mubr.bf16.gmra.mxu0 %v4350
    %v4400 = vpop.f32.mrf.mxu0
    %v4401 = vadd.f32 %v4241, %v4400
    %v4402 = vpop.f32.mrf.mxu0
    %v4403 = vpop.f32.mrf.mxu0
    %v4404 = vadd.f32 %v4246, %v4403
    %v4405 = vpop.f32.mrf.mxu0
    %4406 = vmatprep.mubr.bf16.mxu0 0
    %4407 = vmatmul.mubr.bf16.gmra.mxu0 %v4351
    %v4408 = vpop.f32.mrf.mxu0
    %v4409 = vadd.f32 %v4251, %v4408
    %v4410 = vpop.f32.mrf.mxu0
    %v4411 = vpop.f32.mrf.mxu0
    %v4412 = vadd.f32 %v4256, %v4411
    %v4413 = vpop.f32.mrf.mxu0
    %4414 = vmatprep.mubr.bf16.mxu0 0
    %4415 = vmatmul.mubr.bf16.gmra.mxu0 %v4352
    %v4416 = vpop.f32.mrf.mxu0
    %v4417 = vadd.f32 %v4261, %v4416
    %v4418 = vpop.f32.mrf.mxu0
    %v4419 = vpop.f32.mrf.mxu0
    %v4420 = vadd.f32 %v4266, %v4419
    %v4421 = vpop.f32.mrf.mxu0
    %4422 = vmatprep.mubr.bf16.mxu0 0
    %4423 = vmatmul.mubr.bf16.gmra.mxu0 %v4353
    %v4424 = vpop.f32.mrf.mxu0
    %v4425 = vadd.f32 %v4271, %v4424
    %v4426 = vpop.f32.mrf.mxu0
    %v4427 = vpop.f32.mrf.mxu0
    %v4428 = vadd.f32 %v4276, %v4427
    %v4429 = vpop.f32.mrf.mxu0
    %4430 = vmatprep.mubr.bf16.mxu0 0
    %4431 = vmatmul.mubr.bf16.gmra.mxu0 %v4354
    %v4432 = vpop.f32.mrf.mxu0
    %v4433 = vadd.f32 %v4281, %v4432
    %v4434 = vpop.f32.mrf.mxu0
    %v4435 = vpop.f32.mrf.mxu0
    %v4436 = vadd.f32 %v4286, %v4435
    %v4437 = vpop.f32.mrf.mxu0
    %4438 = vmatprep.mubr.bf16.mxu0 0
    %4439 = vmatmul.mubr.bf16.gmra.mxu0 %v4355
    %v4440 = vpop.f32.mrf.mxu0
    %v4441 = vadd.f32 %v4291, %v4440
    %v4442 = vpop.f32.mrf.mxu0
    %v4443 = vpop.f32.mrf.mxu0
    %v4444 = vadd.f32 %v4296, %v4443
    %v4445 = vpop.f32.mrf.mxu0
    %4446 = vmatprep.mubr.bf16.mxu0 0
    %4447 = vmatmul.mubr.bf16.gmra.mxu0 %v4356
    %v4448 = vpop.f32.mrf.mxu0
    %v4449 = vadd.f32 %v4301, %v4448
    %v4450 = vpop.f32.mrf.mxu0
    %v4451 = vpop.f32.mrf.mxu0
    %v4452 = vadd.f32 %v4306, %v4451
    %v4453 = vpop.f32.mrf.mxu0
    %4454 = vmatprep.mubr.bf16.mxu0 0
    %4455 = vmatmul.mubr.bf16.gmra.mxu0 %v4357
    %v4456 = vpop.f32.mrf.mxu0
    %v4457 = vadd.f32 %v4311, %v4456
    %v4458 = vpop.f32.mrf.mxu0
    %v4459 = vpop.f32.mrf.mxu0
    %v4460 = vadd.f32 %v4316, %v4459
    %v4461 = vpop.f32.mrf.mxu0
    %4462 = vdwg.mxu0
    %v4463 = vlaneseq
    %v4464 = vshrl.u32 %v4463, 7
    %v4465 = vadd.s32 %v4464, 8
    %v4466 = vadd.s32 %v4464, 16
    %v4467 = vadd.s32 %v4464, 24
    %v4468 = vadd.s32 %v4464, 32
    %v4469 = vadd.s32 %v4464, 40
    %v4470 = vadd.s32 %v4464, 48
    %v4471 = vadd.s32 %v4464, 56
    %v4472 = vadd.s32 %v4464, 64
    %v4473 = vadd.s32 %v4464, 72
    %v4474 = vadd.s32 %v4464, 80
    %v4475 = vadd.s32 %v4464, 88
    %v4476 = vadd.s32 %v4464, 96
    %v4477 = vadd.s32 %v4464, 104
    %v4478 = vadd.s32 %v4464, 112
    %v4479 = vadd.s32 %v4464, 120
    %vm4480 = vcmp.lt.s32.totalorder %v4464, 4
    %vm4481 = vcmp.lt.s32.totalorder %v4465, 4
    %vm4482 = vcmp.lt.s32.totalorder %v4466, 4
    %vm4483 = vcmp.lt.s32.totalorder %v4467, 4
    %vm4484 = vcmp.lt.s32.totalorder %v4468, 4
    %vm4485 = vcmp.lt.s32.totalorder %v4469, 4
    %vm4486 = vcmp.lt.s32.totalorder %v4470, 4
    %vm4487 = vcmp.lt.s32.totalorder %v4471, 4
    %vm4488 = vcmp.lt.s32.totalorder %v4472, 4
    %vm4489 = vcmp.lt.s32.totalorder %v4473, 4
    %vm4490 = vcmp.lt.s32.totalorder %v4474, 4
    %vm4491 = vcmp.lt.s32.totalorder %v4475, 4
    %vm4492 = vcmp.lt.s32.totalorder %v4476, 4
    %vm4493 = vcmp.lt.s32.totalorder %v4477, 4
    %vm4494 = vcmp.lt.s32.totalorder %v4478, 4
    %vm4495 = vcmp.lt.s32.totalorder %v4479, 4
    %v4496 = vsel %vm4480, %v4401, -1e+30
    %v4497 = vsel %vm4481, %v4404, -1e+30
    %v4498 = vsel %vm4482, %v4409, -1e+30
    %v4499 = vsel %vm4483, %v4412, -1e+30
    %v4500 = vsel %vm4484, %v4417, -1e+30
    %v4501 = vsel %vm4485, %v4420, -1e+30
    %v4502 = vsel %vm4486, %v4425, -1e+30
    %v4503 = vsel %vm4487, %v4428, -1e+30
    %v4504 = vsel %vm4488, %v4433, -1e+30
    %v4505 = vsel %vm4489, %v4436, -1e+30
    %v4506 = vsel %vm4490, %v4441, -1e+30
    %v4507 = vsel %vm4491, %v4444, -1e+30
    %v4508 = vsel %vm4492, %v4449, -1e+30
    %v4509 = vsel %vm4493, %v4452, -1e+30
    %v4510 = vsel %vm4494, %v4457, -1e+30
    %v4511 = vsel %vm4495, %v4460, -1e+30
    %v4512 = vmax.f32 %v4496, %v4500
    %v4513 = vmax.f32 %v4497, %v4501
    %v4514 = vmax.f32 %v4498, %v4502
    %v4515 = vmax.f32 %v4499, %v4503
    %v4516 = vmax.f32 %v4512, %v4504
    %v4517 = vmax.f32 %v4513, %v4505
    %v4518 = vmax.f32 %v4514, %v4506
    %v4519 = vmax.f32 %v4515, %v4507
    %v4520 = vmax.f32 %v4516, %v4508
    %v4521 = vmax.f32 %v4517, %v4509
    %v4522 = vmax.f32 %v4518, %v4510
    %v4523 = vmax.f32 %v4519, %v4511
    %v4524 = vmax.f32 %v4520, %v4521
    %v4525 = vmax.f32 %v4522, %v4523
    %v4526 = vmax.f32 %v4524, %v4525
    %v4527 = vrot.slane %v4526, 4
    %v4528 = vmax.f32 %v4526, %v4527
    %v4529 = vrot.slane %v4528, 2
    %v4530 = vmax.f32 %v4528, %v4529
    %v4531 = vrot.slane %v4530, 1
    %v4532 = vmax.f32 %v4530, %v4531
    %v4533 = vsub.f32 %v4496, %v4532
    %v4534 = vsub.f32 %v4497, %v4532
    %v4535 = vsub.f32 %v4498, %v4532
    %v4536 = vsub.f32 %v4499, %v4532
    %v4537 = vsub.f32 %v4500, %v4532
    %v4538 = vsub.f32 %v4501, %v4532
    %v4539 = vsub.f32 %v4502, %v4532
    %v4540 = vsub.f32 %v4503, %v4532
    %v4541 = vsub.f32 %v4504, %v4532
    %v4542 = vsub.f32 %v4505, %v4532
    %v4543 = vsub.f32 %v4506, %v4532
    %v4544 = vsub.f32 %v4507, %v4532
    %v4545 = vsub.f32 %v4508, %v4532
    %v4546 = vsub.f32 %v4509, %v4532
    %v4547 = vsub.f32 %v4510, %v4532
    %v4548 = vsub.f32 %v4511, %v4532
    %v4549 = vmul.f32 %v4533, 1.442695
    %v4550 = vpow.pop %v4549
    %v4551 = vmul.f32 %v4534, 1.442695
    %v4552 = vpow.pop %v4551
    %v4553 = vmul.f32 %v4535, 1.442695
    %v4554 = vpow.pop %v4553
    %v4555 = vmul.f32 %v4536, 1.442695
    %v4556 = vpow.pop %v4555
    %v4557 = vmul.f32 %v4537, 1.442695
    %v4558 = vpow.pop %v4557
    %v4559 = vmul.f32 %v4538, 1.442695
    %v4560 = vpow.pop %v4559
    %v4561 = vmul.f32 %v4539, 1.442695
    %v4562 = vpow.pop %v4561
    %v4563 = vmul.f32 %v4540, 1.442695
    %v4564 = vpow.pop %v4563
    %v4565 = vmul.f32 %v4541, 1.442695
    %v4566 = vpow.pop %v4565
    %v4567 = vmul.f32 %v4542, 1.442695
    %v4568 = vpow.pop %v4567
    %v4569 = vmul.f32 %v4543, 1.442695
    %v4570 = vpow.pop %v4569
    %v4571 = vmul.f32 %v4544, 1.442695
    %v4572 = vpow.pop %v4571
    %v4573 = vmul.f32 %v4545, 1.442695
    %v4574 = vpow.pop %v4573
    %v4575 = vmul.f32 %v4546, 1.442695
    %v4576 = vpow.pop %v4575
    %v4577 = vmul.f32 %v4547, 1.442695
    %v4578 = vpow.pop %v4577
    %v4579 = vmul.f32 %v4548, 1.442695
    %v4580 = vpow.pop %v4579
    %v4581 = vadd.f32 %v4550, %v4552
    %v4582 = vadd.f32 %v4581, %v4554
    %v4583 = vadd.f32 %v4582, %v4556
    %v4584 = vadd.f32 %v4583, %v4558
    %v4585 = vadd.f32 %v4584, %v4560
    %v4586 = vadd.f32 %v4585, %v4562
    %v4587 = vadd.f32 %v4586, %v4564
    %v4588 = vadd.f32 %v4587, %v4566
    %v4589 = vadd.f32 %v4588, %v4568
    %v4590 = vadd.f32 %v4589, %v4570
    %v4591 = vadd.f32 %v4590, %v4572
    %v4592 = vadd.f32 %v4591, %v4574
    %v4593 = vadd.f32 %v4592, %v4576
    %v4594 = vadd.f32 %v4593, %v4578
    %v4595 = vadd.f32 %v4594, %v4580
    %v4596 = vrot.slane %v4595, 4
    %v4597 = vadd.f32 %v4595, %v4596
    %v4598 = vrot.slane %v4597, 2
    %v4599 = vadd.f32 %v4597, %v4598
    %v4600 = vrot.slane %v4599, 1
    %v4601 = vadd.f32 %v4599, %v4600
    %v4602 = vlog2.pop %v4601
    %v4603 = vmul.f32 %v4602, 0.6931472
    %v4604 = vsub.f32 %v4533, %v4603
    %v4605 = vsub.f32 %v4534, %v4603
    %v4606 = vsub.f32 %v4535, %v4603
    %v4607 = vsub.f32 %v4536, %v4603
    %v4608 = vsub.f32 %v4537, %v4603
    %v4609 = vsub.f32 %v4538, %v4603
    %v4610 = vsub.f32 %v4539, %v4603
    %v4611 = vsub.f32 %v4540, %v4603
    %v4612 = vsub.f32 %v4541, %v4603
    %v4613 = vsub.f32 %v4542, %v4603
    %v4614 = vsub.f32 %v4543, %v4603
    %v4615 = vsub.f32 %v4544, %v4603
    %v4616 = vsub.f32 %v4545, %v4603
    %v4617 = vsub.f32 %v4546, %v4603
    %v4618 = vsub.f32 %v4547, %v4603
    %v4619 = vsub.f32 %v4548, %v4603
    %4620 = vst [vmem:[#allocation2] sm:$0xff] %v4604
    %4621 = vst [vmem:[#allocation2 + $0x8] sm:$0xff] %v4605
    %4622 = vst [vmem:[#allocation2 + $0x10] sm:$0xff] %v4606
    %4623 = vst [vmem:[#allocation2 + $0x18] sm:$0xff] %v4607
    %4624 = vst [vmem:[#allocation2 + $0x20] sm:$0xff] %v4608
    %4625 = vst [vmem:[#allocation2 + $0x28] sm:$0xff] %v4609
    %4626 = vst [vmem:[#allocation2 + $0x30] sm:$0xff] %v4610
    %4627 = vst [vmem:[#allocation2 + $0x38] sm:$0xff] %v4611
    %4628 = vst [vmem:[#allocation2 + $0x40] sm:$0xff] %v4612
    %4629 = vst [vmem:[#allocation2 + $0x48] sm:$0xff] %v4613
    %4630 = vst [vmem:[#allocation2 + $0x50] sm:$0xff] %v4614
    %4631 = vst [vmem:[#allocation2 + $0x58] sm:$0xff] %v4615
    %4632 = vst [vmem:[#allocation2 + $0x60] sm:$0xff] %v4616
    %4633 = vst [vmem:[#allocation2 + $0x68] sm:$0xff] %v4617
    %4634 = vst [vmem:[#allocation2 + $0x70] sm:$0xff] %v4618
    %4635 = vst [vmem:[#allocation2 + $0x78] sm:$0xff] %v4619
    // Predicated region
    $region42: #{tpu_custom_call.1} parent=1 // pred_check
      _
    $region43: #{tpu_custom_call.1} parent=1 // pred_check_branch
      %4637 = sbr.rel (0) target = $region45
    $region44: #{tpu_custom_call.1} parent=1 // pred_region
      %s4639 = ssub.s32 2048, 2048
      %4640 = vsyncadd [#allocation3], %s4639
      %s4641 = sshll.u32 [#allocation2], 4
      %s4642 = int_to_ptr.vmem [resolvable:$true] %s4641
      %4647 = dma.vmem_to_hbm [thread:$0]  %s4642, 2048, %s10, [#allocation3], 128, 128, 8
    $region45: #{tpu_custom_call.1} parent=1 // pred_fallthru
      _
    // Predicated region
    $region46: #{tpu_custom_call.1} parent=1 // pred_check
      _
    $region47: #{tpu_custom_call.1} parent=1 // pred_check_branch
      %4649 = sbr.rel (0) target = $region49
    $region48: #{tpu_custom_call.1} parent=1 // pred_region
      %4650 = dma.done [#allocation3], 2048
    $region49: #{tpu_custom_call.1} parent=1 // pred_fallthru
      _
    %4651 = vsyncpa [#allocation3], 1

</llo_original>
